<compile_context>
chip_gen: v5e
topology: v5e:2x2
jax: 0.10.0
libtpu: 0.0.40
codegen_flags: <defaults>
</compile_context>

<pallas_src>
import jax
import jax.numpy as jnp
from jax import lax
from jax.experimental import pallas as pl
from jax.experimental.pallas import tpu as pltpu

# Scaled-down dims (original module: EMBEDDING_SIZE=400, HIDDEN_SIZE=1150, vocab large).
# Multiples of (8, 128) so every block is full-extent / lane-dense.
EMBEDDING_SIZE = 128
HIDDEN_SIZE = 256
VOCAB_SIZE = 256
BATCH = 8
SEQ = 8

NUM_LAYERS = 3
CMAX = max(HIDDEN_SIZE, EMBEDDING_SIZE)     # padded per-layer input width
HMAX = CMAX                                 # padded per-layer hidden width
GMAX = 4 * HMAX                             # padded gate width, blocks (i|f|o|g)
DEC_V_TILE = 128                            # vocab tile for the decoder grid
LAYER_DIMS = [(EMBEDDING_SIZE, HIDDEN_SIZE),
              (HIDDEN_SIZE, HIDDEN_SIZE),
              (HIDDEN_SIZE, EMBEDDING_SIZE)]
LAYER_H = [h for _, h in LAYER_DIMS]


# ----------------------------- Pallas kernels --------------------------------

def _lstm_stack_kernel(x0_ref, w_ih_ref, w_hh_ref, b_ref,
                       hn_ref, cn_ref, y_ref, gx_ref):
    """One grid step == one LSTM layer (layer axis 'arbitrary', weights pipelined).

    x0_ref : (T, B, CMAX) bf16  embedded input (layer-0 input), resident block
    w_ih   : (CMAX, GMAX) bf16  this layer's input projection (zero padded)
    w_hh   : (HMAX, GMAX) bf16  this layer's recurrent weights (zero padded)
    b      : (1, GMAX)    f32   combined bias b_ih + b_hh (zero padded)
    hn/cn  : (B, HMAX)    f32   final hidden / cell state of this layer
    y_ref  : (T, B, CMAX) bf16  resident output block: layer output sequence
                                (doubles as the next layer's input; padded hidden
                                 columns stay exactly zero)
    gx_ref : (T, B, GMAX) bf16  VMEM scratch: hoisted input projection
    """
    l = pl.program_id(0)
    T, B, _ = y_ref.shape
    G = gx_ref.shape[2]
    Hm = G // 4
    TB = T * B

    # Layer input: embedded tokens for layer 0, previous layer's output otherwise.
    x_seq = jnp.where(l == 0, x0_ref[...], y_ref[...])            # (T, B, CMAX) bf16
    x_flat = x_seq.reshape(TB, x_seq.shape[2])

    # Hoisted input projection + bias: one bf16 GEMM per layer (f32 accumulate).
    gx = jnp.dot(x_flat, w_ih_ref[...],
                 preferred_element_type=jnp.float32) + b_ref[...]
    gx_ref[...] = gx.reshape(T, B, G).astype(jnp.bfloat16)

    w_hh = w_hh_ref[...]      # bf16, hoisted out of the time loop
    # TODO(synk): stationary-RHS MXU driving (matmul_push_rhs/acc_lhs) if profiling
    # shows W_hh being re-staged every unrolled step.

    def step(t, carry):
        h, c = carry                                              # f32 (B, Hm)
        g = gx_ref[t].astype(jnp.float32) + jnp.dot(
            h.astype(jnp.bfloat16), w_hh, preferred_element_type=jnp.float32)
        s = jax.nn.sigmoid(g[:, :3 * Hm])                         # contiguous i|f|o
        i = s[:, 0 * Hm:1 * Hm]
        f = s[:, 1 * Hm:2 * Hm]
        o = s[:, 2 * Hm:3 * Hm]
        gg = jnp.tanh(g[:, 3 * Hm:4 * Hm])
        c = f * c + i * gg
        h = o * jnp.tanh(c)
        y_ref[t] = h.astype(jnp.bfloat16)
        return h, c

    h0 = jnp.zeros((B, Hm), jnp.float32)
    c0 = jnp.zeros((B, Hm), jnp.float32)
    hn, cn = lax.fori_loop(0, T, step, (h0, c0), unroll=True)     # T static, unrolled
    hn_ref[...] = hn
    cn_ref[...] = cn


def _decoder_kernel(y_ref, emb_ref, b_ref, out_ref):
    """Tied decoder, one vocab tile per grid step ('parallel' => both TCs on v7x)."""
    out_ref[...] = lax.dot_general(
        y_ref[...], emb_ref[...],
        dimension_numbers=(((1,), (1,)), ((), ())),
        preferred_element_type=jnp.float32) + b_ref[...]


# ----------------------------- wrapper ---------------------------------------

def language_model_forward(packed, x_ids):
    """x_ids: (B, T) int32 -> (logits (B, V, T), ((h1,h2,h3), (c1,c2,c3)))."""
    B, T = x_ids.shape
    TB = T * B
    E, V, L = EMBEDDING_SIZE, VOCAB_SIZE, NUM_LAYERS
    Cm, Hm, G = CMAX, HMAX, GMAX

    # Embedding gather in the wrapper (real gather; replaces in-kernel one-hot matmul).
    x0 = jnp.take(packed["emb_f32"], x_ids, axis=0)               # (B, T, E) f32
    x0 = jnp.transpose(x0, (1, 0, 2)).astype(jnp.bfloat16)        # (T, B, E)
    x0 = jnp.pad(x0, ((0, 0), (0, 0), (0, Cm - E)))               # (T, B, Cm)

    out_shape = (
        jax.ShapeDtypeStruct((L, B, Hm), jnp.float32),            # hn per layer
        jax.ShapeDtypeStruct((L, B, Hm), jnp.float32),            # cn per layer
        jax.ShapeDtypeStruct((T, B, Cm), jnp.bfloat16),           # last layer output seq
    )
    grid_spec = pltpu.PrefetchScalarGridSpec(
        num_scalar_prefetch=0,
        grid=(L,),
        in_specs=[
            pl.BlockSpec((T, B, Cm), lambda l: (0, 0, 0)),        # x0, resident
            pl.BlockSpec((None, Cm, G), lambda l: (l, 0, 0)),     # w_ih, per layer
            pl.BlockSpec((None, Hm, G), lambda l: (l, 0, 0)),     # w_hh, per layer
            pl.BlockSpec((None, 1, G), lambda l: (l, 0, 0)),      # bias, per layer
        ],
        out_specs=(
            pl.BlockSpec((None, B, Hm), lambda l: (l, 0, 0)),
            pl.BlockSpec((None, B, Hm), lambda l: (l, 0, 0)),
            pl.BlockSpec((T, B, Cm), lambda l: (0, 0, 0)),        # resident y
        ),
        scratch_shapes=[pltpu.VMEM((T, B, G), jnp.bfloat16)],     # gx scratch (bf16)
    )
    h_stack, c_stack, y_last = pl.pallas_call(
        _lstm_stack_kernel,
        out_shape=out_shape,
        grid_spec=grid_spec,
        compiler_params=pltpu.CompilerParams(
            dimension_semantics=("arbitrary",),
            vmem_limit_bytes=32 * 1024 * 1024),
    )(x0, packed["w_ih_stack"], packed["w_hh_stack"], packed["b_stack"])

    # Tied decoder: separate pallas_call, 'parallel' grid over vocab tiles.
    y2 = y_last.reshape(TB, Cm)[:, :E]                            # (TB, E) bf16
    TV = DEC_V_TILE
    logits_flat = pl.pallas_call(
        _decoder_kernel,
        out_shape=jax.ShapeDtypeStruct((TB, V), jnp.float32),
        grid_spec=pltpu.PrefetchScalarGridSpec(
            num_scalar_prefetch=0,
            grid=(V // TV,),
            in_specs=[
                pl.BlockSpec((TB, E), lambda j: (0, 0)),          # y2, resident
                pl.BlockSpec((TV, E), lambda j: (j, 0)),          # emb rows per tile
                pl.BlockSpec((None, 1, TV), lambda j: (j, 0, 0)), # bias per tile
            ],
            out_specs=pl.BlockSpec((TB, TV), lambda j: (0, j)),
        ),
        compiler_params=pltpu.CompilerParams(
            dimension_semantics=("parallel",),
            vmem_limit_bytes=32 * 1024 * 1024),
    )(y2, packed["emb_bf16"], packed["dec_b"])

    # (T*B, V) time-major flat -> (B, V, T)  (matches torch.transpose(x, 1, 2))
    logits = jnp.transpose(logits_flat.reshape(T, B, V), (1, 2, 0))

    hs = tuple(h_stack[li:li + 1, :, :LAYER_H[li]] for li in range(L))  # (1, B, H_l)
    cs = tuple(c_stack[li:li + 1, :, :LAYER_H[li]] for li in range(L))
    return logits, (hs, cs)


# ----------------------------- parameters ------------------------------------

def init_params(key):
    """Canonical f32 params; gate columns in (i, f, o, g) order.

    (When importing real torch weights, permute the torch (i, f, g, o) gate blocks
    to (i, f, o, g) the same way `reorder` does below.)
    """
    k = HIDDEN_SIZE ** -0.5
    keys = jax.random.split(key, 16)

    def unif(kk, shape, lo, hi):
        return jax.random.uniform(kk, shape, jnp.float32, lo, hi)

    def reorder(w):   # rows are torch gate blocks (i, f, g, o) -> (i, f, o, g)
        i, f, g, o = jnp.split(w, 4, axis=0)
        return jnp.concatenate([i, f, o, g], axis=0)

    params = {
        "emb": unif(keys[0], (VOCAB_SIZE, EMBEDDING_SIZE), -0.1, 0.1),
        "linear_b": unif(keys[1], (1, VOCAB_SIZE), -k, k),
    }
    for li, (cin, h) in enumerate(LAYER_DIMS):
        base = 2 + 4 * li
        w_ih = unif(keys[base + 0], (4 * h, cin), -k, k)          # torch layout (4H, in)
        w_hh = unif(keys[base + 1], (4 * h, h), -k, k)
        b_ih = unif(keys[base + 2], (4 * h,), -k, k)
        b_hh = unif(keys[base + 3], (4 * h,), -k, k)
        params[f"w_ih_{li}"] = reorder(w_ih).T                    # (in, 4H), (i,f,o,g)
        params[f"w_hh_{li}"] = reorder(w_hh).T                    # (H, 4H)
        params[f"b_{li}"] = reorder((b_ih + b_hh)[:, None]).T     # (1, 4H)
    return params


def pack_params(params):
    """Kernel-ready params: bf16 weights, layers stacked & zero-padded to uniform dims."""

    def pad_gate_cols(w, h):
        blocks = jnp.split(w, 4, axis=1)                          # 4 x (rows, h)
        return jnp.concatenate(
            [jnp.pad(blk, ((0, 0), (0, HMAX - h))) for blk in blocks], axis=1)

    w_ih_stack, w_hh_stack, b_stack = [], [], []
    for li, (cin, h) in enumerate(LAYER_DIMS):
        w_ih = jnp.pad(pad_gate_cols(params[f"w_ih_{li}"], h), ((0, CMAX - cin), (0, 0)))
        w_hh = jnp.pad(pad_gate_cols(params[f"w_hh_{li}"], h), ((0, HMAX - h), (0, 0)))
        b = pad_gate_cols(params[f"b_{li}"], h)
        w_ih_stack.append(w_ih)
        w_hh_stack.append(w_hh)
        b_stack.append(b)

    return {
        "emb_f32": params["emb"],                                          # gather source
        "emb_bf16": params["emb"].astype(jnp.bfloat16),                    # tied decoder W
        "w_ih_stack": jnp.stack(w_ih_stack).astype(jnp.bfloat16),          # (3, CMAX, GMAX)
        "w_hh_stack": jnp.stack(w_hh_stack).astype(jnp.bfloat16),          # (3, HMAX, GMAX)
        "b_stack": jnp.stack(b_stack),                                     # (3, 1, GMAX) f32
        "dec_b": params["linear_b"].reshape(VOCAB_SIZE // DEC_V_TILE, 1, DEC_V_TILE),
    }


# ----------------------------- references ------------------------------------

def _ref_lstm_f32(x, w_ih, w_hh, b):
    H = w_hh.shape[0]

    def step(carry, x_t):
        h, c = carry
        g = x_t @ w_ih + h @ w_hh + b
        s = jax.nn.sigmoid(g[:, :3 * H])
        i, f, o = s[:, :H], s[:, H:2 * H], s[:, 2 * H:3 * H]
        gg = jnp.tanh(g[:, 3 * H:])
        c = f * c + i * gg
        h = o * jnp.tanh(c)
        return (h, c), h

    B = x.shape[1]
    init = (jnp.zeros((B, H), jnp.float32), jnp.zeros((B, H), jnp.float32))
    (hn, cn), ys = lax.scan(step, init, x)
    return ys, hn, cn


def reference_forward_f32(params, x_ids):
    B, T = x_ids.shape
    x = jnp.take(params["emb"], x_ids, axis=0)
    x = jnp.transpose(x, (1, 0, 2))
    hs, cs = [], []
    for li in range(NUM_LAYERS):
        x, h, c = _ref_lstm_f32(x, params[f"w_ih_{li}"],
                                params[f"w_hh_{li}"], params[f"b_{li}"])
        hs.append(h)
        cs.append(c)
    flat = x.reshape(T * B, x.shape[2])
    logits = flat @ params["emb"].T + params["linear_b"]
    logits = jnp.transpose(logits.reshape(T, B, VOCAB_SIZE), (1, 2, 0))
    return logits, hs, cs


def _ref_lstm_bf16(x_bf16, w_ih_bf, w_hh_bf, b_f32):
    """Mirrors the kernel's numerics: bf16 matmul operands + bf16 gx/y storage."""
    T, B, Cin = x_bf16.shape
    H = w_hh_bf.shape[0]
    gx = jnp.dot(x_bf16.reshape(T * B, Cin), w_ih_bf,
                 preferred_element_type=jnp.float32) + b_f32
    gx = gx.reshape(T, B, 4 * H).astype(jnp.bfloat16)

    def step(carry, gx_t):
        h, c = carry
        g = gx_t.astype(jnp.float32) + jnp.dot(
            h.astype(jnp.bfloat16), w_hh_bf, preferred_element_type=jnp.float32)
        s = jax.nn.sigmoid(g[:, :3 * H])
        i, f, o = s[:, :H], s[:, H:2 * H], s[:, 2 * H:3 * H]
        gg = jnp.tanh(g[:, 3 * H:])
        c = f * c + i * gg
        h = o * jnp.tanh(c)
        return (h, c), h.astype(jnp.bfloat16)

    init = (jnp.zeros((B, H), jnp.float32), jnp.zeros((B, H), jnp.float32))
    (hn, cn), ys = lax.scan(step, init, gx)
    return ys, hn, cn


def reference_forward_bf16(params, x_ids):
    B, T = x_ids.shape
    x = jnp.take(params["emb"], x_ids, axis=0)
    x = jnp.transpose(x, (1, 0, 2)).astype(jnp.bfloat16)
    hs, cs = [], []
    for li in range(NUM_LAYERS):
        x, h, c = _ref_lstm_bf16(x, params[f"w_ih_{li}"].astype(jnp.bfloat16),
                                 params[f"w_hh_{li}"].astype(jnp.bfloat16),
                                 params[f"b_{li}"])
        hs.append(h)
        cs.append(c)
    flat = x.reshape(T * B, x.shape[2])
    logits = lax.dot_general(flat, params["emb"].astype(jnp.bfloat16),
                             dimension_numbers=(((1,), (1,)), ((), ())),
                             preferred_element_type=jnp.float32) + params["linear_b"]
    logits = jnp.transpose(logits.reshape(T, B, VOCAB_SIZE), (1, 2, 0))
    return logits, hs, cs


# ---------------------------------- main --------------------------------------

if __name__ == "__main__":
    key = jax.random.PRNGKey(0)
    pkey, xkey = jax.random.split(key)
    params = init_params(pkey)
    packed = pack_params(params)
    x_ids = jax.random.randint(xkey, (BATCH, SEQ), 0, VOCAB_SIZE, dtype=jnp.int32)

    fwd = jax.jit(language_model_forward)
    logits, (hs, cs) = jax.block_until_ready(fwd(packed, x_ids))

    assert logits.shape == (BATCH, VOCAB_SIZE, SEQ)
    for li in range(NUM_LAYERS):
        assert hs[li].shape == (1, BATCH, LAYER_H[li])
        assert cs[li].shape == (1, BATCH, LAYER_H[li])

    # Strict check vs a reference that mirrors the kernel's bf16-operand numerics.
    ref_logits, ref_hs, ref_cs = jax.block_until_ready(reference_forward_bf16(params, x_ids))
    assert jnp.allclose(logits, ref_logits, atol=2e-3, rtol=2e-3), "logits mismatch (bf16 ref)"
    for li in range(NUM_LAYERS):
        assert jnp.allclose(hs[li][0], ref_hs[li], atol=2e-3, rtol=2e-3), f"h{li+1} mismatch"
        assert jnp.allclose(cs[li][0], ref_cs[li], atol=2e-3, rtol=2e-3), f"c{li+1} mismatch"

    # Loose semantic check vs a pure-f32 reference (bf16 matmul operands vs f32).
    f32_logits, f32_hs, f32_cs = jax.block_until_ready(reference_forward_f32(params, x_ids))
    assert jnp.allclose(logits, f32_logits, atol=2e-2, rtol=2e-2), "logits mismatch (f32 ref)"
    for li in range(NUM_LAYERS):
        assert jnp.allclose(hs[li][0], f32_hs[li], atol=2e-2, rtol=2e-2), f"h{li+1} f32 mismatch"

    print("KERNEL_OK")
</pallas_src>

<mosaic_0001>
module attributes {stable_mosaic.version = 11 : i64} {
  func.func @_lstm_stack_kernel(%arg0: i32, %arg1: memref<8x8x256xbf16, #tpu.memory_space<vmem>>, %arg2: memref<1x256x1024xbf16, #tpu.memory_space<vmem>>, %arg3: memref<1x256x1024xbf16, #tpu.memory_space<vmem>>, %arg4: memref<1x1x1024xf32, #tpu.memory_space<vmem>>, %arg5: memref<1x8x256xf32, #tpu.memory_space<vmem>>, %arg6: memref<1x8x256xf32, #tpu.memory_space<vmem>>, %arg7: memref<8x8x256xbf16, #tpu.memory_space<vmem>>, %arg8: memref<8x8x1024xbf16, #tpu.memory_space<vmem>>) attributes {dimension_semantics = [#tpu.dimension_semantics<arbitrary>], iteration_bounds = array<i64: 3>, scalar_prefetch = 0 : i64, scratch_operands = 1 : i64, tpu.core_type = #tpu.core_type<tc>, window_params = [{pipeline_mode = #tpu.pipeline_mode<synchronous>, transform_indices = @transform_0, window_bounds = array<i64: 8, 8, 256>}, {transform_indices = @transform_1, window_bounds = array<i64: 1, 256, 1024>}, {transform_indices = @transform_2, window_bounds = array<i64: 1, 256, 1024>}, {transform_indices = @transform_3, window_bounds = array<i64: 1, 1, 1024>}, {transform_indices = @transform_4, window_bounds = array<i64: 1, 8, 256>}, {transform_indices = @transform_5, window_bounds = array<i64: 1, 8, 256>}, {pipeline_mode = #tpu.pipeline_mode<synchronous>, transform_indices = @transform_6, window_bounds = array<i64: 8, 8, 256>}]} {
    %c0_i32 = arith.constant 0 : i32
    %0 = arith.cmpi eq, %arg0, %c0_i32 : i32
    %c0 = arith.constant 0 : index
    %c0_0 = arith.constant 0 : index
    %c0_1 = arith.constant 0 : index
    %1 = vector.load %arg1[%c0, %c0_0, %c0_1] : memref<8x8x256xbf16, #tpu.memory_space<vmem>>, vector<8x8x256xbf16>
    %c0_2 = arith.constant 0 : index
    %c0_3 = arith.constant 0 : index
    %c0_4 = arith.constant 0 : index
    %2 = vector.load %arg7[%c0_2, %c0_3, %c0_4] : memref<8x8x256xbf16, #tpu.memory_space<vmem>>, vector<8x8x256xbf16>
    %3 = arith.select %0, %1, %2 : vector<8x8x256xbf16>
    %4 = vector.shape_cast %3 : vector<8x8x256xbf16> to vector<64x256xbf16>
    %c0_5 = arith.constant 0 : index
    %c0_6 = arith.constant 0 : index
    %c0_7 = arith.constant 0 : index
    %5 = vector.load %arg2[%c0_5, %c0_6, %c0_7] : memref<1x256x1024xbf16, #tpu.memory_space<vmem>>, vector<1x256x1024xbf16>
    %6 = vector.shape_cast %5 : vector<1x256x1024xbf16> to vector<256x1024xbf16>
    %cst = arith.constant dense<0.000000e+00> : vector<64x1024xf32>
    %7 = tpu.matmul %4, %6, %cst {dimension_numbers = #tpu.dot_dimension_numbers<[1], [0], [0], [1], [0, 0, 1, 1], [], []>} : vector<64x256xbf16>, vector<256x1024xbf16>, vector<64x1024xf32> -> vector<64x1024xf32>
    %c0_8 = arith.constant 0 : index
    %c0_9 = arith.constant 0 : index
    %c0_10 = arith.constant 0 : index
    %8 = vector.load %arg4[%c0_8, %c0_9, %c0_10] : memref<1x1x1024xf32, #tpu.memory_space<vmem>>, vector<1x1x1024xf32>
    %9 = vector.shape_cast %8 : vector<1x1x1024xf32> to vector<1x1024xf32>
    %10 = vector.broadcast %9 : vector<1x1024xf32> to vector<64x1024xf32>
    %11 = arith.addf %7, %10 : vector<64x1024xf32>
    %12 = vector.shape_cast %11 : vector<64x1024xf32> to vector<8x8x1024xf32>
    %13 = arith.truncf %12 : vector<8x8x1024xf32> to vector<8x8x1024xbf16>
    %c0_11 = arith.constant 0 : index
    %c0_12 = arith.constant 0 : index
    %c0_13 = arith.constant 0 : index
    %14 = vector.load %arg8[%c0_11, %c0_12, %c0_13] : memref<8x8x1024xbf16, #tpu.memory_space<vmem>>, vector<8x8x1024xbf16>
    tpu.vector_store %arg8[%c0_11, %c0_12, %c0_13], %13 {strides = array<i32>} : memref<8x8x1024xbf16, #tpu.memory_space<vmem>>, vector<8x8x1024xbf16>,
    %c0_14 = arith.constant 0 : index
    %c0_15 = arith.constant 0 : index
    %c0_16 = arith.constant 0 : index
    %15 = vector.load %arg3[%c0_14, %c0_15, %c0_16] : memref<1x256x1024xbf16, #tpu.memory_space<vmem>>, vector<1x256x1024xbf16>
    %16 = vector.shape_cast %15 : vector<1x256x1024xbf16> to vector<256x1024xbf16>
    %cst_17 = arith.constant 0.000000e+00 : f32
    %17 = vector.broadcast %cst_17 : f32 to vector<8x256xf32>
    %cst_18 = arith.constant 0.000000e+00 : f32
    %18 = vector.broadcast %cst_18 : f32 to vector<8x256xf32>
    %c0_i32_19 = arith.constant 0 : i32
    %19 = arith.index_cast %c0_i32_19 : i32 to index
    %c0_20 = arith.constant 0 : index
    %c0_21 = arith.constant 0 : index
    %20 = vector.load %arg8[%19, %c0_20, %c0_21] : memref<8x8x1024xbf16, #tpu.memory_space<vmem>>, vector<1x8x1024xbf16>
    %21 = vector.shape_cast %20 : vector<1x8x1024xbf16> to vector<8x1024xbf16>
    %22 = arith.extf %21 : vector<8x1024xbf16> to vector<8x1024xf32>
    %23 = arith.truncf %17 : vector<8x256xf32> to vector<8x256xbf16>
    %cst_22 = arith.constant dense<0.000000e+00> : vector<8x1024xf32>
    %24 = tpu.matmul %23, %16, %cst_22 {dimension_numbers = #tpu.dot_dimension_numbers<[1], [0], [0], [1], [0, 0, 1, 1], [], []>} : vector<8x256xbf16>, vector<256x1024xbf16>, vector<8x1024xf32> -> vector<8x1024xf32>
    %25 = arith.addf %22, %24 : vector<8x1024xf32>
    %26 = vector.extract_strided_slice %25 {offsets = [0, 0], sizes = [8, 768], strides = [1, 1]} : vector<8x1024xf32> to vector<8x768xf32>
    %27 = arith.negf %26 : vector<8x768xf32>
    %28 = math.exp %27 : vector<8x768xf32>
    %cst_23 = arith.constant 1.000000e+00 : f32
    %29 = vector.broadcast %cst_23 : f32 to vector<8x768xf32>
    %30 = arith.addf %29, %28 : vector<8x768xf32>
    %31 = arith.divf %29, %30 : vector<8x768xf32>
    %32 = vector.extract_strided_slice %31 {offsets = [0, 0], sizes = [8, 256], strides = [1, 1]} : vector<8x768xf32> to vector<8x256xf32>
    %33 = vector.extract_strided_slice %31 {offsets = [0, 256], sizes = [8, 256], strides = [1, 1]} : vector<8x768xf32> to vector<8x256xf32>
    %34 = vector.extract_strided_slice %31 {offsets = [0, 512], sizes = [8, 256], strides = [1, 1]} : vector<8x768xf32> to vector<8x256xf32>
    %35 = vector.extract_strided_slice %25 {offsets = [0, 768], sizes = [8, 256], strides = [1, 1]} : vector<8x1024xf32> to vector<8x256xf32>
    %36 = math.tanh %35 : vector<8x256xf32>
    %37 = arith.mulf %33, %18 : vector<8x256xf32>
    %38 = arith.mulf %32, %36 : vector<8x256xf32>
    %39 = arith.addf %37, %38 : vector<8x256xf32>
    %40 = math.tanh %39 : vector<8x256xf32>
    %41 = arith.mulf %34, %40 : vector<8x256xf32>
    %42 = arith.truncf %41 : vector<8x256xf32> to vector<8x256xbf16>
    %43 = arith.index_cast %c0_i32_19 : i32 to index
    %c0_24 = arith.constant 0 : index
    %c0_25 = arith.constant 0 : index
    %44 = vector.load %arg7[%43, %c0_24, %c0_25] : memref<8x8x256xbf16, #tpu.memory_space<vmem>>, vector<1x8x256xbf16>
    %45 = vector.shape_cast %44 : vector<1x8x256xbf16> to vector<8x256xbf16>
    %46 = vector.shape_cast %42 : vector<8x256xbf16> to vector<1x8x256xbf16>
    tpu.vector_store %arg7[%43, %c0_24, %c0_25], %46 {strides = array<i32>} : memref<8x8x256xbf16, #tpu.memory_space<vmem>>, vector<1x8x256xbf16>,
    %c1_i32 = arith.constant 1 : i32
    %47 = arith.index_cast %c1_i32 : i32 to index
    %c0_26 = arith.constant 0 : index
    %c0_27 = arith.constant 0 : index
    %48 = vector.load %arg8[%47, %c0_26, %c0_27] : memref<8x8x1024xbf16, #tpu.memory_space<vmem>>, vector<1x8x1024xbf16>
    %49 = vector.shape_cast %48 : vector<1x8x1024xbf16> to vector<8x1024xbf16>
    %50 = arith.extf %49 : vector<8x1024xbf16> to vector<8x1024xf32>
    %51 = arith.truncf %41 : vector<8x256xf32> to vector<8x256xbf16>
    %cst_28 = arith.constant dense<0.000000e+00> : vector<8x1024xf32>
    %52 = tpu.matmul %51, %16, %cst_28 {dimension_numbers = #tpu.dot_dimension_numbers<[1], [0], [0], [1], [0, 0, 1, 1], [], []>} : vector<8x256xbf16>, vector<256x1024xbf16>, vector<8x1024xf32> -> vector<8x1024xf32>
    %53 = arith.addf %50, %52 : vector<8x1024xf32>
    %54 = vector.extract_strided_slice %53 {offsets = [0, 0], sizes = [8, 768], strides = [1, 1]} : vector<8x1024xf32> to vector<8x768xf32>
    %55 = arith.negf %54 : vector<8x768xf32>
    %56 = math.exp %55 : vector<8x768xf32>
    %cst_29 = arith.constant 1.000000e+00 : f32
    %57 = vector.broadcast %cst_29 : f32 to vector<8x768xf32>
    %58 = arith.addf %57, %56 : vector<8x768xf32>
    %59 = arith.divf %57, %58 : vector<8x768xf32>
    %60 = vector.extract_strided_slice %59 {offsets = [0, 0], sizes = [8, 256], strides = [1, 1]} : vector<8x768xf32> to vector<8x256xf32>
    %61 = vector.extract_strided_slice %59 {offsets = [0, 256], sizes = [8, 256], strides = [1, 1]} : vector<8x768xf32> to vector<8x256xf32>
    %62 = vector.extract_strided_slice %59 {offsets = [0, 512], sizes = [8, 256], strides = [1, 1]} : vector<8x768xf32> to vector<8x256xf32>
    %63 = vector.extract_strided_slice %53 {offsets = [0, 768], sizes = [8, 256], strides = [1, 1]} : vector<8x1024xf32> to vector<8x256xf32>
    %64 = math.tanh %63 : vector<8x256xf32>
    %65 = arith.mulf %61, %39 : vector<8x256xf32>
    %66 = arith.mulf %60, %64 : vector<8x256xf32>
    %67 = arith.addf %65, %66 : vector<8x256xf32>
    %68 = math.tanh %67 : vector<8x256xf32>
    %69 = arith.mulf %62, %68 : vector<8x256xf32>
    %70 = arith.truncf %69 : vector<8x256xf32> to vector<8x256xbf16>
    %71 = arith.index_cast %c1_i32 : i32 to index
    %c0_30 = arith.constant 0 : index
    %c0_31 = arith.constant 0 : index
    %72 = vector.load %arg7[%71, %c0_30, %c0_31] : memref<8x8x256xbf16, #tpu.memory_space<vmem>>, vector<1x8x256xbf16>
    %73 = vector.shape_cast %72 : vector<1x8x256xbf16> to vector<8x256xbf16>
    %74 = vector.shape_cast %70 : vector<8x256xbf16> to vector<1x8x256xbf16>
    tpu.vector_store %arg7[%71, %c0_30, %c0_31], %74 {strides = array<i32>} : memref<8x8x256xbf16, #tpu.memory_space<vmem>>, vector<1x8x256xbf16>,
    %c2_i32 = arith.constant 2 : i32
    %75 = arith.index_cast %c2_i32 : i32 to index
    %c0_32 = arith.constant 0 : index
    %c0_33 = arith.constant 0 : index
    %76 = vector.load %arg8[%75, %c0_32, %c0_33] : memref<8x8x1024xbf16, #tpu.memory_space<vmem>>, vector<1x8x1024xbf16>
    %77 = vector.shape_cast %76 : vector<1x8x1024xbf16> to vector<8x1024xbf16>
    %78 = arith.extf %77 : vector<8x1024xbf16> to vector<8x1024xf32>
    %79 = arith.truncf %69 : vector<8x256xf32> to vector<8x256xbf16>
    %cst_34 = arith.constant dense<0.000000e+00> : vector<8x1024xf32>
    %80 = tpu.matmul %79, %16, %cst_34 {dimension_numbers = #tpu.dot_dimension_numbers<[1], [0], [0], [1], [0, 0, 1, 1], [], []>} : vector<8x256xbf16>, vector<256x1024xbf16>, vector<8x1024xf32> -> vector<8x1024xf32>
    %81 = arith.addf %78, %80 : vector<8x1024xf32>
    %82 = vector.extract_strided_slice %81 {offsets = [0, 0], sizes = [8, 768], strides = [1, 1]} : vector<8x1024xf32> to vector<8x768xf32>
    %83 = arith.negf %82 : vector<8x768xf32>
    %84 = math.exp %83 : vector<8x768xf32>
    %cst_35 = arith.constant 1.000000e+00 : f32
    %85 = vector.broadcast %cst_35 : f32 to vector<8x768xf32>
    %86 = arith.addf %85, %84 : vector<8x768xf32>
    %87 = arith.divf %85, %86 : vector<8x768xf32>
    %88 = vector.extract_strided_slice %87 {offsets = [0, 0], sizes = [8, 256], strides = [1, 1]} : vector<8x768xf32> to vector<8x256xf32>
    %89 = vector.extract_strided_slice %87 {offsets = [0, 256], sizes = [8, 256], strides = [1, 1]} : vector<8x768xf32> to vector<8x256xf32>
    %90 = vector.extract_strided_slice %87 {offsets = [0, 512], sizes = [8, 256], strides = [1, 1]} : vector<8x768xf32> to vector<8x256xf32>
    %91 = vector.extract_strided_slice %81 {offsets = [0, 768], sizes = [8, 256], strides = [1, 1]} : vector<8x1024xf32> to vector<8x256xf32>
    %92 = math.tanh %91 : vector<8x256xf32>
    %93 = arith.mulf %89, %67 : vector<8x256xf32>
    %94 = arith.mulf %88, %92 : vector<8x256xf32>
    %95 = arith.addf %93, %94 : vector<8x256xf32>
    %96 = math.tanh %95 : vector<8x256xf32>
    %97 = arith.mulf %90, %96 : vector<8x256xf32>
    %98 = arith.truncf %97 : vector<8x256xf32> to vector<8x256xbf16>
    %99 = arith.index_cast %c2_i32 : i32 to index
    %c0_36 = arith.constant 0 : index
    %c0_37 = arith.constant 0 : index
    %100 = vector.load %arg7[%99, %c0_36, %c0_37] : memref<8x8x256xbf16, #tpu.memory_space<vmem>>, vector<1x8x256xbf16>
    %101 = vector.shape_cast %100 : vector<1x8x256xbf16> to vector<8x256xbf16>
    %102 = vector.shape_cast %98 : vector<8x256xbf16> to vector<1x8x256xbf16>
    tpu.vector_store %arg7[%99, %c0_36, %c0_37], %102 {strides = array<i32>} : memref<8x8x256xbf16, #tpu.memory_space<vmem>>, vector<1x8x256xbf16>,
    %c3_i32 = arith.constant 3 : i32
    %103 = arith.index_cast %c3_i32 : i32 to index
    %c0_38 = arith.constant 0 : index
    %c0_39 = arith.constant 0 : index
    %104 = vector.load %arg8[%103, %c0_38, %c0_39] : memref<8x8x1024xbf16, #tpu.memory_space<vmem>>, vector<1x8x1024xbf16>
    %105 = vector.shape_cast %104 : vector<1x8x1024xbf16> to vector<8x1024xbf16>
    %106 = arith.extf %105 : vector<8x1024xbf16> to vector<8x1024xf32>
    %107 = arith.truncf %97 : vector<8x256xf32> to vector<8x256xbf16>
    %cst_40 = arith.constant dense<0.000000e+00> : vector<8x1024xf32>
    %108 = tpu.matmul %107, %16, %cst_40 {dimension_numbers = #tpu.dot_dimension_numbers<[1], [0], [0], [1], [0, 0, 1, 1], [], []>} : vector<8x256xbf16>, vector<256x1024xbf16>, vector<8x1024xf32> -> vector<8x1024xf32>
    %109 = arith.addf %106, %108 : vector<8x1024xf32>
    %110 = vector.extract_strided_slice %109 {offsets = [0, 0], sizes = [8, 768], strides = [1, 1]} : vector<8x1024xf32> to vector<8x768xf32>
    %111 = arith.negf %110 : vector<8x768xf32>
    %112 = math.exp %111 : vector<8x768xf32>
    %cst_41 = arith.constant 1.000000e+00 : f32
    %113 = vector.broadcast %cst_41 : f32 to vector<8x768xf32>
    %114 = arith.addf %113, %112 : vector<8x768xf32>
    %115 = arith.divf %113, %114 : vector<8x768xf32>
    %116 = vector.extract_strided_slice %115 {offsets = [0, 0], sizes = [8, 256], strides = [1, 1]} : vector<8x768xf32> to vector<8x256xf32>
    %117 = vector.extract_strided_slice %115 {offsets = [0, 256], sizes = [8, 256], strides = [1, 1]} : vector<8x768xf32> to vector<8x256xf32>
    %118 = vector.extract_strided_slice %115 {offsets = [0, 512], sizes = [8, 256], strides = [1, 1]} : vector<8x768xf32> to vector<8x256xf32>
    %119 = vector.extract_strided_slice %109 {offsets = [0, 768], sizes = [8, 256], strides = [1, 1]} : vector<8x1024xf32> to vector<8x256xf32>
    %120 = math.tanh %119 : vector<8x256xf32>
    %121 = arith.mulf %117, %95 : vector<8x256xf32>
    %122 = arith.mulf %116, %120 : vector<8x256xf32>
    %123 = arith.addf %121, %122 : vector<8x256xf32>
    %124 = math.tanh %123 : vector<8x256xf32>
    %125 = arith.mulf %118, %124 : vector<8x256xf32>
    %126 = arith.truncf %125 : vector<8x256xf32> to vector<8x256xbf16>
    %127 = arith.index_cast %c3_i32 : i32 to index
    %c0_42 = arith.constant 0 : index
    %c0_43 = arith.constant 0 : index
    %128 = vector.load %arg7[%127, %c0_42, %c0_43] : memref<8x8x256xbf16, #tpu.memory_space<vmem>>, vector<1x8x256xbf16>
    %129 = vector.shape_cast %128 : vector<1x8x256xbf16> to vector<8x256xbf16>
    %130 = vector.shape_cast %126 : vector<8x256xbf16> to vector<1x8x256xbf16>
    tpu.vector_store %arg7[%127, %c0_42, %c0_43], %130 {strides = array<i32>} : memref<8x8x256xbf16, #tpu.memory_space<vmem>>, vector<1x8x256xbf16>,
    %c4_i32 = arith.constant 4 : i32
    %131 = arith.index_cast %c4_i32 : i32 to index
    %c0_44 = arith.constant 0 : index
    %c0_45 = arith.constant 0 : index
    %132 = vector.load %arg8[%131, %c0_44, %c0_45] : memref<8x8x1024xbf16, #tpu.memory_space<vmem>>, vector<1x8x1024xbf16>
    %133 = vector.shape_cast %132 : vector<1x8x1024xbf16> to vector<8x1024xbf16>
    %134 = arith.extf %133 : vector<8x1024xbf16> to vector<8x1024xf32>
    %135 = arith.truncf %125 : vector<8x256xf32> to vector<8x256xbf16>
    %cst_46 = arith.constant dense<0.000000e+00> : vector<8x1024xf32>
    %136 = tpu.matmul %135, %16, %cst_46 {dimension_numbers = #tpu.dot_dimension_numbers<[1], [0], [0], [1], [0, 0, 1, 1], [], []>} : vector<8x256xbf16>, vector<256x1024xbf16>, vector<8x1024xf32> -> vector<8x1024xf32>
    %137 = arith.addf %134, %136 : vector<8x1024xf32>
    %138 = vector.extract_strided_slice %137 {offsets = [0, 0], sizes = [8, 768], strides = [1, 1]} : vector<8x1024xf32> to vector<8x768xf32>
    %139 = arith.negf %138 : vector<8x768xf32>
    %140 = math.exp %139 : vector<8x768xf32>
    %cst_47 = arith.constant 1.000000e+00 : f32
    %141 = vector.broadcast %cst_47 : f32 to vector<8x768xf32>
    %142 = arith.addf %141, %140 : vector<8x768xf32>
    %143 = arith.divf %141, %142 : vector<8x768xf32>
    %144 = vector.extract_strided_slice %143 {offsets = [0, 0], sizes = [8, 256], strides = [1, 1]} : vector<8x768xf32> to vector<8x256xf32>
    %145 = vector.extract_strided_slice %143 {offsets = [0, 256], sizes = [8, 256], strides = [1, 1]} : vector<8x768xf32> to vector<8x256xf32>
    %146 = vector.extract_strided_slice %143 {offsets = [0, 512], sizes = [8, 256], strides = [1, 1]} : vector<8x768xf32> to vector<8x256xf32>
    %147 = vector.extract_strided_slice %137 {offsets = [0, 768], sizes = [8, 256], strides = [1, 1]} : vector<8x1024xf32> to vector<8x256xf32>
    %148 = math.tanh %147 : vector<8x256xf32>
    %149 = arith.mulf %145, %123 : vector<8x256xf32>
    %150 = arith.mulf %144, %148 : vector<8x256xf32>
    %151 = arith.addf %149, %150 : vector<8x256xf32>
    %152 = math.tanh %151 : vector<8x256xf32>
    %153 = arith.mulf %146, %152 : vector<8x256xf32>
    %154 = arith.truncf %153 : vector<8x256xf32> to vector<8x256xbf16>
    %155 = arith.index_cast %c4_i32 : i32 to index
    %c0_48 = arith.constant 0 : index
    %c0_49 = arith.constant 0 : index
    %156 = vector.load %arg7[%155, %c0_48, %c0_49] : memref<8x8x256xbf16, #tpu.memory_space<vmem>>, vector<1x8x256xbf16>
    %157 = vector.shape_cast %156 : vector<1x8x256xbf16> to vector<8x256xbf16>
    %158 = vector.shape_cast %154 : vector<8x256xbf16> to vector<1x8x256xbf16>
    tpu.vector_store %arg7[%155, %c0_48, %c0_49], %158 {strides = array<i32>} : memref<8x8x256xbf16, #tpu.memory_space<vmem>>, vector<1x8x256xbf16>,
    %c5_i32 = arith.constant 5 : i32
    %159 = arith.index_cast %c5_i32 : i32 to index
    %c0_50 = arith.constant 0 : index
    %c0_51 = arith.constant 0 : index
    %160 = vector.load %arg8[%159, %c0_50, %c0_51] : memref<8x8x1024xbf16, #tpu.memory_space<vmem>>, vector<1x8x1024xbf16>
    %161 = vector.shape_cast %160 : vector<1x8x1024xbf16> to vector<8x1024xbf16>
    %162 = arith.extf %161 : vector<8x1024xbf16> to vector<8x1024xf32>
    %163 = arith.truncf %153 : vector<8x256xf32> to vector<8x256xbf16>
    %cst_52 = arith.constant dense<0.000000e+00> : vector<8x1024xf32>
    %164 = tpu.matmul %163, %16, %cst_52 {dimension_numbers = #tpu.dot_dimension_numbers<[1], [0], [0], [1], [0, 0, 1, 1], [], []>} : vector<8x256xbf16>, vector<256x1024xbf16>, vector<8x1024xf32> -> vector<8x1024xf32>
    %165 = arith.addf %162, %164 : vector<8x1024xf32>
    %166 = vector.extract_strided_slice %165 {offsets = [0, 0], sizes = [8, 768], strides = [1, 1]} : vector<8x1024xf32> to vector<8x768xf32>
    %167 = arith.negf %166 : vector<8x768xf32>
    %168 = math.exp %167 : vector<8x768xf32>
    %cst_53 = arith.constant 1.000000e+00 : f32
    %169 = vector.broadcast %cst_53 : f32 to vector<8x768xf32>
    %170 = arith.addf %169, %168 : vector<8x768xf32>
    %171 = arith.divf %169, %170 : vector<8x768xf32>
    %172 = vector.extract_strided_slice %171 {offsets = [0, 0], sizes = [8, 256], strides = [1, 1]} : vector<8x768xf32> to vector<8x256xf32>
    %173 = vector.extract_strided_slice %171 {offsets = [0, 256], sizes = [8, 256], strides = [1, 1]} : vector<8x768xf32> to vector<8x256xf32>
    %174 = vector.extract_strided_slice %171 {offsets = [0, 512], sizes = [8, 256], strides = [1, 1]} : vector<8x768xf32> to vector<8x256xf32>
    %175 = vector.extract_strided_slice %165 {offsets = [0, 768], sizes = [8, 256], strides = [1, 1]} : vector<8x1024xf32> to vector<8x256xf32>
    %176 = math.tanh %175 : vector<8x256xf32>
    %177 = arith.mulf %173, %151 : vector<8x256xf32>
    %178 = arith.mulf %172, %176 : vector<8x256xf32>
    %179 = arith.addf %177, %178 : vector<8x256xf32>
    %180 = math.tanh %179 : vector<8x256xf32>
    %181 = arith.mulf %174, %180 : vector<8x256xf32>
    %182 = arith.truncf %181 : vector<8x256xf32> to vector<8x256xbf16>
    %183 = arith.index_cast %c5_i32 : i32 to index
    %c0_54 = arith.constant 0 : index
    %c0_55 = arith.constant 0 : index
    %184 = vector.load %arg7[%183, %c0_54, %c0_55] : memref<8x8x256xbf16, #tpu.memory_space<vmem>>, vector<1x8x256xbf16>
    %185 = vector.shape_cast %184 : vector<1x8x256xbf16> to vector<8x256xbf16>
    %186 = vector.shape_cast %182 : vector<8x256xbf16> to vector<1x8x256xbf16>
    tpu.vector_store %arg7[%183, %c0_54, %c0_55], %186 {strides = array<i32>} : memref<8x8x256xbf16, #tpu.memory_space<vmem>>, vector<1x8x256xbf16>,
    %c6_i32 = arith.constant 6 : i32
    %187 = arith.index_cast %c6_i32 : i32 to index
    %c0_56 = arith.constant 0 : index
    %c0_57 = arith.constant 0 : index
    %188 = vector.load %arg8[%187, %c0_56, %c0_57] : memref<8x8x1024xbf16, #tpu.memory_space<vmem>>, vector<1x8x1024xbf16>
    %189 = vector.shape_cast %188 : vector<1x8x1024xbf16> to vector<8x1024xbf16>
    %190 = arith.extf %189 : vector<8x1024xbf16> to vector<8x1024xf32>
    %191 = arith.truncf %181 : vector<8x256xf32> to vector<8x256xbf16>
    %cst_58 = arith.constant dense<0.000000e+00> : vector<8x1024xf32>
    %192 = tpu.matmul %191, %16, %cst_58 {dimension_numbers = #tpu.dot_dimension_numbers<[1], [0], [0], [1], [0, 0, 1, 1], [], []>} : vector<8x256xbf16>, vector<256x1024xbf16>, vector<8x1024xf32> -> vector<8x1024xf32>
    %193 = arith.addf %190, %192 : vector<8x1024xf32>
    %194 = vector.extract_strided_slice %193 {offsets = [0, 0], sizes = [8, 768], strides = [1, 1]} : vector<8x1024xf32> to vector<8x768xf32>
    %195 = arith.negf %194 : vector<8x768xf32>
    %196 = math.exp %195 : vector<8x768xf32>
    %cst_59 = arith.constant 1.000000e+00 : f32
    %197 = vector.broadcast %cst_59 : f32 to vector<8x768xf32>
    %198 = arith.addf %197, %196 : vector<8x768xf32>
    %199 = arith.divf %197, %198 : vector<8x768xf32>
    %200 = vector.extract_strided_slice %199 {offsets = [0, 0], sizes = [8, 256], strides = [1, 1]} : vector<8x768xf32> to vector<8x256xf32>
    %201 = vector.extract_strided_slice %199 {offsets = [0, 256], sizes = [8, 256], strides = [1, 1]} : vector<8x768xf32> to vector<8x256xf32>
    %202 = vector.extract_strided_slice %199 {offsets = [0, 512], sizes = [8, 256], strides = [1, 1]} : vector<8x768xf32> to vector<8x256xf32>
    %203 = vector.extract_strided_slice %193 {offsets = [0, 768], sizes = [8, 256], strides = [1, 1]} : vector<8x1024xf32> to vector<8x256xf32>
    %204 = math.tanh %203 : vector<8x256xf32>
    %205 = arith.mulf %201, %179 : vector<8x256xf32>
    %206 = arith.mulf %200, %204 : vector<8x256xf32>
    %207 = arith.addf %205, %206 : vector<8x256xf32>
    %208 = math.tanh %207 : vector<8x256xf32>
    %209 = arith.mulf %202, %208 : vector<8x256xf32>
    %210 = arith.truncf %209 : vector<8x256xf32> to vector<8x256xbf16>
    %211 = arith.index_cast %c6_i32 : i32 to index
    %c0_60 = arith.constant 0 : index
    %c0_61 = arith.constant 0 : index
    %212 = vector.load %arg7[%211, %c0_60, %c0_61] : memref<8x8x256xbf16, #tpu.memory_space<vmem>>, vector<1x8x256xbf16>
    %213 = vector.shape_cast %212 : vector<1x8x256xbf16> to vector<8x256xbf16>
    %214 = vector.shape_cast %210 : vector<8x256xbf16> to vector<1x8x256xbf16>
    tpu.vector_store %arg7[%211, %c0_60, %c0_61], %214 {strides = array<i32>} : memref<8x8x256xbf16, #tpu.memory_space<vmem>>, vector<1x8x256xbf16>,
    %c7_i32 = arith.constant 7 : i32
    %215 = arith.index_cast %c7_i32 : i32 to index
    %c0_62 = arith.constant 0 : index
    %c0_63 = arith.constant 0 : index
    %216 = vector.load %arg8[%215, %c0_62, %c0_63] : memref<8x8x1024xbf16, #tpu.memory_space<vmem>>, vector<1x8x1024xbf16>
    %217 = vector.shape_cast %216 : vector<1x8x1024xbf16> to vector<8x1024xbf16>
    %218 = arith.extf %217 : vector<8x1024xbf16> to vector<8x1024xf32>
    %219 = arith.truncf %209 : vector<8x256xf32> to vector<8x256xbf16>
    %cst_64 = arith.constant dense<0.000000e+00> : vector<8x1024xf32>
    %220 = tpu.matmul %219, %16, %cst_64 {dimension_numbers = #tpu.dot_dimension_numbers<[1], [0], [0], [1], [0, 0, 1, 1], [], []>} : vector<8x256xbf16>, vector<256x1024xbf16>, vector<8x1024xf32> -> vector<8x1024xf32>
    %221 = arith.addf %218, %220 : vector<8x1024xf32>
    %222 = vector.extract_strided_slice %221 {offsets = [0, 0], sizes = [8, 768], strides = [1, 1]} : vector<8x1024xf32> to vector<8x768xf32>
    %223 = arith.negf %222 : vector<8x768xf32>
    %224 = math.exp %223 : vector<8x768xf32>
    %cst_65 = arith.constant 1.000000e+00 : f32
    %225 = vector.broadcast %cst_65 : f32 to vector<8x768xf32>
    %226 = arith.addf %225, %224 : vector<8x768xf32>
    %227 = arith.divf %225, %226 : vector<8x768xf32>
    %228 = vector.extract_strided_slice %227 {offsets = [0, 0], sizes = [8, 256], strides = [1, 1]} : vector<8x768xf32> to vector<8x256xf32>
    %229 = vector.extract_strided_slice %227 {offsets = [0, 256], sizes = [8, 256], strides = [1, 1]} : vector<8x768xf32> to vector<8x256xf32>
    %230 = vector.extract_strided_slice %227 {offsets = [0, 512], sizes = [8, 256], strides = [1, 1]} : vector<8x768xf32> to vector<8x256xf32>
    %231 = vector.extract_strided_slice %221 {offsets = [0, 768], sizes = [8, 256], strides = [1, 1]} : vector<8x1024xf32> to vector<8x256xf32>
    %232 = math.tanh %231 : vector<8x256xf32>
    %233 = arith.mulf %229, %207 : vector<8x256xf32>
    %234 = arith.mulf %228, %232 : vector<8x256xf32>
    %235 = arith.addf %233, %234 : vector<8x256xf32>
    %236 = math.tanh %235 : vector<8x256xf32>
    %237 = arith.mulf %230, %236 : vector<8x256xf32>
    %238 = arith.truncf %237 : vector<8x256xf32> to vector<8x256xbf16>
    %239 = arith.index_cast %c7_i32 : i32 to index
    %c0_66 = arith.constant 0 : index
    %c0_67 = arith.constant 0 : index
    %240 = vector.load %arg7[%239, %c0_66, %c0_67] : memref<8x8x256xbf16, #tpu.memory_space<vmem>>, vector<1x8x256xbf16>
    %241 = vector.shape_cast %240 : vector<1x8x256xbf16> to vector<8x256xbf16>
    %242 = vector.shape_cast %238 : vector<8x256xbf16> to vector<1x8x256xbf16>
    tpu.vector_store %arg7[%239, %c0_66, %c0_67], %242 {strides = array<i32>} : memref<8x8x256xbf16, #tpu.memory_space<vmem>>, vector<1x8x256xbf16>,
    %c8_i32 = arith.constant 8 : i32
    %c0_68 = arith.constant 0 : index
    %c0_69 = arith.constant 0 : index
    %c0_70 = arith.constant 0 : index
    %243 = vector.load %arg5[%c0_68, %c0_69, %c0_70] : memref<1x8x256xf32, #tpu.memory_space<vmem>>, vector<1x8x256xf32>
    %244 = vector.shape_cast %243 : vector<1x8x256xf32> to vector<8x256xf32>
    %245 = vector.shape_cast %237 : vector<8x256xf32> to vector<1x8x256xf32>
    tpu.vector_store %arg5[%c0_68, %c0_69, %c0_70], %245 {strides = array<i32>} : memref<1x8x256xf32, #tpu.memory_space<vmem>>, vector<1x8x256xf32>,
    %c0_71 = arith.constant 0 : index
    %c0_72 = arith.constant 0 : index
    %c0_73 = arith.constant 0 : index
    %246 = vector.load %arg6[%c0_71, %c0_72, %c0_73] : memref<1x8x256xf32, #tpu.memory_space<vmem>>, vector<1x8x256xf32>
    %247 = vector.shape_cast %246 : vector<1x8x256xf32> to vector<8x256xf32>
    %248 = vector.shape_cast %235 : vector<8x256xf32> to vector<1x8x256xf32>
    tpu.vector_store %arg6[%c0_71, %c0_72, %c0_73], %248 {strides = array<i32>} : memref<1x8x256xf32, #tpu.memory_space<vmem>>, vector<1x8x256xf32>,
    return
  }
  func.func @transform_0(%arg0: i32) -> (i32, i32, i32) {
    %c0_i32 = arith.constant 0 : i32
    %c0_i32_0 = arith.constant 0 : i32
    %c0_i32_1 = arith.constant 0 : i32
    %c0_i32_2 = arith.constant 0 : i32
    return %c0_i32, %c0_i32_0, %c0_i32_1 : i32, i32, i32
  }
  func.func @transform_1(%arg0: i32) -> (i32, i32, i32) {
    %c0_i32 = arith.constant 0 : i32
    %c0_i32_0 = arith.constant 0 : i32
    %c0_i32_1 = arith.constant 0 : i32
    return %arg0, %c0_i32, %c0_i32_0 : i32, i32, i32
  }
  func.func @transform_2(%arg0: i32) -> (i32, i32, i32) {
    %c0_i32 = arith.constant 0 : i32
    %c0_i32_0 = arith.constant 0 : i32
    %c0_i32_1 = arith.constant 0 : i32
    return %arg0, %c0_i32, %c0_i32_0 : i32, i32, i32
  }
  func.func @transform_3(%arg0: i32) -> (i32, i32, i32) {
    %c0_i32 = arith.constant 0 : i32
    %c0_i32_0 = arith.constant 0 : i32
    %c0_i32_1 = arith.constant 0 : i32
    return %arg0, %c0_i32, %c0_i32_0 : i32, i32, i32
  }
  func.func @transform_4(%arg0: i32) -> (i32, i32, i32) {
    %c0_i32 = arith.constant 0 : i32
    %c0_i32_0 = arith.constant 0 : i32
    %c0_i32_1 = arith.constant 0 : i32
    return %arg0, %c0_i32, %c0_i32_0 : i32, i32, i32
  }
  func.func @transform_5(%arg0: i32) -> (i32, i32, i32) {
    %c0_i32 = arith.constant 0 : i32
    %c0_i32_0 = arith.constant 0 : i32
    %c0_i32_1 = arith.constant 0 : i32
    return %arg0, %c0_i32, %c0_i32_0 : i32, i32, i32
  }
  func.func @transform_6(%arg0: i32) -> (i32, i32, i32) {
    %c0_i32 = arith.constant 0 : i32
    %c0_i32_0 = arith.constant 0 : i32
    %c0_i32_1 = arith.constant 0 : i32
    %c0_i32_2 = arith.constant 0 : i32
    return %c0_i32, %c0_i32_0, %c0_i32_1 : i32, i32, i32
  }
}

module attributes {stable_mosaic.version = 11 : i64} {
  func.func @_decoder_kernel(%arg0: i32, %arg1: memref<64x128xbf16, #tpu.memory_space<vmem>>, %arg2: memref<128x128xbf16, #tpu.memory_space<vmem>>, %arg3: memref<1x1x128xf32, #tpu.memory_space<vmem>>, %arg4: memref<64x128xf32, #tpu.memory_space<vmem>>) attributes {dimension_semantics = [#tpu.dimension_semantics<parallel>], iteration_bounds = array<i64: 2>, scalar_prefetch = 0 : i64, scratch_operands = 0 : i64, tpu.core_type = #tpu.core_type<tc>, window_params = [{pipeline_mode = #tpu.pipeline_mode<synchronous>, transform_indices = @transform_0, window_bounds = array<i64: 64, 128>}, {transform_indices = @transform_1, window_bounds = array<i64: 128, 128>}, {transform_indices = @transform_2, window_bounds = array<i64: 1, 1, 128>}, {transform_indices = @transform_3, window_bounds = array<i64: 64, 128>}]} {
    %c0 = arith.constant 0 : index
    %c0_0 = arith.constant 0 : index
    %0 = vector.load %arg1[%c0, %c0_0] : memref<64x128xbf16, #tpu.memory_space<vmem>>, vector<64x128xbf16>
    %c0_1 = arith.constant 0 : index
    %c0_2 = arith.constant 0 : index
    %1 = vector.load %arg2[%c0_1, %c0_2] : memref<128x128xbf16, #tpu.memory_space<vmem>>, vector<128x128xbf16>
    %cst = arith.constant dense<0.000000e+00> : vector<64x128xf32>
    %2 = tpu.matmul %0, %1, %cst {dimension_numbers = #tpu.dot_dimension_numbers<[1], [1], [0], [0], [0, 0, 1, 0], [], []>} : vector<64x128xbf16>, vector<128x128xbf16>, vector<64x128xf32> -> vector<64x128xf32>
    %c0_3 = arith.constant 0 : index
    %c0_4 = arith.constant 0 : index
    %c0_5 = arith.constant 0 : index
    %3 = vector.load %arg3[%c0_3, %c0_4, %c0_5] : memref<1x1x128xf32, #tpu.memory_space<vmem>>, vector<1x1x128xf32>
    %4 = vector.shape_cast %3 : vector<1x1x128xf32> to vector<1x128xf32>
    %5 = vector.broadcast %4 : vector<1x128xf32> to vector<64x128xf32>
    %6 = arith.addf %2, %5 : vector<64x128xf32>
    %c0_6 = arith.constant 0 : index
    %c0_7 = arith.constant 0 : index
    %7 = vector.load %arg4[%c0_6, %c0_7] : memref<64x128xf32, #tpu.memory_space<vmem>>, vector<64x128xf32>
    tpu.vector_store %arg4[%c0_6, %c0_7], %6 {strides = array<i32>} : memref<64x128xf32, #tpu.memory_space<vmem>>, vector<64x128xf32>,
    return
  }
  func.func @transform_0(%arg0: i32) -> (i32, i32) {
    %c0_i32 = arith.constant 0 : i32
    %c0_i32_0 = arith.constant 0 : i32
    %c0_i32_1 = arith.constant 0 : i32
    return %c0_i32, %c0_i32_0 : i32, i32
  }
  func.func @transform_1(%arg0: i32) -> (i32, i32) {
    %c0_i32 = arith.constant 0 : i32
    %c0_i32_0 = arith.constant 0 : i32
    return %arg0, %c0_i32 : i32, i32
  }
  func.func @transform_2(%arg0: i32) -> (i32, i32, i32) {
    %c0_i32 = arith.constant 0 : i32
    %c0_i32_0 = arith.constant 0 : i32
    %c0_i32_1 = arith.constant 0 : i32
    return %arg0, %c0_i32, %c0_i32_0 : i32, i32, i32
  }
  func.func @transform_3(%arg0: i32) -> (i32, i32) {
    %c0_i32 = arith.constant 0 : i32
    %c0_i32_0 = arith.constant 0 : i32
    return %c0_i32, %arg0 : i32, i32
  }
}

</mosaic_0001>

<llo_original>
// kernel: language_model_forward.3
$region0: #{language_model_forward.3}
  #allocation0 [shape = 'u32[]', space=smem, size = 0x4, offset = 0x4, fixed_abs, tag = 'smem constant byte address 0x4 - core index']
  #allocation1 [shape = 'u32[72,128]{1,0:T(1,128)}', space=vmem, size = 0x9000, scoped, tag = 'internal scratch']
  %s0 = inlined_call_operand.vmem [shape: bf16[64,128], index: 0, kind: input, shape index: {}]
  %s1 = inlined_call_operand.hbm [shape: bf16[256,128], index: 1, kind: input, shape index: {}]
  %s2 = inlined_call_operand.hbm [shape: f32[2,1,128], index: 2, kind: input, shape index: {}]
  %s3 = inlined_call_operand.vmem [shape: f32[64,256], index: 3, kind: output, shape index: {}]
  %s4 = sld [smem:[#allocation0]]
  $region87: #{language_model_forward.3} parent=0
    _
  %s6 = ssub.s32 1, %s4
  %s7 = scalar_select 0, %s6, %s4
  $region1: #{language_model_forward.3} parent=0
    #allocation2 [shape = 'u8[65536]{0}', space=vmem, size = 0x10000, scoped, tag = 'input window, operand 1']
    #allocation3 [shape = 's32[2]{0}', space=sflag, size = 0x8, scoped, tag = 'scoped memory for language_model_forward.3']
    #allocation4 [shape = 'u8[1024]{0}', space=vmem, size = 0x400, scoped, tag = 'input window, operand 2']
    #allocation5 [shape = 's32[2]{0}', space=sflag, size = 0x8, scoped, tag = 'scoped memory for language_model_forward.3']
    #allocation6 [shape = 'u8[65536]{0}', space=vmem, size = 0x10000, scoped, tag = 'output window, operand 0']
    %8 = vsyncpa [#allocation3], 0
    %s9 = scalar_lea.sflag [#allocation3], 1
    %10 = vsyncpa %s9, 0
    %11 = vsyncpa [#allocation5], 0
    %s12 = scalar_lea.sflag [#allocation5], 1
    %13 = vsyncpa %s12, 0
    loop: start=0, step=1, limit=4
    $region2: #{language_model_forward.3} parent=1 // loop_pre_header
      _
    $region3: #{language_model_forward.3} parent=1 // loop_header
      %s15 = sphi 0, %s19
      %p16 = scmp.ge.s32.totalorder %s15, 4
      %s23 = sphi 0, %s23
      %s25 = sphi 0, %s23
      %s26 = sphi 0, %s25
      %s40 = sphi 0, %s26
      %s46 = sphi 0, %s48
      %s49 = sphi 0, %s46
      %s50 = sphi 0, %s49
      %s66 = sphi 0, %s50
      %s72 = sphi 0, %s74
      %s75 = sphi 0, %s72
      %s76 = sphi 0, %s75
      %s92 = sphi 0, %s76
      %s98 = sphi 0, %s100
      %s101 = sphi 0, %s98
      %s102 = sphi 0, %s101
      %s118 = sphi 0, %s102
    $region4: #{language_model_forward.3} parent=1 // loop_header_branch
      %18 = sbr.rel (%p16) target = $region8
    $region5: #{language_model_forward.3} parent=1 // loop_body
      %s20 = ssub.s32 %s15, 1
      %s21 = ssub.s32 %s15, 2
      %s22 = sadd.s32 %s15, 1
      %s24 = sadd.s32 %s23, 1
      %p27 = scmp.eq.s32.totalorder %s15, 1
      %p28 = scmp.ne.s32.totalorder %s23, %s25
      %p29 = scmp.eq.s32.totalorder %s15, 0
      %p30 = por %p28, %p29
      %p31 = scmp.ne.s32.totalorder %s23, %s25
      %p32 = scmp.eq.s32.totalorder %s20, 1
      %p33 = por %p31, %p32
      %p34 = scmp.ne.s32.totalorder %s25, %s26
      %p35 = scmp.eq.s32.totalorder %s20, 0
      %p36 = por %p34, %p35
      %p37 = scmp.ne.s32.totalorder %s25, %s26
      %p38 = scmp.eq.s32.totalorder %s21, 1
      %p39 = por %p37, %p38
      %p41 = scmp.ne.s32.totalorder %s26, %s40
      %p42 = scmp.eq.s32.totalorder %s21, 0
      %p43 = por %p41, %p42
      %s44 = ssub.s32 %s15, %s22
      %p45 = scmp.eq.s32.totalorder %s44, 0
      %s47 = sadd.s32 %s46, 1
      %s48 = scalar_select %p45, %s46, %s47
      %p51 = pneg %p45
      %p52 = scmp.eq.s32.totalorder %s15, 1
      %p53 = por %p51, %p52
      %p54 = scmp.ne.s32.totalorder %s46, %s49
      %p55 = scmp.eq.s32.totalorder %s15, 0
      %p56 = por %p54, %p55
      %p57 = scmp.ne.s32.totalorder %s46, %s49
      %p58 = scmp.eq.s32.totalorder %s20, 1
      %p59 = por %p57, %p58
      %p60 = scmp.ne.s32.totalorder %s49, %s50
      %p61 = scmp.eq.s32.totalorder %s20, 0
      %p62 = por %p60, %p61
      %p63 = scmp.ne.s32.totalorder %s49, %s50
      %p64 = scmp.eq.s32.totalorder %s21, 1
      %p65 = por %p63, %p64
      %p67 = scmp.ne.s32.totalorder %s50, %s66
      %p68 = scmp.eq.s32.totalorder %s21, 0
      %p69 = por %p67, %p68
      %s70 = ssub.s32 %s15, %s22
      %p71 = scmp.eq.s32.totalorder %s70, 0
      %s73 = sadd.s32 %s72, 1
      %s74 = scalar_select %p71, %s72, %s73
      %p77 = pneg %p71
      %p78 = scmp.eq.s32.totalorder %s15, 1
      %p79 = por %p77, %p78
      %p80 = scmp.ne.s32.totalorder %s72, %s75
      %p81 = scmp.eq.s32.totalorder %s15, 0
      %p82 = por %p80, %p81
      %p83 = scmp.ne.s32.totalorder %s72, %s75
      %p84 = scmp.eq.s32.totalorder %s20, 1
      %p85 = por %p83, %p84
      %p86 = scmp.ne.s32.totalorder %s75, %s76
      %p87 = scmp.eq.s32.totalorder %s20, 0
      %p88 = por %p86, %p87
      %p89 = scmp.ne.s32.totalorder %s75, %s76
      %p90 = scmp.eq.s32.totalorder %s21, 1
      %p91 = por %p89, %p90
      %p93 = scmp.ne.s32.totalorder %s76, %s92
      %p94 = scmp.eq.s32.totalorder %s21, 0
      %p95 = por %p93, %p94
      %s96 = ssub.s32 %s15, %s22
      %p97 = scmp.eq.s32.totalorder %s96, 0
      %s99 = sadd.s32 %s98, 1
      %s100 = scalar_select %p97, %s98, %s99
      %p103 = pneg %p97
      %p104 = scmp.eq.s32.totalorder %s15, 1
      %p105 = por %p103, %p104
      %p106 = scmp.ne.s32.totalorder %s98, %s101
      %p107 = scmp.eq.s32.totalorder %s15, 0
      %p108 = por %p106, %p107
      %p109 = scmp.ne.s32.totalorder %s98, %s101
      %p110 = scmp.eq.s32.totalorder %s20, 1
      %p111 = por %p109, %p110
      %p112 = scmp.ne.s32.totalorder %s101, %s102
      %p113 = scmp.eq.s32.totalorder %s20, 0
      %p114 = por %p112, %p113
      %p115 = scmp.ne.s32.totalorder %s101, %s102
      %p116 = scmp.eq.s32.totalorder %s21, 1
      %p117 = por %p115, %p116
      %p119 = scmp.ne.s32.totalorder %s102, %s118
      %p120 = scmp.eq.s32.totalorder %s21, 0
      %p121 = por %p119, %p120
      %p122 = scmp.le.s32.totalorder 1, %s15
      %p123 = scmp.lt.s32.totalorder %s15, 3
      %p124 = pnand %p122, %p123
      %p125 = pneg %p124
      // Predicated region
      $region9: #{language_model_forward.3} parent=5 // pred_check
        _
      $region10: #{language_model_forward.3} parent=5 // pred_check_branch
        %127 = sbr.rel (%p124) target = $region12
      $region11: #{language_model_forward.3} parent=5 // pred_region
        %s128 = ssub.s32 %s15, 1
        // Predicated region
        $region13: #{language_model_forward.3} parent=11 // pred_check
          %p129 = pneg %p36
        $region14: #{language_model_forward.3} parent=11 // pred_check_branch
          %131 = sbr.rel (%p129) target = $region16
        $region15: #{language_model_forward.3} parent=11 // pred_region
          _
        $region16: #{language_model_forward.3} parent=11 // pred_fallthru
          _
      $region12: #{language_model_forward.3} parent=5 // pred_fallthru
        _
      %p132 = scmp.lt.s32.totalorder %s15, 2
      // Predicated region
      $region17: #{language_model_forward.3} parent=5 // pred_check
        %p133 = pneg %p132
      $region18: #{language_model_forward.3} parent=5 // pred_check_branch
        %135 = sbr.rel (%p133) target = $region20
      $region19: #{language_model_forward.3} parent=5 // pred_region
        // Predicated region
        $region21: #{language_model_forward.3} parent=19 // pred_check
          %p136 = pneg %p56
        $region22: #{language_model_forward.3} parent=19 // pred_check_branch
          %138 = sbr.rel (%p136) target = $region24
        $region23: #{language_model_forward.3} parent=19 // pred_region
          %s139 = sand.u32 %s46, 1
          %s140 = scalar_lea.sflag [#allocation3], %s139
          %s141 = sand.u32 %s46, 1
          %s142 = smul.addr %s141, 64
          %s143 = scalar_lea.vmem [#allocation2], %s142
          %s144 = smul.u32 16, %s15
          %146 = vsyncadd %s140, 0
          %s147 = smul.addr %s144, 4
          %s148 = scalar_lea.hbm %s1, %s147
          %s149 = sshll.u32 %s148, 4
          %s150 = int_to_ptr.hbm [resolvable:$true] %s149
          %s151 = sshll.u32 %s143, 4
          %s152 = int_to_ptr.vmem [resolvable:$true] %s151
          %157 = dma.hbm_to_vmem [thread:$0]  %s150, 1024, %s152, %s140, 64, 64, 4
        $region24: #{language_model_forward.3} parent=19 // pred_fallthru
          _
        // Predicated region
        $region25: #{language_model_forward.3} parent=19 // pred_check
          %p158 = pneg %p82
        $region26: #{language_model_forward.3} parent=19 // pred_check_branch
          %160 = sbr.rel (%p158) target = $region28
        $region27: #{language_model_forward.3} parent=19 // pred_region
          %s161 = sand.u32 %s72, 1
          %s162 = scalar_lea.sflag [#allocation5], %s161
          %s163 = sand.u32 %s72, 1
          %s164 = scalar_lea.vmem [#allocation4], %s163
          %166 = vsyncadd %s162, 0
          %s167 = scalar_lea.hbm %s2, %s15
          %s169 = sshll.u32 %s167, 4
          %s170 = int_to_ptr.hbm [resolvable:$true] %s169
          %s171 = sshll.u32 %s164, 4
          %s172 = int_to_ptr.vmem [resolvable:$true] %s171
          %174 = dma.hbm_to_vmem [thread:$0]  %s170, 16, %s172, %s162
        $region28: #{language_model_forward.3} parent=19 // pred_fallthru
          _
      $region20: #{language_model_forward.3} parent=5 // pred_fallthru
        _
      %p175 = scmp.le.s32.totalorder 1, %s15
      %p176 = scmp.lt.s32.totalorder %s15, 3
      %p177 = pnand %p175, %p176
      %p178 = pneg %p177
      // Predicated region
      $region29: #{language_model_forward.3} parent=5 // pred_check
        _
      $region30: #{language_model_forward.3} parent=5 // pred_check_branch
        %180 = sbr.rel (%p177) target = $region32
      $region31: #{language_model_forward.3} parent=5 // pred_region
        %s181 = ssub.s32 %s15, 1
        %s182 = sand.u32 %s49, 1
        %s183 = scalar_lea.sflag [#allocation3], %s182
        %s184 = sand.u32 %s49, 1
        %s185 = smul.addr %s184, 64
        %s186 = scalar_lea.vmem [#allocation2], %s185
        // Predicated region
        $region33: #{language_model_forward.3} parent=31 // pred_check
          %p187 = pneg %p62
        $region34: #{language_model_forward.3} parent=31 // pred_check_branch
          %189 = sbr.rel (%p187) target = $region36
        $region35: #{language_model_forward.3} parent=31 // pred_region
          %191 = dma.done %s183, 1024
        $region36: #{language_model_forward.3} parent=31 // pred_fallthru
          _
        %s192 = sand.u32 %s75, 1
        %s193 = scalar_lea.sflag [#allocation5], %s192
        %s194 = sand.u32 %s75, 1
        %s195 = scalar_lea.vmem [#allocation4], %s194
        // Predicated region
        $region37: #{language_model_forward.3} parent=31 // pred_check
          %p196 = pneg %p88
        $region38: #{language_model_forward.3} parent=31 // pred_check_branch
          %198 = sbr.rel (%p196) target = $region40
        $region39: #{language_model_forward.3} parent=31 // pred_region
          %200 = dma.done %s193, 16
        $region40: #{language_model_forward.3} parent=31 // pred_fallthru
          _
        %p201 = pneg %p36
        %p202 = pneg %p33
        %s203 = sand.u32 %s49, 1
        %s204 = scalar_lea.sflag [#allocation3], %s203
        %s205 = sand.u32 %s49, 1
        %s206 = smul.addr %s205, 64
        %s207 = scalar_lea.vmem [#allocation2], %s206
        %p208 = pneg %p62
        %p209 = pneg %p59
        %s210 = sand.u32 %s75, 1
        %s211 = scalar_lea.sflag [#allocation5], %s210
        %s212 = sand.u32 %s75, 1
        %s213 = scalar_lea.vmem [#allocation4], %s212
        %p214 = pneg %p88
        %p215 = pneg %p85
        %p216 = pneg %p114
        %p217 = pneg %p111
        %s218 = sand.u32 %s101, 1
        %s219 = sand.u32 %s101, 1
        %s220 = smul.addr %s219, 64
        %s221 = scalar_lea.vmem [#allocation6], %s220
        %s222 = smul.u32 16, %s20
        %v223 = vld [vmem:[%s0] sm:$0xf]
        %v224 = vld [vmem:[%s0 + $0x4] sm:$0xf]
        %v225 = vld [vmem:[%s0 + $0x8] sm:$0xf]
        %v226 = vld [vmem:[%s0 + $0xc] sm:$0xf]
        %v227 = vld [vmem:[%s0 + $0x10] sm:$0xf]
        %v228 = vld [vmem:[%s0 + $0x14] sm:$0xf]
        %v229 = vld [vmem:[%s0 + $0x18] sm:$0xf]
        %v230 = vld [vmem:[%s0 + $0x1c] sm:$0xf]
        %v231 = vld [vmem:[%s186] sm:$0xf]
        %v232 = vld [vmem:[%s186 + $0x4] sm:$0xf]
        %v233 = vld [vmem:[%s186 + $0x8] sm:$0xf]
        %v234 = vld [vmem:[%s186 + $0xc] sm:$0xf]
        %v235 = vld [vmem:[%s186 + $0x10] sm:$0xf]
        %v236 = vld [vmem:[%s186 + $0x14] sm:$0xf]
        %v237 = vld [vmem:[%s186 + $0x18] sm:$0xf]
        %v238 = vld [vmem:[%s186 + $0x1c] sm:$0xf]
        %v239 = vld [vmem:[%s186 + $0x20] sm:$0xf]
        %v240 = vld [vmem:[%s186 + $0x24] sm:$0xf]
        %v241 = vld [vmem:[%s186 + $0x28] sm:$0xf]
        %v242 = vld [vmem:[%s186 + $0x2c] sm:$0xf]
        %v243 = vld [vmem:[%s186 + $0x30] sm:$0xf]
        %v244 = vld [vmem:[%s186 + $0x34] sm:$0xf]
        %v245 = vld [vmem:[%s186 + $0x38] sm:$0xf]
        %v246 = vld [vmem:[%s186 + $0x3c] sm:$0xf]
        %v247 = vld [vmem:[%s195] sm:$0x1]
        %v249 = vperm.slane %v247, 0
        %v259 = vunpack.c.l.b16 %v223
        %v260 = vunpack.c.l.b16 %v224
        %v261 = vunpack.c.l.b16 %v225
        %v262 = vunpack.c.l.b16 %v226
        %v263 = vunpack.c.l.b16 %v227
        %v264 = vunpack.c.l.b16 %v228
        %v265 = vunpack.c.l.b16 %v229
        %v266 = vunpack.c.l.b16 %v230
        %v267 = vpack.c.b16 %v260, %v259
        %v268 = vpack.c.b16 %v262, %v261
        %v269 = vpack.c.b16 %v264, %v263
        %v270 = vpack.c.b16 %v266, %v265
        %v291 = vunpack.c.l.b16 %v231
        %v292 = vunpack.c.l.b16 %v232
        %v293 = vunpack.c.l.b16 %v233
        %v294 = vunpack.c.l.b16 %v234
        %v295 = vunpack.c.l.b16 %v235
        %v296 = vunpack.c.l.b16 %v236
        %v297 = vunpack.c.l.b16 %v237
        %v298 = vunpack.c.l.b16 %v238
        %v299 = vunpack.c.l.b16 %v239
        %v300 = vunpack.c.l.b16 %v240
        %v301 = vunpack.c.l.b16 %v241
        %v302 = vunpack.c.l.b16 %v242
        %v303 = vunpack.c.l.b16 %v243
        %v304 = vunpack.c.l.b16 %v244
        %v305 = vunpack.c.l.b16 %v245
        %v306 = vunpack.c.l.b16 %v246
        %v307 = vpack.c.b16 %v292, %v291
        %v308 = vpack.c.b16 %v294, %v293
        %v309 = vpack.c.b16 %v296, %v295
        %v310 = vpack.c.b16 %v298, %v297
        %v311 = vpack.c.b16 %v300, %v299
        %v312 = vpack.c.b16 %v302, %v301
        %v313 = vpack.c.b16 %v304, %v303
        %v314 = vpack.c.b16 %v306, %v305
        %323 = vmatpush.bf16.xpose.msra.mxu0 %v314
        %324 = vmatpush.bf16.xpose.msra.mxu0 %v313
        %325 = vmatpush.bf16.xpose.msra.mxu0 %v312
        %326 = vmatpush.bf16.xpose.msra.mxu0 %v311
        %327 = vmatpush.bf16.xpose.msra.mxu0 %v310
        %328 = vmatpush.bf16.xpose.msra.mxu0 %v309
        %329 = vmatpush.bf16.xpose.msra.mxu0 %v308
        %330 = vmatpush.bf16.xpose.msra.mxu0 %v307
        %331 = vmatmul.bf16.gmra.mxu0 %v267
        %v332 = vpop.f32.mrf.mxu0
        %v333 = vadd.f32 %v249, %v332
        %v334 = vpop.f32.mrf.mxu0
        %v335 = vadd.f32 %v249, %v334
        %336 = vmatmul.bf16.gmra.mxu0 %v268
        %v337 = vpop.f32.mrf.mxu0
        %v338 = vadd.f32 %v249, %v337
        %v339 = vpop.f32.mrf.mxu0
        %v340 = vadd.f32 %v249, %v339
        %341 = vmatmul.bf16.gmra.mxu0 %v269
        %v342 = vpop.f32.mrf.mxu0
        %v343 = vadd.f32 %v249, %v342
        %v344 = vpop.f32.mrf.mxu0
        %v345 = vadd.f32 %v249, %v344
        %346 = vmatmul.bf16.gmra.mxu0 %v270
        %v347 = vpop.f32.mrf.mxu0
        %v348 = vadd.f32 %v249, %v347
        %v349 = vpop.f32.mrf.mxu0
        %v350 = vadd.f32 %v249, %v349
        %351 = vdwg.mxu0
        %352 = vst [vmem:[%s221] sm:$0xff] %v333
        %353 = vst [vmem:[%s221 + $0x8] sm:$0xff] %v335
        %354 = vst [vmem:[%s221 + $0x10] sm:$0xff] %v338
        %355 = vst [vmem:[%s221 + $0x18] sm:$0xff] %v340
        %356 = vst [vmem:[%s221 + $0x20] sm:$0xff] %v343
        %357 = vst [vmem:[%s221 + $0x28] sm:$0xff] %v345
        %358 = vst [vmem:[%s221 + $0x30] sm:$0xff] %v348
        %359 = vst [vmem:[%s221 + $0x38] sm:$0xff] %v350
        %s360 = sand.u32 %s101, 1
        %s361 = sand.u32 %s101, 1
        %s362 = smul.addr %s361, 64
        %s363 = scalar_lea.vmem [#allocation6], %s362
        // Predicated region
        $region41: #{language_model_forward.3} parent=31 // pred_check
          %p364 = pneg %p111
        $region42: #{language_model_forward.3} parent=31 // pred_check_branch
          %366 = sbr.rel (%p364) target = $region44
        $region43: #{language_model_forward.3} parent=31 // pred_region
          %s367 = smul.addr %s20, 8
          %s368 = scalar_lea.vmem %s3, %s367
          // Predicated region
          $region45: #{language_model_forward.3} parent=43 // pred_check
            _
          $region46: #{language_model_forward.3} parent=43 // pred_check_branch
            %370 = sbr.rel (0) target = $region48
          $region47: #{language_model_forward.3} parent=43 // pred_region
            // Predicated region
            $region49: #{language_model_forward.3} parent=47 // pred_check
              _
            $region50: #{language_model_forward.3} parent=47 // pred_check_branch
              %372 = sbr.rel (0) target = $region52
            $region51: #{language_model_forward.3} parent=47 // pred_region
              // Predicated region
              $region64: #{language_model_forward.3} parent=51 // pred_check
                _
              $region65: #{language_model_forward.3} parent=51 // pred_check_branch
                %402 = sbr.rel (0) target = $region67
              $region66: #{language_model_forward.3} parent=51 // pred_region
                loop: start=0, step=1, limit=1
                $region68: #{language_model_forward.3} parent=66 // loop_pre_header
                  _
                $region69: #{language_model_forward.3} parent=66 // loop_header
                  %s404 = sphi 0, %s408
                  %p405 = scmp.ge.s32.totalorder %s404, 1
                  %s409 = sphi %s363, %s363
                  %s410 = sphi %s368, %s368
                $region70: #{language_model_forward.3} parent=66 // loop_header_branch
                  %407 = sbr.rel (%p405) target = $region74
                $region71: #{language_model_forward.3} parent=66 // loop_body
                  %v411 = vld [vmem:[%s409] sm:$0xff]
                  %412 = vst [vmem:[%s410] sm:$0xff] %v411
                  %v413 = vld [vmem:[%s409 + $0x8] sm:$0xff]
                  %414 = vst [vmem:[%s410 + $0x10] sm:$0xff] %v413
                  %v415 = vld [vmem:[%s409 + $0x10] sm:$0xff]
                  %416 = vst [vmem:[%s410 + $0x20] sm:$0xff] %v415
                  %v417 = vld [vmem:[%s409 + $0x18] sm:$0xff]
                  %418 = vst [vmem:[%s410 + $0x30] sm:$0xff] %v417
                  %v419 = vld [vmem:[%s409 + $0x20] sm:$0xff]
                  %420 = vst [vmem:[%s410 + $0x40] sm:$0xff] %v419
                  %v421 = vld [vmem:[%s409 + $0x28] sm:$0xff]
                  %422 = vst [vmem:[%s410 + $0x50] sm:$0xff] %v421
                  %v423 = vld [vmem:[%s409 + $0x30] sm:$0xff]
                  %424 = vst [vmem:[%s410 + $0x60] sm:$0xff] %v423
                  %v425 = vld [vmem:[%s409 + $0x38] sm:$0xff]
                  %426 = vst [vmem:[%s410 + $0x70] sm:$0xff] %v425
                $region72: #{language_model_forward.3} parent=66 // loop_footer
                  %s408 = sadd.s32 1, %s404
                $region73: #{language_model_forward.3} parent=66 // loop_footer_branch
                  %403 = sbr.rel target = $region69
                $region74: #{language_model_forward.3} parent=66 // loop_exit
                  _
              $region67: #{language_model_forward.3} parent=51 // pred_fallthru
                _
              // Predicated region
              $region75: #{language_model_forward.3} parent=51 // pred_check
                _
              $region76: #{language_model_forward.3} parent=51 // pred_check_branch
                %428 = sbr.rel target = $region78
              $region77: #{language_model_forward.3} parent=51 // pred_region
                _
              $region78: #{language_model_forward.3} parent=51 // pred_fallthru
                _
            $region52: #{language_model_forward.3} parent=47 // pred_fallthru
              _
            // Predicated region
            $region53: #{language_model_forward.3} parent=47 // pred_check
              _
            $region54: #{language_model_forward.3} parent=47 // pred_check_branch
              %374 = sbr.rel target = $region56
            $region55: #{language_model_forward.3} parent=47 // pred_region
              %s376 = ssub.s32 256, 1
              loop: start=0, step=1, limit=1
              $region57: #{language_model_forward.3} parent=55 // loop_pre_header
                _
              $region58: #{language_model_forward.3} parent=55 // loop_header
                %s378 = sphi 0, %s382
                %p379 = scmp.ge.s32.totalorder %s378, 1
                %s383 = sphi %s363, %s363
                %s384 = sphi %s368, %s368
              $region59: #{language_model_forward.3} parent=55 // loop_header_branch
                %381 = sbr.rel (%p379) target = $region63
              $region60: #{language_model_forward.3} parent=55 // loop_body
                %v385 = vld [vmem:[%s383] sm:%s376]
                %386 = vst [vmem:[%s384] sm:%s376] %v385
                %v387 = vld [vmem:[%s383 + $0x8] sm:%s376]
                %388 = vst [vmem:[%s384 + $0x10] sm:%s376] %v387
                %v389 = vld [vmem:[%s383 + $0x10] sm:%s376]
                %390 = vst [vmem:[%s384 + $0x20] sm:%s376] %v389
                %v391 = vld [vmem:[%s383 + $0x18] sm:%s376]
                %392 = vst [vmem:[%s384 + $0x30] sm:%s376] %v391
                %v393 = vld [vmem:[%s383 + $0x20] sm:%s376]
                %394 = vst [vmem:[%s384 + $0x40] sm:%s376] %v393
                %v395 = vld [vmem:[%s383 + $0x28] sm:%s376]
                %396 = vst [vmem:[%s384 + $0x50] sm:%s376] %v395
                %v397 = vld [vmem:[%s383 + $0x30] sm:%s376]
                %398 = vst [vmem:[%s384 + $0x60] sm:%s376] %v397
                %v399 = vld [vmem:[%s383 + $0x38] sm:%s376]
                %400 = vst [vmem:[%s384 + $0x70] sm:%s376] %v399
              $region61: #{language_model_forward.3} parent=55 // loop_footer
                %s382 = sadd.s32 1, %s378
              $region62: #{language_model_forward.3} parent=55 // loop_footer_branch
                %377 = sbr.rel target = $region58
              $region63: #{language_model_forward.3} parent=55 // loop_exit
                _
            $region56: #{language_model_forward.3} parent=47 // pred_fallthru
              _
          $region48: #{language_model_forward.3} parent=43 // pred_fallthru
            _
          %429 = vnop
        $region44: #{language_model_forward.3} parent=31 // pred_fallthru
          _
      $region32: #{language_model_forward.3} parent=5 // pred_fallthru
        _
      %p430 = scmp.le.s32.totalorder 2, %s15
      // Predicated region
      $region79: #{language_model_forward.3} parent=5 // pred_check
        %p431 = pneg %p430
      $region80: #{language_model_forward.3} parent=5 // pred_check_branch
        %433 = sbr.rel (%p431) target = $region82
      $region81: #{language_model_forward.3} parent=5 // pred_region
        %s434 = ssub.s32 %s15, 2
        // Predicated region
        $region83: #{language_model_forward.3} parent=81 // pred_check
          %p435 = pneg %p117
        $region84: #{language_model_forward.3} parent=81 // pred_check_branch
          %437 = sbr.rel (%p435) target = $region86
        $region85: #{language_model_forward.3} parent=81 // pred_region
          %s438 = sand.u32 %s102, 1
          %s439 = sand.u32 %s102, 1
          %s440 = smul.addr %s439, 64
          %s441 = scalar_lea.vmem [#allocation6], %s440
        $region86: #{language_model_forward.3} parent=81 // pred_fallthru
          _
      $region82: #{language_model_forward.3} parent=5 // pred_fallthru
        _
    $region6: #{language_model_forward.3} parent=1 // loop_footer
      %s19 = sadd.s32 1, %s15
    $region7: #{language_model_forward.3} parent=1 // loop_footer_branch
      %14 = sbr.rel target = $region3
    $region8: #{language_model_forward.3} parent=1 // loop_exit
      _
    %442 = vsyncpa [#allocation3], 1
    %s443 = scalar_lea.sflag [#allocation3], 1
    %444 = vsyncpa %s443, 1
    %445 = vsyncpa [#allocation5], 1
    %s446 = scalar_lea.sflag [#allocation5], 1
    %447 = vsyncpa %s446, 1

// kernel: language_model_forward.2
$region0: #{language_model_forward.2}
  #allocation0 [shape = 'u32[]', space=smem, size = 0x4, offset = 0x4, fixed_abs, tag = 'smem constant byte address 0x4 - core index']
  #allocation1 [shape = 'u32[72,128]{1,0:T(1,128)}', space=vmem, size = 0x9000, scoped, tag = 'internal scratch']
  #allocation2 [shape = 'bf16[8,8,1024]{2,1,0:T(8,128)(2,1)}', space=vmem, size = 0x20000, scoped, tag = 'scratch operand']
  %s0 = inlined_call_operand.vmem [shape: bf16[8,8,256], index: 0, kind: input, shape index: {}]
  %s1 = inlined_call_operand.hbm [shape: bf16[3,256,1024], index: 1, kind: input, shape index: {}]
  %s2 = inlined_call_operand.hbm [shape: bf16[3,256,1024], index: 2, kind: input, shape index: {}]
  %s3 = inlined_call_operand.hbm [shape: f32[3,1,1024], index: 3, kind: input, shape index: {}]
  %s4 = inlined_call_operand.vmem [shape: f32[3,8,256], index: 4, kind: output, shape index: {0}]
  %s5 = inlined_call_operand.vmem [shape: f32[3,8,256], index: 5, kind: output, shape index: {1}]
  %s6 = inlined_call_operand.vmem [shape: bf16[8,8,256], index: 6, kind: output, shape index: {2}]
  %7 = xla_tuple %s4, %s5, %s6
  %s8 = sld [smem:[#allocation0]]
  $region77: #{language_model_forward.2} parent=0
    _
  %s10 = ssub.s32 1, %s8
  %s11 = scalar_select 0, %s10, %s8
  $region1: #{language_model_forward.2} parent=0
    #allocation3 [shape = 'u8[1048576]{0}', space=vmem, size = 0x100000, scoped, tag = 'input window, operand 1']
    #allocation4 [shape = 's32[2]{0}', space=sflag, size = 0x8, scoped, tag = 'scoped memory for language_model_forward.2']
    #allocation5 [shape = 'u8[1048576]{0}', space=vmem, size = 0x100000, scoped, tag = 'input window, operand 2']
    #allocation6 [shape = 's32[2]{0}', space=sflag, size = 0x8, scoped, tag = 'scoped memory for language_model_forward.2']
    #allocation7 [shape = 'u8[8192]{0}', space=vmem, size = 0x2000, scoped, tag = 'input window, operand 3']
    %12 = vsyncpa [#allocation4], 0
    %s13 = scalar_lea.sflag [#allocation4], 1
    %14 = vsyncpa %s13, 0
    %15 = vsyncpa [#allocation6], 0
    %s16 = scalar_lea.sflag [#allocation6], 1
    %17 = vsyncpa %s16, 0
    loop: start=0, step=1, limit=5
    $region2: #{language_model_forward.2} parent=1 // loop_pre_header
      _
    $region3: #{language_model_forward.2} parent=1 // loop_header
      %s19 = sphi 0, %s23
      %p20 = scmp.ge.s32.totalorder %s19, 5
      %s27 = sphi 0, %s27
      %s29 = sphi 0, %s27
      %s30 = sphi 0, %s29
      %s44 = sphi 0, %s30
      %s50 = sphi 0, %s52
      %s53 = sphi 0, %s50
      %s54 = sphi 0, %s53
      %s70 = sphi 0, %s54
      %s76 = sphi 0, %s78
      %s79 = sphi 0, %s76
      %s80 = sphi 0, %s79
      %s96 = sphi 0, %s80
      %s102 = sphi 0, %s104
      %s105 = sphi 0, %s102
      %s106 = sphi 0, %s105
      %s122 = sphi 0, %s106
      %s128 = sphi 0, %s130
      %s131 = sphi 0, %s128
      %s132 = sphi 0, %s131
      %s148 = sphi 0, %s132
      %s154 = sphi 0, %s156
      %s157 = sphi 0, %s154
      %s158 = sphi 0, %s157
      %s174 = sphi 0, %s158
      %s178 = sphi 0, %s178
      %s180 = sphi 0, %s178
      %s181 = sphi 0, %s180
      %s195 = sphi 0, %s181
    $region4: #{language_model_forward.2} parent=1 // loop_header_branch
      %22 = sbr.rel (%p20) target = $region8
    $region5: #{language_model_forward.2} parent=1 // loop_body
      %s24 = ssub.s32 %s19, 1
      %s25 = ssub.s32 %s19, 2
      %s26 = sadd.s32 %s19, 1
      %s28 = sadd.s32 %s27, 1
      %p31 = scmp.eq.s32.totalorder %s19, 2
      %p32 = scmp.ne.s32.totalorder %s27, %s29
      %p33 = scmp.eq.s32.totalorder %s19, 0
      %p34 = por %p32, %p33
      %p35 = scmp.ne.s32.totalorder %s27, %s29
      %p36 = scmp.eq.s32.totalorder %s24, 2
      %p37 = por %p35, %p36
      %p38 = scmp.ne.s32.totalorder %s29, %s30
      %p39 = scmp.eq.s32.totalorder %s24, 0
      %p40 = por %p38, %p39
      %p41 = scmp.ne.s32.totalorder %s29, %s30
      %p42 = scmp.eq.s32.totalorder %s25, 2
      %p43 = por %p41, %p42
      %p45 = scmp.ne.s32.totalorder %s30, %s44
      %p46 = scmp.eq.s32.totalorder %s25, 0
      %p47 = por %p45, %p46
      %s48 = ssub.s32 %s19, %s26
      %p49 = scmp.eq.s32.totalorder %s48, 0
      %s51 = sadd.s32 %s50, 1
      %s52 = scalar_select %p49, %s50, %s51
      %p55 = pneg %p49
      %p56 = scmp.eq.s32.totalorder %s19, 2
      %p57 = por %p55, %p56
      %p58 = scmp.ne.s32.totalorder %s50, %s53
      %p59 = scmp.eq.s32.totalorder %s19, 0
      %p60 = por %p58, %p59
      %p61 = scmp.ne.s32.totalorder %s50, %s53
      %p62 = scmp.eq.s32.totalorder %s24, 2
      %p63 = por %p61, %p62
      %p64 = scmp.ne.s32.totalorder %s53, %s54
      %p65 = scmp.eq.s32.totalorder %s24, 0
      %p66 = por %p64, %p65
      %p67 = scmp.ne.s32.totalorder %s53, %s54
      %p68 = scmp.eq.s32.totalorder %s25, 2
      %p69 = por %p67, %p68
      %p71 = scmp.ne.s32.totalorder %s54, %s70
      %p72 = scmp.eq.s32.totalorder %s25, 0
      %p73 = por %p71, %p72
      %s74 = ssub.s32 %s19, %s26
      %p75 = scmp.eq.s32.totalorder %s74, 0
      %s77 = sadd.s32 %s76, 1
      %s78 = scalar_select %p75, %s76, %s77
      %p81 = pneg %p75
      %p82 = scmp.eq.s32.totalorder %s19, 2
      %p83 = por %p81, %p82
      %p84 = scmp.ne.s32.totalorder %s76, %s79
      %p85 = scmp.eq.s32.totalorder %s19, 0
      %p86 = por %p84, %p85
      %p87 = scmp.ne.s32.totalorder %s76, %s79
      %p88 = scmp.eq.s32.totalorder %s24, 2
      %p89 = por %p87, %p88
      %p90 = scmp.ne.s32.totalorder %s79, %s80
      %p91 = scmp.eq.s32.totalorder %s24, 0
      %p92 = por %p90, %p91
      %p93 = scmp.ne.s32.totalorder %s79, %s80
      %p94 = scmp.eq.s32.totalorder %s25, 2
      %p95 = por %p93, %p94
      %p97 = scmp.ne.s32.totalorder %s80, %s96
      %p98 = scmp.eq.s32.totalorder %s25, 0
      %p99 = por %p97, %p98
      %s100 = ssub.s32 %s19, %s26
      %p101 = scmp.eq.s32.totalorder %s100, 0
      %s103 = sadd.s32 %s102, 1
      %s104 = scalar_select %p101, %s102, %s103
      %p107 = pneg %p101
      %p108 = scmp.eq.s32.totalorder %s19, 2
      %p109 = por %p107, %p108
      %p110 = scmp.ne.s32.totalorder %s102, %s105
      %p111 = scmp.eq.s32.totalorder %s19, 0
      %p112 = por %p110, %p111
      %p113 = scmp.ne.s32.totalorder %s102, %s105
      %p114 = scmp.eq.s32.totalorder %s24, 2
      %p115 = por %p113, %p114
      %p116 = scmp.ne.s32.totalorder %s105, %s106
      %p117 = scmp.eq.s32.totalorder %s24, 0
      %p118 = por %p116, %p117
      %p119 = scmp.ne.s32.totalorder %s105, %s106
      %p120 = scmp.eq.s32.totalorder %s25, 2
      %p121 = por %p119, %p120
      %p123 = scmp.ne.s32.totalorder %s106, %s122
      %p124 = scmp.eq.s32.totalorder %s25, 0
      %p125 = por %p123, %p124
      %s126 = ssub.s32 %s19, %s26
      %p127 = scmp.eq.s32.totalorder %s126, 0
      %s129 = sadd.s32 %s128, 1
      %s130 = scalar_select %p127, %s128, %s129
      %p133 = pneg %p127
      %p134 = scmp.eq.s32.totalorder %s19, 2
      %p135 = por %p133, %p134
      %p136 = scmp.ne.s32.totalorder %s128, %s131
      %p137 = scmp.eq.s32.totalorder %s19, 0
      %p138 = por %p136, %p137
      %p139 = scmp.ne.s32.totalorder %s128, %s131
      %p140 = scmp.eq.s32.totalorder %s24, 2
      %p141 = por %p139, %p140
      %p142 = scmp.ne.s32.totalorder %s131, %s132
      %p143 = scmp.eq.s32.totalorder %s24, 0
      %p144 = por %p142, %p143
      %p145 = scmp.ne.s32.totalorder %s131, %s132
      %p146 = scmp.eq.s32.totalorder %s25, 2
      %p147 = por %p145, %p146
      %p149 = scmp.ne.s32.totalorder %s132, %s148
      %p150 = scmp.eq.s32.totalorder %s25, 0
      %p151 = por %p149, %p150
      %s152 = ssub.s32 %s19, %s26
      %p153 = scmp.eq.s32.totalorder %s152, 0
      %s155 = sadd.s32 %s154, 1
      %s156 = scalar_select %p153, %s154, %s155
      %p159 = pneg %p153
      %p160 = scmp.eq.s32.totalorder %s19, 2
      %p161 = por %p159, %p160
      %p162 = scmp.ne.s32.totalorder %s154, %s157
      %p163 = scmp.eq.s32.totalorder %s19, 0
      %p164 = por %p162, %p163
      %p165 = scmp.ne.s32.totalorder %s154, %s157
      %p166 = scmp.eq.s32.totalorder %s24, 2
      %p167 = por %p165, %p166
      %p168 = scmp.ne.s32.totalorder %s157, %s158
      %p169 = scmp.eq.s32.totalorder %s24, 0
      %p170 = por %p168, %p169
      %p171 = scmp.ne.s32.totalorder %s157, %s158
      %p172 = scmp.eq.s32.totalorder %s25, 2
      %p173 = por %p171, %p172
      %p175 = scmp.ne.s32.totalorder %s158, %s174
      %p176 = scmp.eq.s32.totalorder %s25, 0
      %p177 = por %p175, %p176
      %s179 = sadd.s32 %s178, 1
      %p182 = scmp.eq.s32.totalorder %s19, 2
      %p183 = scmp.ne.s32.totalorder %s178, %s180
      %p184 = scmp.eq.s32.totalorder %s19, 0
      %p185 = por %p183, %p184
      %p186 = scmp.ne.s32.totalorder %s178, %s180
      %p187 = scmp.eq.s32.totalorder %s24, 2
      %p188 = por %p186, %p187
      %p189 = scmp.ne.s32.totalorder %s180, %s181
      %p190 = scmp.eq.s32.totalorder %s24, 0
      %p191 = por %p189, %p190
      %p192 = scmp.ne.s32.totalorder %s180, %s181
      %p193 = scmp.eq.s32.totalorder %s25, 2
      %p194 = por %p192, %p193
      %p196 = scmp.ne.s32.totalorder %s181, %s195
      %p197 = scmp.eq.s32.totalorder %s25, 0
      %p198 = por %p196, %p197
      %p199 = scmp.le.s32.totalorder 1, %s19
      %p200 = scmp.lt.s32.totalorder %s19, 4
      %p201 = pnand %p199, %p200
      %p202 = pneg %p201
      // Predicated region
      $region9: #{language_model_forward.2} parent=5 // pred_check
        _
      $region10: #{language_model_forward.2} parent=5 // pred_check_branch
        %204 = sbr.rel (%p201) target = $region12
      $region11: #{language_model_forward.2} parent=5 // pred_region
        %s205 = ssub.s32 %s19, 1
        // Predicated region
        $region13: #{language_model_forward.2} parent=11 // pred_check
          %p206 = pneg %p40
        $region14: #{language_model_forward.2} parent=11 // pred_check_branch
          %208 = sbr.rel (%p206) target = $region16
        $region15: #{language_model_forward.2} parent=11 // pred_region
          _
        $region16: #{language_model_forward.2} parent=11 // pred_fallthru
          _
      $region12: #{language_model_forward.2} parent=5 // pred_fallthru
        _
      %p209 = scmp.lt.s32.totalorder %s19, 3
      // Predicated region
      $region17: #{language_model_forward.2} parent=5 // pred_check
        %p210 = pneg %p209
      $region18: #{language_model_forward.2} parent=5 // pred_check_branch
        %212 = sbr.rel (%p210) target = $region20
      $region19: #{language_model_forward.2} parent=5 // pred_region
        // Predicated region
        $region21: #{language_model_forward.2} parent=19 // pred_check
          %p213 = pneg %p60
        $region22: #{language_model_forward.2} parent=19 // pred_check_branch
          %215 = sbr.rel (%p213) target = $region24
        $region23: #{language_model_forward.2} parent=19 // pred_region
          %s216 = sand.u32 %s50, 1
          %s217 = scalar_lea.sflag [#allocation4], %s216
          %s218 = sand.u32 %s50, 1
          %s219 = smul.addr %s218, 1024
          %s220 = scalar_lea.vmem [#allocation3], %s219
          %222 = vsyncadd %s217, 0
          %s223 = smul.addr %s19, 256
          %s224 = smul.addr %s223, 4
          %s225 = scalar_lea.hbm %s1, %s224
          %s226 = sshll.u32 %s225, 4
          %s227 = int_to_ptr.hbm [resolvable:$true] %s226
          %s228 = sshll.u32 %s220, 4
          %s229 = int_to_ptr.vmem [resolvable:$true] %s228
          %234 = dma.hbm_to_vmem [thread:$0]  %s227, 16384, %s229, %s217, 512, 512, 32
        $region24: #{language_model_forward.2} parent=19 // pred_fallthru
          _
        // Predicated region
        $region25: #{language_model_forward.2} parent=19 // pred_check
          %p235 = pneg %p86
        $region26: #{language_model_forward.2} parent=19 // pred_check_branch
          %237 = sbr.rel (%p235) target = $region28
        $region27: #{language_model_forward.2} parent=19 // pred_region
          %s238 = sand.u32 %s19, 1
          %s239 = scalar_lea.sflag [#allocation6], %s238
          %s240 = sand.u32 %s76, 1
          %s241 = smul.addr %s240, 1024
          %s242 = scalar_lea.vmem [#allocation5], %s241
          %244 = vsyncadd %s239, 0
          %s245 = smul.addr %s19, 256
          %s246 = smul.addr %s245, 4
          %s247 = scalar_lea.hbm %s2, %s246
          %s248 = sshll.u32 %s247, 4
          %s249 = int_to_ptr.hbm [resolvable:$true] %s248
          %s250 = sshll.u32 %s242, 4
          %s251 = int_to_ptr.vmem [resolvable:$true] %s250
          %256 = dma.hbm_to_vmem [thread:$0]  %s249, 16384, %s251, %s239, 512, 512, 32
        $region28: #{language_model_forward.2} parent=19 // pred_fallthru
          _
        // Predicated region
        $region29: #{language_model_forward.2} parent=19 // pred_check
          %p257 = pneg %p112
        $region30: #{language_model_forward.2} parent=19 // pred_check_branch
          %259 = sbr.rel (%p257) target = $region32
        $region31: #{language_model_forward.2} parent=19 // pred_region
          %s260 = sand.u32 %s19, 1
          %s261 = scalar_lea.sflag [#allocation6], %s260
          %s262 = sand.u32 %s102, 1
          %s263 = smul.addr %s262, 8
          %s264 = scalar_lea.vmem [#allocation7], %s263
          %266 = vsyncadd %s261, 0
          %s267 = smul.addr %s19, 8
          %s268 = scalar_lea.hbm %s3, %s267
          %s270 = sshll.u32 %s268, 4
          %s271 = int_to_ptr.hbm [resolvable:$true] %s270
          %s272 = sshll.u32 %s264, 4
          %s273 = int_to_ptr.vmem [resolvable:$true] %s272
          %275 = dma.hbm_to_vmem [thread:$0]  %s271, 128, %s273, %s261
        $region32: #{language_model_forward.2} parent=19 // pred_fallthru
          _
      $region20: #{language_model_forward.2} parent=5 // pred_fallthru
        _
      %p276 = scmp.le.s32.totalorder 1, %s19
      %p277 = scmp.lt.s32.totalorder %s19, 4
      %p278 = pnand %p276, %p277
      %p279 = pneg %p278
      // Predicated region
      $region33: #{language_model_forward.2} parent=5 // pred_check
        _
      $region34: #{language_model_forward.2} parent=5 // pred_check_branch
        %281 = sbr.rel (%p278) target = $region36
      $region35: #{language_model_forward.2} parent=5 // pred_region
        %s282 = ssub.s32 %s19, 1
        %s283 = sand.u32 %s53, 1
        %s284 = scalar_lea.sflag [#allocation4], %s283
        %s285 = sand.u32 %s53, 1
        %s286 = smul.addr %s285, 1024
        %s287 = scalar_lea.vmem [#allocation3], %s286
        // Predicated region
        $region37: #{language_model_forward.2} parent=35 // pred_check
          %p288 = pneg %p66
        $region38: #{language_model_forward.2} parent=35 // pred_check_branch
          %290 = sbr.rel (%p288) target = $region40
        $region39: #{language_model_forward.2} parent=35 // pred_region
          %292 = dma.done %s284, 16384
        $region40: #{language_model_forward.2} parent=35 // pred_fallthru
          _
        %s293 = sand.u32 %s24, 1
        %s294 = scalar_lea.sflag [#allocation6], %s293
        %s295 = sand.u32 %s79, 1
        %s296 = smul.addr %s295, 1024
        %s297 = scalar_lea.vmem [#allocation5], %s296
        // Predicated region
        $region41: #{language_model_forward.2} parent=35 // pred_check
          %p298 = pneg %p92
        $region42: #{language_model_forward.2} parent=35 // pred_check_branch
          %300 = sbr.rel (%p298) target = $region44
        $region43: #{language_model_forward.2} parent=35 // pred_region
          %302 = dma.done %s294, 16384
        $region44: #{language_model_forward.2} parent=35 // pred_fallthru
          _
        %s303 = sand.u32 %s24, 1
        %s304 = scalar_lea.sflag [#allocation6], %s303
        %s305 = sand.u32 %s105, 1
        %s306 = smul.addr %s305, 8
        %s307 = scalar_lea.vmem [#allocation7], %s306
        // Predicated region
        $region45: #{language_model_forward.2} parent=35 // pred_check
          %p308 = pneg %p118
        $region46: #{language_model_forward.2} parent=35 // pred_check_branch
          %310 = sbr.rel (%p308) target = $region48
        $region47: #{language_model_forward.2} parent=35 // pred_region
          %312 = dma.done %s304, 128
        $region48: #{language_model_forward.2} parent=35 // pred_fallthru
          _
        %p313 = pneg %p40
        %p314 = pneg %p37
        %s315 = sand.u32 %s53, 1
        %s316 = scalar_lea.sflag [#allocation4], %s315
        %s317 = sand.u32 %s53, 1
        %s318 = smul.addr %s317, 1024
        %s319 = scalar_lea.vmem [#allocation3], %s318
        %p320 = pneg %p66
        %p321 = pneg %p63
        %s322 = sand.u32 %s24, 1
        %s323 = scalar_lea.sflag [#allocation6], %s322
        %s324 = sand.u32 %s79, 1
        %s325 = smul.addr %s324, 1024
        %s326 = scalar_lea.vmem [#allocation5], %s325
        %p327 = pneg %p92
        %p328 = pneg %p89
        %s329 = sand.u32 %s24, 1
        %s330 = scalar_lea.sflag [#allocation6], %s329
        %s331 = sand.u32 %s105, 1
        %s332 = smul.addr %s331, 8
        %s333 = scalar_lea.vmem [#allocation7], %s332
        %p334 = pneg %p118
        %p335 = pneg %p115
        %p336 = pneg %p144
        %p337 = pneg %p141
        %p338 = scmp.lt.s32.totalorder %s24, 2
        %s339 = scalar_select %p338, %s24, 2
        %s340 = smul.addr %s339, 2
        %s341 = smul.addr %s340, 8
        %s342 = scalar_lea.vmem %s4, %s341
        %p343 = pneg %p170
        %p344 = pneg %p167
        %p345 = scmp.lt.s32.totalorder %s24, 2
        %s346 = scalar_select %p345, %s24, 2
        %s347 = smul.addr %s346, 2
        %s348 = smul.addr %s347, 8
        %s349 = scalar_lea.vmem %s5, %s348
        %p350 = pneg %p191
        %p351 = pneg %p188
        %p352 = scmp.lt.s32.totalorder %s24, 2
        %s353 = scalar_select %p352, %s24, 2
        %s354 = smul.addr %s353, 2
        %s355 = smul.addr %s354, 8
        %s356 = scalar_lea.vmem %s4, %s355
        %p357 = scmp.lt.s32.totalorder %s24, 2
        %s358 = scalar_select %p357, %s24, 2
        %s359 = smul.addr %s358, 2
        %s360 = smul.addr %s359, 8
        %s361 = scalar_lea.vmem %s5, %s360
        %p363 = scmp.eq.s32.totalorder %s24, 0
        %v364 = vld [vmem:[%s0] sm:$0xff]
        %v365 = vld [vmem:[%s0 + $0x8] sm:$0xff]
        %v366 = vld [vmem:[%s0 + $0x10] sm:$0xff]
        %v367 = vld [vmem:[%s0 + $0x18] sm:$0xff]
        %v368 = vld [vmem:[%s0 + $0x20] sm:$0xff]
        %v369 = vld [vmem:[%s0 + $0x28] sm:$0xff]
        %v370 = vld [vmem:[%s0 + $0x30] sm:$0xff]
        %v371 = vld [vmem:[%s0 + $0x38] sm:$0xff]
        %v372 = vld [vmem:[%s6] sm:$0xff]
        %v373 = vld [vmem:[%s6 + $0x8] sm:$0xff]
        %v374 = vld [vmem:[%s6 + $0x10] sm:$0xff]
        %v375 = vld [vmem:[%s6 + $0x18] sm:$0xff]
        %v376 = vld [vmem:[%s6 + $0x20] sm:$0xff]
        %v377 = vld [vmem:[%s6 + $0x28] sm:$0xff]
        %v378 = vld [vmem:[%s6 + $0x30] sm:$0xff]
        %v379 = vld [vmem:[%s6 + $0x38] sm:$0xff]
        %s380 = scalar_select %p363, 1, 0
        %v381 = vstv %s380
        %vm382 = vcmp.eq.s32.totalorder %v381, 1
        %v383 = vsel %vm382, %v364, %v372
        %v384 = vsel %vm382, %v365, %v373
        %v385 = vsel %vm382, %v366, %v374
        %v386 = vsel %vm382, %v367, %v375
        %v387 = vsel %vm382, %v368, %v376
        %v388 = vsel %vm382, %v369, %v377
        %v389 = vsel %vm382, %v370, %v378
        %v390 = vsel %vm382, %v371, %v379
        %v391 = vld [vmem:[%s287] sm:$0xff]
        %v392 = vld [vmem:[%s287 + $0x8] sm:$0xff]
        %v393 = vld [vmem:[%s287 + $0x10] sm:$0xff]
        %v394 = vld [vmem:[%s287 + $0x18] sm:$0xff]
        %v395 = vld [vmem:[%s287 + $0x20] sm:$0xff]
        %v396 = vld [vmem:[%s287 + $0x28] sm:$0xff]
        %v397 = vld [vmem:[%s287 + $0x30] sm:$0xff]
        %v398 = vld [vmem:[%s287 + $0x38] sm:$0xff]
        %v399 = vld [vmem:[%s287 + $0x40] sm:$0xff]
        %v400 = vld [vmem:[%s287 + $0x48] sm:$0xff]
        %v401 = vld [vmem:[%s287 + $0x50] sm:$0xff]
        %v402 = vld [vmem:[%s287 + $0x58] sm:$0xff]
        %v403 = vld [vmem:[%s287 + $0x60] sm:$0xff]
        %v404 = vld [vmem:[%s287 + $0x68] sm:$0xff]
        %v405 = vld [vmem:[%s287 + $0x70] sm:$0xff]
        %v406 = vld [vmem:[%s287 + $0x78] sm:$0xff]
        %v407 = vld [vmem:[%s287 + $0x80] sm:$0xff]
        %v408 = vld [vmem:[%s287 + $0x88] sm:$0xff]
        %v409 = vld [vmem:[%s287 + $0x90] sm:$0xff]
        %v410 = vld [vmem:[%s287 + $0x98] sm:$0xff]
        %v411 = vld [vmem:[%s287 + $0xa0] sm:$0xff]
        %v412 = vld [vmem:[%s287 + $0xa8] sm:$0xff]
        %v413 = vld [vmem:[%s287 + $0xb0] sm:$0xff]
        %v414 = vld [vmem:[%s287 + $0xb8] sm:$0xff]
        %v415 = vld [vmem:[%s287 + $0xc0] sm:$0xff]
        %v416 = vld [vmem:[%s287 + $0xc8] sm:$0xff]
        %v417 = vld [vmem:[%s287 + $0xd0] sm:$0xff]
        %v418 = vld [vmem:[%s287 + $0xd8] sm:$0xff]
        %v419 = vld [vmem:[%s287 + $0xe0] sm:$0xff]
        %v420 = vld [vmem:[%s287 + $0xe8] sm:$0xff]
        %v421 = vld [vmem:[%s287 + $0xf0] sm:$0xff]
        %v422 = vld [vmem:[%s287 + $0xf8] sm:$0xff]
        %v423 = vld [vmem:[%s287 + $0x100] sm:$0xff]
        %v424 = vld [vmem:[%s287 + $0x108] sm:$0xff]
        %v425 = vld [vmem:[%s287 + $0x110] sm:$0xff]
        %v426 = vld [vmem:[%s287 + $0x118] sm:$0xff]
        %v427 = vld [vmem:[%s287 + $0x120] sm:$0xff]
        %v428 = vld [vmem:[%s287 + $0x128] sm:$0xff]
        %v429 = vld [vmem:[%s287 + $0x130] sm:$0xff]
        %v430 = vld [vmem:[%s287 + $0x138] sm:$0xff]
        %v431 = vld [vmem:[%s287 + $0x140] sm:$0xff]
        %v432 = vld [vmem:[%s287 + $0x148] sm:$0xff]
        %v433 = vld [vmem:[%s287 + $0x150] sm:$0xff]
        %v434 = vld [vmem:[%s287 + $0x158] sm:$0xff]
        %v435 = vld [vmem:[%s287 + $0x160] sm:$0xff]
        %v436 = vld [vmem:[%s287 + $0x168] sm:$0xff]
        %v437 = vld [vmem:[%s287 + $0x170] sm:$0xff]
        %v438 = vld [vmem:[%s287 + $0x178] sm:$0xff]
        %v439 = vld [vmem:[%s287 + $0x180] sm:$0xff]
        %v440 = vld [vmem:[%s287 + $0x188] sm:$0xff]
        %v441 = vld [vmem:[%s287 + $0x190] sm:$0xff]
        %v442 = vld [vmem:[%s287 + $0x198] sm:$0xff]
        %v443 = vld [vmem:[%s287 + $0x1a0] sm:$0xff]
        %v444 = vld [vmem:[%s287 + $0x1a8] sm:$0xff]
        %v445 = vld [vmem:[%s287 + $0x1b0] sm:$0xff]
        %v446 = vld [vmem:[%s287 + $0x1b8] sm:$0xff]
        %v447 = vld [vmem:[%s287 + $0x1c0] sm:$0xff]
        %v448 = vld [vmem:[%s287 + $0x1c8] sm:$0xff]
        %v449 = vld [vmem:[%s287 + $0x1d0] sm:$0xff]
        %v450 = vld [vmem:[%s287 + $0x1d8] sm:$0xff]
        %v451 = vld [vmem:[%s287 + $0x1e0] sm:$0xff]
        %v452 = vld [vmem:[%s287 + $0x1e8] sm:$0xff]
        %v453 = vld [vmem:[%s287 + $0x1f0] sm:$0xff]
        %v454 = vld [vmem:[%s287 + $0x1f8] sm:$0xff]
        %v455 = vld [vmem:[%s287 + $0x200] sm:$0xff]
        %v456 = vld [vmem:[%s287 + $0x208] sm:$0xff]
        %v457 = vld [vmem:[%s287 + $0x210] sm:$0xff]
        %v458 = vld [vmem:[%s287 + $0x218] sm:$0xff]
        %v459 = vld [vmem:[%s287 + $0x220] sm:$0xff]
        %v460 = vld [vmem:[%s287 + $0x228] sm:$0xff]
        %v461 = vld [vmem:[%s287 + $0x230] sm:$0xff]
        %v462 = vld [vmem:[%s287 + $0x238] sm:$0xff]
        %v463 = vld [vmem:[%s287 + $0x240] sm:$0xff]
        %v464 = vld [vmem:[%s287 + $0x248] sm:$0xff]
        %v465 = vld [vmem:[%s287 + $0x250] sm:$0xff]
        %v466 = vld [vmem:[%s287 + $0x258] sm:$0xff]
        %v467 = vld [vmem:[%s287 + $0x260] sm:$0xff]
        %v468 = vld [vmem:[%s287 + $0x268] sm:$0xff]
        %v469 = vld [vmem:[%s287 + $0x270] sm:$0xff]
        %v470 = vld [vmem:[%s287 + $0x278] sm:$0xff]
        %v471 = vld [vmem:[%s287 + $0x280] sm:$0xff]
        %v472 = vld [vmem:[%s287 + $0x288] sm:$0xff]
        %v473 = vld [vmem:[%s287 + $0x290] sm:$0xff]
        %v474 = vld [vmem:[%s287 + $0x298] sm:$0xff]
        %v475 = vld [vmem:[%s287 + $0x2a0] sm:$0xff]
        %v476 = vld [vmem:[%s287 + $0x2a8] sm:$0xff]
        %v477 = vld [vmem:[%s287 + $0x2b0] sm:$0xff]
        %v478 = vld [vmem:[%s287 + $0x2b8] sm:$0xff]
        %v479 = vld [vmem:[%s287 + $0x2c0] sm:$0xff]
        %v480 = vld [vmem:[%s287 + $0x2c8] sm:$0xff]
        %v481 = vld [vmem:[%s287 + $0x2d0] sm:$0xff]
        %v482 = vld [vmem:[%s287 + $0x2d8] sm:$0xff]
        %v483 = vld [vmem:[%s287 + $0x2e0] sm:$0xff]
        %v484 = vld [vmem:[%s287 + $0x2e8] sm:$0xff]
        %v485 = vld [vmem:[%s287 + $0x2f0] sm:$0xff]
        %v486 = vld [vmem:[%s287 + $0x2f8] sm:$0xff]
        %v487 = vld [vmem:[%s287 + $0x300] sm:$0xff]
        %v488 = vld [vmem:[%s287 + $0x308] sm:$0xff]
        %v489 = vld [vmem:[%s287 + $0x310] sm:$0xff]
        %v490 = vld [vmem:[%s287 + $0x318] sm:$0xff]
        %v491 = vld [vmem:[%s287 + $0x320] sm:$0xff]
        %v492 = vld [vmem:[%s287 + $0x328] sm:$0xff]
        %v493 = vld [vmem:[%s287 + $0x330] sm:$0xff]
        %v494 = vld [vmem:[%s287 + $0x338] sm:$0xff]
        %v495 = vld [vmem:[%s287 + $0x340] sm:$0xff]
        %v496 = vld [vmem:[%s287 + $0x348] sm:$0xff]
        %v497 = vld [vmem:[%s287 + $0x350] sm:$0xff]
        %v498 = vld [vmem:[%s287 + $0x358] sm:$0xff]
        %v499 = vld [vmem:[%s287 + $0x360] sm:$0xff]
        %v500 = vld [vmem:[%s287 + $0x368] sm:$0xff]
        %v501 = vld [vmem:[%s287 + $0x370] sm:$0xff]
        %v502 = vld [vmem:[%s287 + $0x378] sm:$0xff]
        %v503 = vld [vmem:[%s287 + $0x380] sm:$0xff]
        %v504 = vld [vmem:[%s287 + $0x388] sm:$0xff]
        %v505 = vld [vmem:[%s287 + $0x390] sm:$0xff]
        %v506 = vld [vmem:[%s287 + $0x398] sm:$0xff]
        %v507 = vld [vmem:[%s287 + $0x3a0] sm:$0xff]
        %v508 = vld [vmem:[%s287 + $0x3a8] sm:$0xff]
        %v509 = vld [vmem:[%s287 + $0x3b0] sm:$0xff]
        %v510 = vld [vmem:[%s287 + $0x3b8] sm:$0xff]
        %v511 = vld [vmem:[%s287 + $0x3c0] sm:$0xff]
        %v512 = vld [vmem:[%s287 + $0x3c8] sm:$0xff]
        %v513 = vld [vmem:[%s287 + $0x3d0] sm:$0xff]
        %v514 = vld [vmem:[%s287 + $0x3d8] sm:$0xff]
        %v515 = vld [vmem:[%s287 + $0x3e0] sm:$0xff]
        %v516 = vld [vmem:[%s287 + $0x3e8] sm:$0xff]
        %v517 = vld [vmem:[%s287 + $0x3f0] sm:$0xff]
        %v518 = vld [vmem:[%s287 + $0x3f8] sm:$0xff]
        %v519 = vld [vmem:[%s307] sm:$0xff]
        %v521 = vperm.slane %v519, 0
        %v522 = vperm.slane %v519, 1
        %v523 = vperm.slane %v519, 2
        %v524 = vperm.slane %v519, 3
        %v525 = vperm.slane %v519, 4
        %v526 = vperm.slane %v519, 5
        %v527 = vperm.slane %v519, 6
        %v528 = vperm.slane %v519, 7
        %v545 = vunpack.c.l.b16 %v383
        %v546 = vunpack.c.h.b16 %v383
        %v547 = vunpack.c.l.b16 %v384
        %v548 = vunpack.c.h.b16 %v384
        %v549 = vunpack.c.l.b16 %v385
        %v550 = vunpack.c.h.b16 %v385
        %v551 = vunpack.c.l.b16 %v386
        %v552 = vunpack.c.h.b16 %v386
        %v553 = vunpack.c.l.b16 %v387
        %v554 = vunpack.c.h.b16 %v387
        %v555 = vunpack.c.l.b16 %v388
        %v556 = vunpack.c.h.b16 %v388
        %v557 = vunpack.c.l.b16 %v389
        %v558 = vunpack.c.h.b16 %v389
        %v559 = vunpack.c.l.b16 %v390
        %v560 = vunpack.c.h.b16 %v390
        %v561 = vpack.c.b16 %v547, %v545
        %v562 = vpack.c.b16 %v548, %v546
        %v563 = vpack.c.b16 %v551, %v549
        %v564 = vpack.c.b16 %v552, %v550
        %v565 = vpack.c.b16 %v555, %v553
        %v566 = vpack.c.b16 %v556, %v554
        %v567 = vpack.c.b16 %v559, %v557
        %v568 = vpack.c.b16 %v560, %v558
        %v705 = vunpack.c.l.b16 %v391
        %v706 = vunpack.c.h.b16 %v391
        %v707 = vunpack.c.l.b16 %v392
        %v708 = vunpack.c.h.b16 %v392
        %v709 = vunpack.c.l.b16 %v393
        %v710 = vunpack.c.h.b16 %v393
        %v711 = vunpack.c.l.b16 %v394
        %v712 = vunpack.c.h.b16 %v394
        %v713 = vunpack.c.l.b16 %v395
        %v714 = vunpack.c.h.b16 %v395
        %v715 = vunpack.c.l.b16 %v396
        %v716 = vunpack.c.h.b16 %v396
        %v717 = vunpack.c.l.b16 %v397
        %v718 = vunpack.c.h.b16 %v397
        %v719 = vunpack.c.l.b16 %v398
        %v720 = vunpack.c.h.b16 %v398
        %v721 = vunpack.c.l.b16 %v399
        %v722 = vunpack.c.h.b16 %v399
        %v723 = vunpack.c.l.b16 %v400
        %v724 = vunpack.c.h.b16 %v400
        %v725 = vunpack.c.l.b16 %v401
        %v726 = vunpack.c.h.b16 %v401
        %v727 = vunpack.c.l.b16 %v402
        %v728 = vunpack.c.h.b16 %v402
        %v729 = vunpack.c.l.b16 %v403
        %v730 = vunpack.c.h.b16 %v403
        %v731 = vunpack.c.l.b16 %v404
        %v732 = vunpack.c.h.b16 %v404
        %v733 = vunpack.c.l.b16 %v405
        %v734 = vunpack.c.h.b16 %v405
        %v735 = vunpack.c.l.b16 %v406
        %v736 = vunpack.c.h.b16 %v406
        %v737 = vunpack.c.l.b16 %v407
        %v738 = vunpack.c.h.b16 %v407
        %v739 = vunpack.c.l.b16 %v408
        %v740 = vunpack.c.h.b16 %v408
        %v741 = vunpack.c.l.b16 %v409
        %v742 = vunpack.c.h.b16 %v409
        %v743 = vunpack.c.l.b16 %v410
        %v744 = vunpack.c.h.b16 %v410
        %v745 = vunpack.c.l.b16 %v411
        %v746 = vunpack.c.h.b16 %v411
        %v747 = vunpack.c.l.b16 %v412
        %v748 = vunpack.c.h.b16 %v412
        %v749 = vunpack.c.l.b16 %v413
        %v750 = vunpack.c.h.b16 %v413
        %v751 = vunpack.c.l.b16 %v414
        %v752 = vunpack.c.h.b16 %v414
        %v753 = vunpack.c.l.b16 %v415
        %v754 = vunpack.c.h.b16 %v415
        %v755 = vunpack.c.l.b16 %v416
        %v756 = vunpack.c.h.b16 %v416
        %v757 = vunpack.c.l.b16 %v417
        %v758 = vunpack.c.h.b16 %v417
        %v759 = vunpack.c.l.b16 %v418
        %v760 = vunpack.c.h.b16 %v418
        %v761 = vunpack.c.l.b16 %v419
        %v762 = vunpack.c.h.b16 %v419
        %v763 = vunpack.c.l.b16 %v420
        %v764 = vunpack.c.h.b16 %v420
        %v765 = vunpack.c.l.b16 %v421
        %v766 = vunpack.c.h.b16 %v421
        %v767 = vunpack.c.l.b16 %v422
        %v768 = vunpack.c.h.b16 %v422
        %v769 = vunpack.c.l.b16 %v423
        %v770 = vunpack.c.h.b16 %v423
        %v771 = vunpack.c.l.b16 %v424
        %v772 = vunpack.c.h.b16 %v424
        %v773 = vunpack.c.l.b16 %v425
        %v774 = vunpack.c.h.b16 %v425
        %v775 = vunpack.c.l.b16 %v426
        %v776 = vunpack.c.h.b16 %v426
        %v777 = vunpack.c.l.b16 %v427
        %v778 = vunpack.c.h.b16 %v427
        %v779 = vunpack.c.l.b16 %v428
        %v780 = vunpack.c.h.b16 %v428
        %v781 = vunpack.c.l.b16 %v429
        %v782 = vunpack.c.h.b16 %v429
        %v783 = vunpack.c.l.b16 %v430
        %v784 = vunpack.c.h.b16 %v430
        %v785 = vunpack.c.l.b16 %v431
        %v786 = vunpack.c.h.b16 %v431
        %v787 = vunpack.c.l.b16 %v432
        %v788 = vunpack.c.h.b16 %v432
        %v789 = vunpack.c.l.b16 %v433
        %v790 = vunpack.c.h.b16 %v433
        %v791 = vunpack.c.l.b16 %v434
        %v792 = vunpack.c.h.b16 %v434
        %v793 = vunpack.c.l.b16 %v435
        %v794 = vunpack.c.h.b16 %v435
        %v795 = vunpack.c.l.b16 %v436
        %v796 = vunpack.c.h.b16 %v436
        %v797 = vunpack.c.l.b16 %v437
        %v798 = vunpack.c.h.b16 %v437
        %v799 = vunpack.c.l.b16 %v438
        %v800 = vunpack.c.h.b16 %v438
        %v801 = vunpack.c.l.b16 %v439
        %v802 = vunpack.c.h.b16 %v439
        %v803 = vunpack.c.l.b16 %v440
        %v804 = vunpack.c.h.b16 %v440
        %v805 = vunpack.c.l.b16 %v441
        %v806 = vunpack.c.h.b16 %v441
        %v807 = vunpack.c.l.b16 %v442
        %v808 = vunpack.c.h.b16 %v442
        %v809 = vunpack.c.l.b16 %v443
        %v810 = vunpack.c.h.b16 %v443
        %v811 = vunpack.c.l.b16 %v444
        %v812 = vunpack.c.h.b16 %v444
        %v813 = vunpack.c.l.b16 %v445
        %v814 = vunpack.c.h.b16 %v445
        %v815 = vunpack.c.l.b16 %v446
        %v816 = vunpack.c.h.b16 %v446
        %v817 = vunpack.c.l.b16 %v447
        %v818 = vunpack.c.h.b16 %v447
        %v819 = vunpack.c.l.b16 %v448
        %v820 = vunpack.c.h.b16 %v448
        %v821 = vunpack.c.l.b16 %v449
        %v822 = vunpack.c.h.b16 %v449
        %v823 = vunpack.c.l.b16 %v450
        %v824 = vunpack.c.h.b16 %v450
        %v825 = vunpack.c.l.b16 %v451
        %v826 = vunpack.c.h.b16 %v451
        %v827 = vunpack.c.l.b16 %v452
        %v828 = vunpack.c.h.b16 %v452
        %v829 = vunpack.c.l.b16 %v453
        %v830 = vunpack.c.h.b16 %v453
        %v831 = vunpack.c.l.b16 %v454
        %v832 = vunpack.c.h.b16 %v454
        %v833 = vunpack.c.l.b16 %v455
        %v834 = vunpack.c.h.b16 %v455
        %v835 = vunpack.c.l.b16 %v456
        %v836 = vunpack.c.h.b16 %v456
        %v837 = vunpack.c.l.b16 %v457
        %v838 = vunpack.c.h.b16 %v457
        %v839 = vunpack.c.l.b16 %v458
        %v840 = vunpack.c.h.b16 %v458
        %v841 = vunpack.c.l.b16 %v459
        %v842 = vunpack.c.h.b16 %v459
        %v843 = vunpack.c.l.b16 %v460
        %v844 = vunpack.c.h.b16 %v460
        %v845 = vunpack.c.l.b16 %v461
        %v846 = vunpack.c.h.b16 %v461
        %v847 = vunpack.c.l.b16 %v462
        %v848 = vunpack.c.h.b16 %v462
        %v849 = vunpack.c.l.b16 %v463
        %v850 = vunpack.c.h.b16 %v463
        %v851 = vunpack.c.l.b16 %v464
        %v852 = vunpack.c.h.b16 %v464
        %v853 = vunpack.c.l.b16 %v465
        %v854 = vunpack.c.h.b16 %v465
        %v855 = vunpack.c.l.b16 %v466
        %v856 = vunpack.c.h.b16 %v466
        %v857 = vunpack.c.l.b16 %v467
        %v858 = vunpack.c.h.b16 %v467
        %v859 = vunpack.c.l.b16 %v468
        %v860 = vunpack.c.h.b16 %v468
        %v861 = vunpack.c.l.b16 %v469
        %v862 = vunpack.c.h.b16 %v469
        %v863 = vunpack.c.l.b16 %v470
        %v864 = vunpack.c.h.b16 %v470
        %v865 = vunpack.c.l.b16 %v471
        %v866 = vunpack.c.h.b16 %v471
        %v867 = vunpack.c.l.b16 %v472
        %v868 = vunpack.c.h.b16 %v472
        %v869 = vunpack.c.l.b16 %v473
        %v870 = vunpack.c.h.b16 %v473
        %v871 = vunpack.c.l.b16 %v474
        %v872 = vunpack.c.h.b16 %v474
        %v873 = vunpack.c.l.b16 %v475
        %v874 = vunpack.c.h.b16 %v475
        %v875 = vunpack.c.l.b16 %v476
        %v876 = vunpack.c.h.b16 %v476
        %v877 = vunpack.c.l.b16 %v477
        %v878 = vunpack.c.h.b16 %v477
        %v879 = vunpack.c.l.b16 %v478
        %v880 = vunpack.c.h.b16 %v478
        %v881 = vunpack.c.l.b16 %v479
        %v882 = vunpack.c.h.b16 %v479
        %v883 = vunpack.c.l.b16 %v480
        %v884 = vunpack.c.h.b16 %v480
        %v885 = vunpack.c.l.b16 %v481
        %v886 = vunpack.c.h.b16 %v481
        %v887 = vunpack.c.l.b16 %v482
        %v888 = vunpack.c.h.b16 %v482
        %v889 = vunpack.c.l.b16 %v483
        %v890 = vunpack.c.h.b16 %v483
        %v891 = vunpack.c.l.b16 %v484
        %v892 = vunpack.c.h.b16 %v484
        %v893 = vunpack.c.l.b16 %v485
        %v894 = vunpack.c.h.b16 %v485
        %v895 = vunpack.c.l.b16 %v486
        %v896 = vunpack.c.h.b16 %v486
        %v897 = vunpack.c.l.b16 %v487
        %v898 = vunpack.c.h.b16 %v487
        %v899 = vunpack.c.l.b16 %v488
        %v900 = vunpack.c.h.b16 %v488
        %v901 = vunpack.c.l.b16 %v489
        %v902 = vunpack.c.h.b16 %v489
        %v903 = vunpack.c.l.b16 %v490
        %v904 = vunpack.c.h.b16 %v490
        %v905 = vunpack.c.l.b16 %v491
        %v906 = vunpack.c.h.b16 %v491
        %v907 = vunpack.c.l.b16 %v492
        %v908 = vunpack.c.h.b16 %v492
        %v909 = vunpack.c.l.b16 %v493
        %v910 = vunpack.c.h.b16 %v493
        %v911 = vunpack.c.l.b16 %v494
        %v912 = vunpack.c.h.b16 %v494
        %v913 = vunpack.c.l.b16 %v495
        %v914 = vunpack.c.h.b16 %v495
        %v915 = vunpack.c.l.b16 %v496
        %v916 = vunpack.c.h.b16 %v496
        %v917 = vunpack.c.l.b16 %v497
        %v918 = vunpack.c.h.b16 %v497
        %v919 = vunpack.c.l.b16 %v498
        %v920 = vunpack.c.h.b16 %v498
        %v921 = vunpack.c.l.b16 %v499
        %v922 = vunpack.c.h.b16 %v499
        %v923 = vunpack.c.l.b16 %v500
        %v924 = vunpack.c.h.b16 %v500
        %v925 = vunpack.c.l.b16 %v501
        %v926 = vunpack.c.h.b16 %v501
        %v927 = vunpack.c.l.b16 %v502
        %v928 = vunpack.c.h.b16 %v502
        %v929 = vunpack.c.l.b16 %v503
        %v930 = vunpack.c.h.b16 %v503
        %v931 = vunpack.c.l.b16 %v504
        %v932 = vunpack.c.h.b16 %v504
        %v933 = vunpack.c.l.b16 %v505
        %v934 = vunpack.c.h.b16 %v505
        %v935 = vunpack.c.l.b16 %v506
        %v936 = vunpack.c.h.b16 %v506
        %v937 = vunpack.c.l.b16 %v507
        %v938 = vunpack.c.h.b16 %v507
        %v939 = vunpack.c.l.b16 %v508
        %v940 = vunpack.c.h.b16 %v508
        %v941 = vunpack.c.l.b16 %v509
        %v942 = vunpack.c.h.b16 %v509
        %v943 = vunpack.c.l.b16 %v510
        %v944 = vunpack.c.h.b16 %v510
        %v945 = vunpack.c.l.b16 %v511
        %v946 = vunpack.c.h.b16 %v511
        %v947 = vunpack.c.l.b16 %v512
        %v948 = vunpack.c.h.b16 %v512
        %v949 = vunpack.c.l.b16 %v513
        %v950 = vunpack.c.h.b16 %v513
        %v951 = vunpack.c.l.b16 %v514
        %v952 = vunpack.c.h.b16 %v514
        %v953 = vunpack.c.l.b16 %v515
        %v954 = vunpack.c.h.b16 %v515
        %v955 = vunpack.c.l.b16 %v516
        %v956 = vunpack.c.h.b16 %v516
        %v957 = vunpack.c.l.b16 %v517
        %v958 = vunpack.c.h.b16 %v517
        %v959 = vunpack.c.l.b16 %v518
        %v960 = vunpack.c.h.b16 %v518
        %v961 = vpack.c.b16 %v713, %v705
        %v962 = vpack.c.b16 %v714, %v706
        %v963 = vpack.c.b16 %v715, %v707
        %v964 = vpack.c.b16 %v716, %v708
        %v965 = vpack.c.b16 %v717, %v709
        %v966 = vpack.c.b16 %v718, %v710
        %v967 = vpack.c.b16 %v719, %v711
        %v968 = vpack.c.b16 %v720, %v712
        %v969 = vpack.c.b16 %v729, %v721
        %v970 = vpack.c.b16 %v730, %v722
        %v971 = vpack.c.b16 %v731, %v723
        %v972 = vpack.c.b16 %v732, %v724
        %v973 = vpack.c.b16 %v733, %v725
        %v974 = vpack.c.b16 %v734, %v726
        %v975 = vpack.c.b16 %v735, %v727
        %v976 = vpack.c.b16 %v736, %v728
        %v977 = vpack.c.b16 %v745, %v737
        %v978 = vpack.c.b16 %v746, %v738
        %v979 = vpack.c.b16 %v747, %v739
        %v980 = vpack.c.b16 %v748, %v740
        %v981 = vpack.c.b16 %v749, %v741
        %v982 = vpack.c.b16 %v750, %v742
        %v983 = vpack.c.b16 %v751, %v743
        %v984 = vpack.c.b16 %v752, %v744
        %v985 = vpack.c.b16 %v761, %v753
        %v986 = vpack.c.b16 %v762, %v754
        %v987 = vpack.c.b16 %v763, %v755
        %v988 = vpack.c.b16 %v764, %v756
        %v989 = vpack.c.b16 %v765, %v757
        %v990 = vpack.c.b16 %v766, %v758
        %v991 = vpack.c.b16 %v767, %v759
        %v992 = vpack.c.b16 %v768, %v760
        %v993 = vpack.c.b16 %v777, %v769
        %v994 = vpack.c.b16 %v778, %v770
        %v995 = vpack.c.b16 %v779, %v771
        %v996 = vpack.c.b16 %v780, %v772
        %v997 = vpack.c.b16 %v781, %v773
        %v998 = vpack.c.b16 %v782, %v774
        %v999 = vpack.c.b16 %v783, %v775
        %v1000 = vpack.c.b16 %v784, %v776
        %v1001 = vpack.c.b16 %v793, %v785
        %v1002 = vpack.c.b16 %v794, %v786
        %v1003 = vpack.c.b16 %v795, %v787
        %v1004 = vpack.c.b16 %v796, %v788
        %v1005 = vpack.c.b16 %v797, %v789
        %v1006 = vpack.c.b16 %v798, %v790
        %v1007 = vpack.c.b16 %v799, %v791
        %v1008 = vpack.c.b16 %v800, %v792
        %v1009 = vpack.c.b16 %v809, %v801
        %v1010 = vpack.c.b16 %v810, %v802
        %v1011 = vpack.c.b16 %v811, %v803
        %v1012 = vpack.c.b16 %v812, %v804
        %v1013 = vpack.c.b16 %v813, %v805
        %v1014 = vpack.c.b16 %v814, %v806
        %v1015 = vpack.c.b16 %v815, %v807
        %v1016 = vpack.c.b16 %v816, %v808
        %v1017 = vpack.c.b16 %v825, %v817
        %v1018 = vpack.c.b16 %v826, %v818
        %v1019 = vpack.c.b16 %v827, %v819
        %v1020 = vpack.c.b16 %v828, %v820
        %v1021 = vpack.c.b16 %v829, %v821
        %v1022 = vpack.c.b16 %v830, %v822
        %v1023 = vpack.c.b16 %v831, %v823
        %v1024 = vpack.c.b16 %v832, %v824
        %v1025 = vpack.c.b16 %v841, %v833
        %v1026 = vpack.c.b16 %v842, %v834
        %v1027 = vpack.c.b16 %v843, %v835
        %v1028 = vpack.c.b16 %v844, %v836
        %v1029 = vpack.c.b16 %v845, %v837
        %v1030 = vpack.c.b16 %v846, %v838
        %v1031 = vpack.c.b16 %v847, %v839
        %v1032 = vpack.c.b16 %v848, %v840
        %v1033 = vpack.c.b16 %v857, %v849
        %v1034 = vpack.c.b16 %v858, %v850
        %v1035 = vpack.c.b16 %v859, %v851
        %v1036 = vpack.c.b16 %v860, %v852
        %v1037 = vpack.c.b16 %v861, %v853
        %v1038 = vpack.c.b16 %v862, %v854
        %v1039 = vpack.c.b16 %v863, %v855
        %v1040 = vpack.c.b16 %v864, %v856
        %v1041 = vpack.c.b16 %v873, %v865
        %v1042 = vpack.c.b16 %v874, %v866
        %v1043 = vpack.c.b16 %v875, %v867
        %v1044 = vpack.c.b16 %v876, %v868
        %v1045 = vpack.c.b16 %v877, %v869
        %v1046 = vpack.c.b16 %v878, %v870
        %v1047 = vpack.c.b16 %v879, %v871
        %v1048 = vpack.c.b16 %v880, %v872
        %v1049 = vpack.c.b16 %v889, %v881
        %v1050 = vpack.c.b16 %v890, %v882
        %v1051 = vpack.c.b16 %v891, %v883
        %v1052 = vpack.c.b16 %v892, %v884
        %v1053 = vpack.c.b16 %v893, %v885
        %v1054 = vpack.c.b16 %v894, %v886
        %v1055 = vpack.c.b16 %v895, %v887
        %v1056 = vpack.c.b16 %v896, %v888
        %v1057 = vpack.c.b16 %v905, %v897
        %v1058 = vpack.c.b16 %v906, %v898
        %v1059 = vpack.c.b16 %v907, %v899
        %v1060 = vpack.c.b16 %v908, %v900
        %v1061 = vpack.c.b16 %v909, %v901
        %v1062 = vpack.c.b16 %v910, %v902
        %v1063 = vpack.c.b16 %v911, %v903
        %v1064 = vpack.c.b16 %v912, %v904
        %v1065 = vpack.c.b16 %v921, %v913
        %v1066 = vpack.c.b16 %v922, %v914
        %v1067 = vpack.c.b16 %v923, %v915
        %v1068 = vpack.c.b16 %v924, %v916
        %v1069 = vpack.c.b16 %v925, %v917
        %v1070 = vpack.c.b16 %v926, %v918
        %v1071 = vpack.c.b16 %v927, %v919
        %v1072 = vpack.c.b16 %v928, %v920
        %v1073 = vpack.c.b16 %v937, %v929
        %v1074 = vpack.c.b16 %v938, %v930
        %v1075 = vpack.c.b16 %v939, %v931
        %v1076 = vpack.c.b16 %v940, %v932
        %v1077 = vpack.c.b16 %v941, %v933
        %v1078 = vpack.c.b16 %v942, %v934
        %v1079 = vpack.c.b16 %v943, %v935
        %v1080 = vpack.c.b16 %v944, %v936
        %v1081 = vpack.c.b16 %v953, %v945
        %v1082 = vpack.c.b16 %v954, %v946
        %v1083 = vpack.c.b16 %v955, %v947
        %v1084 = vpack.c.b16 %v956, %v948
        %v1085 = vpack.c.b16 %v957, %v949
        %v1086 = vpack.c.b16 %v958, %v950
        %v1087 = vpack.c.b16 %v959, %v951
        %v1088 = vpack.c.b16 %v960, %v952
        %1217 = vmatpush.bf16.msra.mxu0 %v1017
        %1218 = vmatpush.bf16.msra.mxu0 %v1009
        %1219 = vmatpush.bf16.msra.mxu0 %v1001
        %1220 = vmatpush.bf16.msra.mxu0 %v993
        %1221 = vmatpush.bf16.msra.mxu0 %v985
        %1222 = vmatpush.bf16.msra.mxu0 %v977
        %1223 = vmatpush.bf16.msra.mxu0 %v969
        %1224 = vmatpush.bf16.msra.mxu0 %v961
        %1225 = vmatmul.bf16.gmra.mxu0 %v561
        %v1226 = vpop.f32.mrf.mxu0
        %v1227 = vadd.f32 %v521, %v1226
        %v1228 = vpop.f32.mrf.mxu0
        %v1229 = vadd.f32 %v521, %v1228
        %1230 = vmatmul.bf16.gmra.mxu0 %v563
        %v1231 = vpop.f32.mrf.mxu0
        %v1232 = vadd.f32 %v521, %v1231
        %v1233 = vpop.f32.mrf.mxu0
        %v1234 = vadd.f32 %v521, %v1233
        %1235 = vmatmul.bf16.gmra.mxu0 %v565
        %v1236 = vpop.f32.mrf.mxu0
        %v1237 = vadd.f32 %v521, %v1236
        %v1238 = vpop.f32.mrf.mxu0
        %v1239 = vadd.f32 %v521, %v1238
        %1240 = vmatmul.bf16.gmra.mxu0 %v567
        %v1241 = vpop.f32.mrf.mxu0
        %v1242 = vadd.f32 %v521, %v1241
        %v1243 = vpop.f32.mrf.mxu0
        %v1244 = vadd.f32 %v521, %v1243
        %1245 = vdwg.mxu0
        %1246 = vmatpush.bf16.msra.mxu0 %v1081
        %1247 = vmatpush.bf16.msra.mxu0 %v1073
        %1248 = vmatpush.bf16.msra.mxu0 %v1065
        %1249 = vmatpush.bf16.msra.mxu0 %v1057
        %1250 = vmatpush.bf16.msra.mxu0 %v1049
        %1251 = vmatpush.bf16.msra.mxu0 %v1041
        %1252 = vmatpush.bf16.msra.mxu0 %v1033
        %1253 = vmatpush.bf16.msra.mxu0 %v1025
        %1254 = vmatmul.bf16.gmra.mxu0 %v562
        %v1255 = vpop.f32.mrf.mxu0
        %v1256 = vadd.f32 %v1227, %v1255
        %v1257 = vpop.f32.mrf.mxu0
        %v1258 = vadd.f32 %v1229, %v1257
        %1259 = vmatmul.bf16.gmra.mxu0 %v564
        %v1260 = vpop.f32.mrf.mxu0
        %v1261 = vadd.f32 %v1232, %v1260
        %v1262 = vpop.f32.mrf.mxu0
        %v1263 = vadd.f32 %v1234, %v1262
        %1264 = vmatmul.bf16.gmra.mxu0 %v566
        %v1265 = vpop.f32.mrf.mxu0
        %v1266 = vadd.f32 %v1237, %v1265
        %v1267 = vpop.f32.mrf.mxu0
        %v1268 = vadd.f32 %v1239, %v1267
        %1269 = vmatmul.bf16.gmra.mxu0 %v568
        %v1270 = vpop.f32.mrf.mxu0
        %v1271 = vadd.f32 %v1242, %v1270
        %v1272 = vpop.f32.mrf.mxu0
        %v1273 = vadd.f32 %v1244, %v1272
        %1274 = vdwg.mxu0
        %1275 = vmatpush.bf16.msra.mxu0 %v1018
        %1276 = vmatpush.bf16.msra.mxu0 %v1010
        %1277 = vmatpush.bf16.msra.mxu0 %v1002
        %1278 = vmatpush.bf16.msra.mxu0 %v994
        %1279 = vmatpush.bf16.msra.mxu0 %v986
        %1280 = vmatpush.bf16.msra.mxu0 %v978
        %1281 = vmatpush.bf16.msra.mxu0 %v970
        %1282 = vmatpush.bf16.msra.mxu0 %v962
        %1283 = vmatmul.bf16.gmra.mxu0 %v561
        %v1284 = vpop.f32.mrf.mxu0
        %v1285 = vadd.f32 %v522, %v1284
        %v1286 = vpop.f32.mrf.mxu0
        %v1287 = vadd.f32 %v522, %v1286
        %1288 = vmatmul.bf16.gmra.mxu0 %v563
        %v1289 = vpop.f32.mrf.mxu0
        %v1290 = vadd.f32 %v522, %v1289
        %v1291 = vpop.f32.mrf.mxu0
        %v1292 = vadd.f32 %v522, %v1291
        %1293 = vmatmul.bf16.gmra.mxu0 %v565
        %v1294 = vpop.f32.mrf.mxu0
        %v1295 = vadd.f32 %v522, %v1294
        %v1296 = vpop.f32.mrf.mxu0
        %v1297 = vadd.f32 %v522, %v1296
        %1298 = vmatmul.bf16.gmra.mxu0 %v567
        %v1299 = vpop.f32.mrf.mxu0
        %v1300 = vadd.f32 %v522, %v1299
        %v1301 = vpop.f32.mrf.mxu0
        %v1302 = vadd.f32 %v522, %v1301
        %1303 = vdwg.mxu0
        %1304 = vmatpush.bf16.msra.mxu0 %v1082
        %1305 = vmatpush.bf16.msra.mxu0 %v1074
        %1306 = vmatpush.bf16.msra.mxu0 %v1066
        %1307 = vmatpush.bf16.msra.mxu0 %v1058
        %1308 = vmatpush.bf16.msra.mxu0 %v1050
        %1309 = vmatpush.bf16.msra.mxu0 %v1042
        %1310 = vmatpush.bf16.msra.mxu0 %v1034
        %1311 = vmatpush.bf16.msra.mxu0 %v1026
        %1312 = vmatmul.bf16.gmra.mxu0 %v562
        %v1313 = vpop.f32.mrf.mxu0
        %v1314 = vadd.f32 %v1285, %v1313
        %v1315 = vpop.f32.mrf.mxu0
        %v1316 = vadd.f32 %v1287, %v1315
        %1317 = vmatmul.bf16.gmra.mxu0 %v564
        %v1318 = vpop.f32.mrf.mxu0
        %v1319 = vadd.f32 %v1290, %v1318
        %v1320 = vpop.f32.mrf.mxu0
        %v1321 = vadd.f32 %v1292, %v1320
        %1322 = vmatmul.bf16.gmra.mxu0 %v566
        %v1323 = vpop.f32.mrf.mxu0
        %v1324 = vadd.f32 %v1295, %v1323
        %v1325 = vpop.f32.mrf.mxu0
        %v1326 = vadd.f32 %v1297, %v1325
        %1327 = vmatmul.bf16.gmra.mxu0 %v568
        %v1328 = vpop.f32.mrf.mxu0
        %v1329 = vadd.f32 %v1300, %v1328
        %v1330 = vpop.f32.mrf.mxu0
        %v1331 = vadd.f32 %v1302, %v1330
        %1332 = vdwg.mxu0
        %1333 = vmatpush.bf16.msra.mxu0 %v1019
        %1334 = vmatpush.bf16.msra.mxu0 %v1011
        %1335 = vmatpush.bf16.msra.mxu0 %v1003
        %1336 = vmatpush.bf16.msra.mxu0 %v995
        %1337 = vmatpush.bf16.msra.mxu0 %v987
        %1338 = vmatpush.bf16.msra.mxu0 %v979
        %1339 = vmatpush.bf16.msra.mxu0 %v971
        %1340 = vmatpush.bf16.msra.mxu0 %v963
        %1341 = vmatmul.bf16.gmra.mxu0 %v561
        %v1342 = vpop.f32.mrf.mxu0
        %v1343 = vadd.f32 %v523, %v1342
        %v1344 = vpop.f32.mrf.mxu0
        %v1345 = vadd.f32 %v523, %v1344
        %1346 = vmatmul.bf16.gmra.mxu0 %v563
        %v1347 = vpop.f32.mrf.mxu0
        %v1348 = vadd.f32 %v523, %v1347
        %v1349 = vpop.f32.mrf.mxu0
        %v1350 = vadd.f32 %v523, %v1349
        %1351 = vmatmul.bf16.gmra.mxu0 %v565
        %v1352 = vpop.f32.mrf.mxu0
        %v1353 = vadd.f32 %v523, %v1352
        %v1354 = vpop.f32.mrf.mxu0
        %v1355 = vadd.f32 %v523, %v1354
        %1356 = vmatmul.bf16.gmra.mxu0 %v567
        %v1357 = vpop.f32.mrf.mxu0
        %v1358 = vadd.f32 %v523, %v1357
        %v1359 = vpop.f32.mrf.mxu0
        %v1360 = vadd.f32 %v523, %v1359
        %1361 = vdwg.mxu0
        %1362 = vmatpush.bf16.msra.mxu0 %v1083
        %1363 = vmatpush.bf16.msra.mxu0 %v1075
        %1364 = vmatpush.bf16.msra.mxu0 %v1067
        %1365 = vmatpush.bf16.msra.mxu0 %v1059
        %1366 = vmatpush.bf16.msra.mxu0 %v1051
        %1367 = vmatpush.bf16.msra.mxu0 %v1043
        %1368 = vmatpush.bf16.msra.mxu0 %v1035
        %1369 = vmatpush.bf16.msra.mxu0 %v1027
        %1370 = vmatmul.bf16.gmra.mxu0 %v562
        %v1371 = vpop.f32.mrf.mxu0
        %v1372 = vadd.f32 %v1343, %v1371
        %v1373 = vpop.f32.mrf.mxu0
        %v1374 = vadd.f32 %v1345, %v1373
        %1375 = vmatmul.bf16.gmra.mxu0 %v564
        %v1376 = vpop.f32.mrf.mxu0
        %v1377 = vadd.f32 %v1348, %v1376
        %v1378 = vpop.f32.mrf.mxu0
        %v1379 = vadd.f32 %v1350, %v1378
        %1380 = vmatmul.bf16.gmra.mxu0 %v566
        %v1381 = vpop.f32.mrf.mxu0
        %v1382 = vadd.f32 %v1353, %v1381
        %v1383 = vpop.f32.mrf.mxu0
        %v1384 = vadd.f32 %v1355, %v1383
        %1385 = vmatmul.bf16.gmra.mxu0 %v568
        %v1386 = vpop.f32.mrf.mxu0
        %v1387 = vadd.f32 %v1358, %v1386
        %v1388 = vpop.f32.mrf.mxu0
        %v1389 = vadd.f32 %v1360, %v1388
        %1390 = vdwg.mxu0
        %1391 = vmatpush.bf16.msra.mxu0 %v1020
        %1392 = vmatpush.bf16.msra.mxu0 %v1012
        %1393 = vmatpush.bf16.msra.mxu0 %v1004
        %1394 = vmatpush.bf16.msra.mxu0 %v996
        %1395 = vmatpush.bf16.msra.mxu0 %v988
        %1396 = vmatpush.bf16.msra.mxu0 %v980
        %1397 = vmatpush.bf16.msra.mxu0 %v972
        %1398 = vmatpush.bf16.msra.mxu0 %v964
        %1399 = vmatmul.bf16.gmra.mxu0 %v561
        %v1400 = vpop.f32.mrf.mxu0
        %v1401 = vadd.f32 %v524, %v1400
        %v1402 = vpop.f32.mrf.mxu0
        %v1403 = vadd.f32 %v524, %v1402
        %1404 = vmatmul.bf16.gmra.mxu0 %v563
        %v1405 = vpop.f32.mrf.mxu0
        %v1406 = vadd.f32 %v524, %v1405
        %v1407 = vpop.f32.mrf.mxu0
        %v1408 = vadd.f32 %v524, %v1407
        %1409 = vmatmul.bf16.gmra.mxu0 %v565
        %v1410 = vpop.f32.mrf.mxu0
        %v1411 = vadd.f32 %v524, %v1410
        %v1412 = vpop.f32.mrf.mxu0
        %v1413 = vadd.f32 %v524, %v1412
        %1414 = vmatmul.bf16.gmra.mxu0 %v567
        %v1415 = vpop.f32.mrf.mxu0
        %v1416 = vadd.f32 %v524, %v1415
        %v1417 = vpop.f32.mrf.mxu0
        %v1418 = vadd.f32 %v524, %v1417
        %1419 = vdwg.mxu0
        %1420 = vmatpush.bf16.msra.mxu0 %v1084
        %1421 = vmatpush.bf16.msra.mxu0 %v1076
        %1422 = vmatpush.bf16.msra.mxu0 %v1068
        %1423 = vmatpush.bf16.msra.mxu0 %v1060
        %1424 = vmatpush.bf16.msra.mxu0 %v1052
        %1425 = vmatpush.bf16.msra.mxu0 %v1044
        %1426 = vmatpush.bf16.msra.mxu0 %v1036
        %1427 = vmatpush.bf16.msra.mxu0 %v1028
        %1428 = vmatmul.bf16.gmra.mxu0 %v562
        %v1429 = vpop.f32.mrf.mxu0
        %v1430 = vadd.f32 %v1401, %v1429
        %v1431 = vpop.f32.mrf.mxu0
        %v1432 = vadd.f32 %v1403, %v1431
        %1433 = vmatmul.bf16.gmra.mxu0 %v564
        %v1434 = vpop.f32.mrf.mxu0
        %v1435 = vadd.f32 %v1406, %v1434
        %v1436 = vpop.f32.mrf.mxu0
        %v1437 = vadd.f32 %v1408, %v1436
        %1438 = vmatmul.bf16.gmra.mxu0 %v566
        %v1439 = vpop.f32.mrf.mxu0
        %v1440 = vadd.f32 %v1411, %v1439
        %v1441 = vpop.f32.mrf.mxu0
        %v1442 = vadd.f32 %v1413, %v1441
        %1443 = vmatmul.bf16.gmra.mxu0 %v568
        %v1444 = vpop.f32.mrf.mxu0
        %v1445 = vadd.f32 %v1416, %v1444
        %v1446 = vpop.f32.mrf.mxu0
        %v1447 = vadd.f32 %v1418, %v1446
        %1448 = vdwg.mxu0
        %1449 = vmatpush.bf16.msra.mxu0 %v1021
        %1450 = vmatpush.bf16.msra.mxu0 %v1013
        %1451 = vmatpush.bf16.msra.mxu0 %v1005
        %1452 = vmatpush.bf16.msra.mxu0 %v997
        %1453 = vmatpush.bf16.msra.mxu0 %v989
        %1454 = vmatpush.bf16.msra.mxu0 %v981
        %1455 = vmatpush.bf16.msra.mxu0 %v973
        %1456 = vmatpush.bf16.msra.mxu0 %v965
        %1457 = vmatmul.bf16.gmra.mxu0 %v561
        %v1458 = vpop.f32.mrf.mxu0
        %v1459 = vadd.f32 %v525, %v1458
        %v1460 = vpop.f32.mrf.mxu0
        %v1461 = vadd.f32 %v525, %v1460
        %1462 = vmatmul.bf16.gmra.mxu0 %v563
        %v1463 = vpop.f32.mrf.mxu0
        %v1464 = vadd.f32 %v525, %v1463
        %v1465 = vpop.f32.mrf.mxu0
        %v1466 = vadd.f32 %v525, %v1465
        %1467 = vmatmul.bf16.gmra.mxu0 %v565
        %v1468 = vpop.f32.mrf.mxu0
        %v1469 = vadd.f32 %v525, %v1468
        %v1470 = vpop.f32.mrf.mxu0
        %v1471 = vadd.f32 %v525, %v1470
        %1472 = vmatmul.bf16.gmra.mxu0 %v567
        %v1473 = vpop.f32.mrf.mxu0
        %v1474 = vadd.f32 %v525, %v1473
        %v1475 = vpop.f32.mrf.mxu0
        %v1476 = vadd.f32 %v525, %v1475
        %1477 = vdwg.mxu0
        %1478 = vmatpush.bf16.msra.mxu0 %v1085
        %1479 = vmatpush.bf16.msra.mxu0 %v1077
        %1480 = vmatpush.bf16.msra.mxu0 %v1069
        %1481 = vmatpush.bf16.msra.mxu0 %v1061
        %1482 = vmatpush.bf16.msra.mxu0 %v1053
        %1483 = vmatpush.bf16.msra.mxu0 %v1045
        %1484 = vmatpush.bf16.msra.mxu0 %v1037
        %1485 = vmatpush.bf16.msra.mxu0 %v1029
        %1486 = vmatmul.bf16.gmra.mxu0 %v562
        %v1487 = vpop.f32.mrf.mxu0
        %v1488 = vadd.f32 %v1459, %v1487
        %v1489 = vpop.f32.mrf.mxu0
        %v1490 = vadd.f32 %v1461, %v1489
        %1491 = vmatmul.bf16.gmra.mxu0 %v564
        %v1492 = vpop.f32.mrf.mxu0
        %v1493 = vadd.f32 %v1464, %v1492
        %v1494 = vpop.f32.mrf.mxu0
        %v1495 = vadd.f32 %v1466, %v1494
        %1496 = vmatmul.bf16.gmra.mxu0 %v566
        %v1497 = vpop.f32.mrf.mxu0
        %v1498 = vadd.f32 %v1469, %v1497
        %v1499 = vpop.f32.mrf.mxu0
        %v1500 = vadd.f32 %v1471, %v1499
        %1501 = vmatmul.bf16.gmra.mxu0 %v568
        %v1502 = vpop.f32.mrf.mxu0
        %v1503 = vadd.f32 %v1474, %v1502
        %v1504 = vpop.f32.mrf.mxu0
        %v1505 = vadd.f32 %v1476, %v1504
        %1506 = vdwg.mxu0
        %1507 = vmatpush.bf16.msra.mxu0 %v1022
        %1508 = vmatpush.bf16.msra.mxu0 %v1014
        %1509 = vmatpush.bf16.msra.mxu0 %v1006
        %1510 = vmatpush.bf16.msra.mxu0 %v998
        %1511 = vmatpush.bf16.msra.mxu0 %v990
        %1512 = vmatpush.bf16.msra.mxu0 %v982
        %1513 = vmatpush.bf16.msra.mxu0 %v974
        %1514 = vmatpush.bf16.msra.mxu0 %v966
        %1515 = vmatmul.bf16.gmra.mxu0 %v561
        %v1516 = vpop.f32.mrf.mxu0
        %v1517 = vadd.f32 %v526, %v1516
        %v1518 = vpop.f32.mrf.mxu0
        %v1519 = vadd.f32 %v526, %v1518
        %1520 = vmatmul.bf16.gmra.mxu0 %v563
        %v1521 = vpop.f32.mrf.mxu0
        %v1522 = vadd.f32 %v526, %v1521
        %v1523 = vpop.f32.mrf.mxu0
        %v1524 = vadd.f32 %v526, %v1523
        %1525 = vmatmul.bf16.gmra.mxu0 %v565
        %v1526 = vpop.f32.mrf.mxu0
        %v1527 = vadd.f32 %v526, %v1526
        %v1528 = vpop.f32.mrf.mxu0
        %v1529 = vadd.f32 %v526, %v1528
        %1530 = vmatmul.bf16.gmra.mxu0 %v567
        %v1531 = vpop.f32.mrf.mxu0
        %v1532 = vadd.f32 %v526, %v1531
        %v1533 = vpop.f32.mrf.mxu0
        %v1534 = vadd.f32 %v526, %v1533
        %1535 = vdwg.mxu0
        %1536 = vmatpush.bf16.msra.mxu0 %v1086
        %1537 = vmatpush.bf16.msra.mxu0 %v1078
        %1538 = vmatpush.bf16.msra.mxu0 %v1070
        %1539 = vmatpush.bf16.msra.mxu0 %v1062
        %1540 = vmatpush.bf16.msra.mxu0 %v1054
        %1541 = vmatpush.bf16.msra.mxu0 %v1046
        %1542 = vmatpush.bf16.msra.mxu0 %v1038
        %1543 = vmatpush.bf16.msra.mxu0 %v1030
        %1544 = vmatmul.bf16.gmra.mxu0 %v562
        %v1545 = vpop.f32.mrf.mxu0
        %v1546 = vadd.f32 %v1517, %v1545
        %v1547 = vpop.f32.mrf.mxu0
        %v1548 = vadd.f32 %v1519, %v1547
        %1549 = vmatmul.bf16.gmra.mxu0 %v564
        %v1550 = vpop.f32.mrf.mxu0
        %v1551 = vadd.f32 %v1522, %v1550
        %v1552 = vpop.f32.mrf.mxu0
        %v1553 = vadd.f32 %v1524, %v1552
        %1554 = vmatmul.bf16.gmra.mxu0 %v566
        %v1555 = vpop.f32.mrf.mxu0
        %v1556 = vadd.f32 %v1527, %v1555
        %v1557 = vpop.f32.mrf.mxu0
        %v1558 = vadd.f32 %v1529, %v1557
        %1559 = vmatmul.bf16.gmra.mxu0 %v568
        %v1560 = vpop.f32.mrf.mxu0
        %v1561 = vadd.f32 %v1532, %v1560
        %v1562 = vpop.f32.mrf.mxu0
        %v1563 = vadd.f32 %v1534, %v1562
        %1564 = vdwg.mxu0
        %1565 = vmatpush.bf16.msra.mxu0 %v1023
        %1566 = vmatpush.bf16.msra.mxu0 %v1015
        %1567 = vmatpush.bf16.msra.mxu0 %v1007
        %1568 = vmatpush.bf16.msra.mxu0 %v999
        %1569 = vmatpush.bf16.msra.mxu0 %v991
        %1570 = vmatpush.bf16.msra.mxu0 %v983
        %1571 = vmatpush.bf16.msra.mxu0 %v975
        %1572 = vmatpush.bf16.msra.mxu0 %v967
        %1573 = vmatmul.bf16.gmra.mxu0 %v561
        %v1574 = vpop.f32.mrf.mxu0
        %v1575 = vadd.f32 %v527, %v1574
        %v1576 = vpop.f32.mrf.mxu0
        %v1577 = vadd.f32 %v527, %v1576
        %1578 = vmatmul.bf16.gmra.mxu0 %v563
        %v1579 = vpop.f32.mrf.mxu0
        %v1580 = vadd.f32 %v527, %v1579
        %v1581 = vpop.f32.mrf.mxu0
        %v1582 = vadd.f32 %v527, %v1581
        %1583 = vmatmul.bf16.gmra.mxu0 %v565
        %v1584 = vpop.f32.mrf.mxu0
        %v1585 = vadd.f32 %v527, %v1584
        %v1586 = vpop.f32.mrf.mxu0
        %v1587 = vadd.f32 %v527, %v1586
        %1588 = vmatmul.bf16.gmra.mxu0 %v567
        %v1589 = vpop.f32.mrf.mxu0
        %v1590 = vadd.f32 %v527, %v1589
        %v1591 = vpop.f32.mrf.mxu0
        %v1592 = vadd.f32 %v527, %v1591
        %1593 = vdwg.mxu0
        %1594 = vmatpush.bf16.msra.mxu0 %v1087
        %1595 = vmatpush.bf16.msra.mxu0 %v1079
        %1596 = vmatpush.bf16.msra.mxu0 %v1071
        %1597 = vmatpush.bf16.msra.mxu0 %v1063
        %1598 = vmatpush.bf16.msra.mxu0 %v1055
        %1599 = vmatpush.bf16.msra.mxu0 %v1047
        %1600 = vmatpush.bf16.msra.mxu0 %v1039
        %1601 = vmatpush.bf16.msra.mxu0 %v1031
        %1602 = vmatmul.bf16.gmra.mxu0 %v562
        %v1603 = vpop.f32.mrf.mxu0
        %v1604 = vadd.f32 %v1575, %v1603
        %v1605 = vpop.f32.mrf.mxu0
        %v1606 = vadd.f32 %v1577, %v1605
        %1607 = vmatmul.bf16.gmra.mxu0 %v564
        %v1608 = vpop.f32.mrf.mxu0
        %v1609 = vadd.f32 %v1580, %v1608
        %v1610 = vpop.f32.mrf.mxu0
        %v1611 = vadd.f32 %v1582, %v1610
        %1612 = vmatmul.bf16.gmra.mxu0 %v566
        %v1613 = vpop.f32.mrf.mxu0
        %v1614 = vadd.f32 %v1585, %v1613
        %v1615 = vpop.f32.mrf.mxu0
        %v1616 = vadd.f32 %v1587, %v1615
        %1617 = vmatmul.bf16.gmra.mxu0 %v568
        %v1618 = vpop.f32.mrf.mxu0
        %v1619 = vadd.f32 %v1590, %v1618
        %v1620 = vpop.f32.mrf.mxu0
        %v1621 = vadd.f32 %v1592, %v1620
        %1622 = vdwg.mxu0
        %1623 = vmatpush.bf16.msra.mxu0 %v1024
        %1624 = vmatpush.bf16.msra.mxu0 %v1016
        %1625 = vmatpush.bf16.msra.mxu0 %v1008
        %1626 = vmatpush.bf16.msra.mxu0 %v1000
        %1627 = vmatpush.bf16.msra.mxu0 %v992
        %1628 = vmatpush.bf16.msra.mxu0 %v984
        %1629 = vmatpush.bf16.msra.mxu0 %v976
        %1630 = vmatpush.bf16.msra.mxu0 %v968
        %1631 = vmatmul.bf16.gmra.mxu0 %v561
        %v1632 = vpop.f32.mrf.mxu0
        %v1633 = vadd.f32 %v528, %v1632
        %v1634 = vpop.f32.mrf.mxu0
        %v1635 = vadd.f32 %v528, %v1634
        %1636 = vmatmul.bf16.gmra.mxu0 %v563
        %v1637 = vpop.f32.mrf.mxu0
        %v1638 = vadd.f32 %v528, %v1637
        %v1639 = vpop.f32.mrf.mxu0
        %v1640 = vadd.f32 %v528, %v1639
        %1641 = vmatmul.bf16.gmra.mxu0 %v565
        %v1642 = vpop.f32.mrf.mxu0
        %v1643 = vadd.f32 %v528, %v1642
        %v1644 = vpop.f32.mrf.mxu0
        %v1645 = vadd.f32 %v528, %v1644
        %1646 = vmatmul.bf16.gmra.mxu0 %v567
        %v1647 = vpop.f32.mrf.mxu0
        %v1648 = vadd.f32 %v528, %v1647
        %v1649 = vpop.f32.mrf.mxu0
        %v1650 = vadd.f32 %v528, %v1649
        %1651 = vdwg.mxu0
        %1652 = vmatpush.bf16.msra.mxu0 %v1088
        %1653 = vmatpush.bf16.msra.mxu0 %v1080
        %1654 = vmatpush.bf16.msra.mxu0 %v1072
        %1655 = vmatpush.bf16.msra.mxu0 %v1064
        %1656 = vmatpush.bf16.msra.mxu0 %v1056
        %1657 = vmatpush.bf16.msra.mxu0 %v1048
        %1658 = vmatpush.bf16.msra.mxu0 %v1040
        %1659 = vmatpush.bf16.msra.mxu0 %v1032
        %1660 = vmatmul.bf16.gmra.mxu0 %v562
        %v1661 = vpop.f32.mrf.mxu0
        %v1662 = vadd.f32 %v1633, %v1661
        %v1663 = vpop.f32.mrf.mxu0
        %v1664 = vadd.f32 %v1635, %v1663
        %1665 = vmatmul.bf16.gmra.mxu0 %v564
        %v1666 = vpop.f32.mrf.mxu0
        %v1667 = vadd.f32 %v1638, %v1666
        %v1668 = vpop.f32.mrf.mxu0
        %v1669 = vadd.f32 %v1640, %v1668
        %1670 = vmatmul.bf16.gmra.mxu0 %v566
        %v1671 = vpop.f32.mrf.mxu0
        %v1672 = vadd.f32 %v1643, %v1671
        %v1673 = vpop.f32.mrf.mxu0
        %v1674 = vadd.f32 %v1645, %v1673
        %1675 = vmatmul.bf16.gmra.mxu0 %v568
        %v1676 = vpop.f32.mrf.mxu0
        %v1677 = vadd.f32 %v1648, %v1676
        %v1678 = vpop.f32.mrf.mxu0
        %v1679 = vadd.f32 %v1650, %v1678
        %1680 = vdwg.mxu0
        %v1681 = vpack.c.bf16 %v1314, %v1256
        %v1682 = vpack.c.bf16 %v1430, %v1372
        %v1683 = vpack.c.bf16 %v1546, %v1488
        %v1684 = vpack.c.bf16 %v1662, %v1604
        %v1685 = vpack.c.bf16 %v1316, %v1258
        %v1686 = vpack.c.bf16 %v1432, %v1374
        %v1687 = vpack.c.bf16 %v1548, %v1490
        %v1688 = vpack.c.bf16 %v1664, %v1606
        %v1689 = vpack.c.bf16 %v1319, %v1261
        %v1690 = vpack.c.bf16 %v1435, %v1377
        %v1691 = vpack.c.bf16 %v1551, %v1493
        %v1692 = vpack.c.bf16 %v1667, %v1609
        %v1693 = vpack.c.bf16 %v1321, %v1263
        %v1694 = vpack.c.bf16 %v1437, %v1379
        %v1695 = vpack.c.bf16 %v1553, %v1495
        %v1696 = vpack.c.bf16 %v1669, %v1611
        %v1697 = vpack.c.bf16 %v1324, %v1266
        %v1698 = vpack.c.bf16 %v1440, %v1382
        %v1699 = vpack.c.bf16 %v1556, %v1498
        %v1700 = vpack.c.bf16 %v1672, %v1614
        %v1701 = vpack.c.bf16 %v1326, %v1268
        %v1702 = vpack.c.bf16 %v1442, %v1384
        %v1703 = vpack.c.bf16 %v1558, %v1500
        %v1704 = vpack.c.bf16 %v1674, %v1616
        %v1705 = vpack.c.bf16 %v1329, %v1271
        %v1706 = vpack.c.bf16 %v1445, %v1387
        %v1707 = vpack.c.bf16 %v1561, %v1503
        %v1708 = vpack.c.bf16 %v1677, %v1619
        %v1709 = vpack.c.bf16 %v1331, %v1273
        %v1710 = vpack.c.bf16 %v1447, %v1389
        %v1711 = vpack.c.bf16 %v1563, %v1505
        %v1712 = vpack.c.bf16 %v1679, %v1621
        %1713 = vst [vmem:[#allocation2] sm:$0xff] %v1681
        %1714 = vst [vmem:[#allocation2 + $0x8] sm:$0xff] %v1682
        %1715 = vst [vmem:[#allocation2 + $0x10] sm:$0xff] %v1683
        %1716 = vst [vmem:[#allocation2 + $0x18] sm:$0xff] %v1684
        %1717 = vst [vmem:[#allocation2 + $0x20] sm:$0xff] %v1685
        %1718 = vst [vmem:[#allocation2 + $0x28] sm:$0xff] %v1686
        %1719 = vst [vmem:[#allocation2 + $0x30] sm:$0xff] %v1687
        %1720 = vst [vmem:[#allocation2 + $0x38] sm:$0xff] %v1688
        %1721 = vst [vmem:[#allocation2 + $0x40] sm:$0xff] %v1689
        %1722 = vst [vmem:[#allocation2 + $0x48] sm:$0xff] %v1690
        %1723 = vst [vmem:[#allocation2 + $0x50] sm:$0xff] %v1691
        %1724 = vst [vmem:[#allocation2 + $0x58] sm:$0xff] %v1692
        %1725 = vst [vmem:[#allocation2 + $0x60] sm:$0xff] %v1693
        %1726 = vst [vmem:[#allocation2 + $0x68] sm:$0xff] %v1694
        %1727 = vst [vmem:[#allocation2 + $0x70] sm:$0xff] %v1695
        %1728 = vst [vmem:[#allocation2 + $0x78] sm:$0xff] %v1696
        %1729 = vst [vmem:[#allocation2 + $0x80] sm:$0xff] %v1697
        %1730 = vst [vmem:[#allocation2 + $0x88] sm:$0xff] %v1698
        %1731 = vst [vmem:[#allocation2 + $0x90] sm:$0xff] %v1699
        %1732 = vst [vmem:[#allocation2 + $0x98] sm:$0xff] %v1700
        %1733 = vst [vmem:[#allocation2 + $0xa0] sm:$0xff] %v1701
        %1734 = vst [vmem:[#allocation2 + $0xa8] sm:$0xff] %v1702
        %1735 = vst [vmem:[#allocation2 + $0xb0] sm:$0xff] %v1703
        %1736 = vst [vmem:[#allocation2 + $0xb8] sm:$0xff] %v1704
        %1737 = vst [vmem:[#allocation2 + $0xc0] sm:$0xff] %v1705
        %1738 = vst [vmem:[#allocation2 + $0xc8] sm:$0xff] %v1706
        %1739 = vst [vmem:[#allocation2 + $0xd0] sm:$0xff] %v1707
        %1740 = vst [vmem:[#allocation2 + $0xd8] sm:$0xff] %v1708
        %1741 = vst [vmem:[#allocation2 + $0xe0] sm:$0xff] %v1709
        %1742 = vst [vmem:[#allocation2 + $0xe8] sm:$0xff] %v1710
        %1743 = vst [vmem:[#allocation2 + $0xf0] sm:$0xff] %v1711
        %1744 = vst [vmem:[#allocation2 + $0xf8] sm:$0xff] %v1712
        %v1745 = vld [vmem:[%s297] sm:$0xff]
        %v1746 = vld [vmem:[%s297 + $0x8] sm:$0xff]
        %v1747 = vld [vmem:[%s297 + $0x10] sm:$0xff]
        %v1748 = vld [vmem:[%s297 + $0x18] sm:$0xff]
        %v1749 = vld [vmem:[%s297 + $0x20] sm:$0xff]
        %v1750 = vld [vmem:[%s297 + $0x28] sm:$0xff]
        %v1751 = vld [vmem:[%s297 + $0x30] sm:$0xff]
        %v1752 = vld [vmem:[%s297 + $0x38] sm:$0xff]
        %v1753 = vld [vmem:[%s297 + $0x40] sm:$0xff]
        %v1754 = vld [vmem:[%s297 + $0x48] sm:$0xff]
        %v1755 = vld [vmem:[%s297 + $0x50] sm:$0xff]
        %v1756 = vld [vmem:[%s297 + $0x58] sm:$0xff]
        %v1757 = vld [vmem:[%s297 + $0x60] sm:$0xff]
        %v1758 = vld [vmem:[%s297 + $0x68] sm:$0xff]
        %v1759 = vld [vmem:[%s297 + $0x70] sm:$0xff]
        %v1760 = vld [vmem:[%s297 + $0x78] sm:$0xff]
        %v1761 = vld [vmem:[%s297 + $0x80] sm:$0xff]
        %v1762 = vld [vmem:[%s297 + $0x88] sm:$0xff]
        %v1763 = vld [vmem:[%s297 + $0x90] sm:$0xff]
        %v1764 = vld [vmem:[%s297 + $0x98] sm:$0xff]
        %v1765 = vld [vmem:[%s297 + $0xa0] sm:$0xff]
        %v1766 = vld [vmem:[%s297 + $0xa8] sm:$0xff]
        %v1767 = vld [vmem:[%s297 + $0xb0] sm:$0xff]
        %v1768 = vld [vmem:[%s297 + $0xb8] sm:$0xff]
        %v1769 = vld [vmem:[%s297 + $0xc0] sm:$0xff]
        %v1770 = vld [vmem:[%s297 + $0xc8] sm:$0xff]
        %v1771 = vld [vmem:[%s297 + $0xd0] sm:$0xff]
        %v1772 = vld [vmem:[%s297 + $0xd8] sm:$0xff]
        %v1773 = vld [vmem:[%s297 + $0xe0] sm:$0xff]
        %v1774 = vld [vmem:[%s297 + $0xe8] sm:$0xff]
        %v1775 = vld [vmem:[%s297 + $0xf0] sm:$0xff]
        %v1776 = vld [vmem:[%s297 + $0xf8] sm:$0xff]
        %v1777 = vld [vmem:[%s297 + $0x100] sm:$0xff]
        %v1778 = vld [vmem:[%s297 + $0x108] sm:$0xff]
        %v1779 = vld [vmem:[%s297 + $0x110] sm:$0xff]
        %v1780 = vld [vmem:[%s297 + $0x118] sm:$0xff]
        %v1781 = vld [vmem:[%s297 + $0x120] sm:$0xff]
        %v1782 = vld [vmem:[%s297 + $0x128] sm:$0xff]
        %v1783 = vld [vmem:[%s297 + $0x130] sm:$0xff]
        %v1784 = vld [vmem:[%s297 + $0x138] sm:$0xff]
        %v1785 = vld [vmem:[%s297 + $0x140] sm:$0xff]
        %v1786 = vld [vmem:[%s297 + $0x148] sm:$0xff]
        %v1787 = vld [vmem:[%s297 + $0x150] sm:$0xff]
        %v1788 = vld [vmem:[%s297 + $0x158] sm:$0xff]
        %v1789 = vld [vmem:[%s297 + $0x160] sm:$0xff]
        %v1790 = vld [vmem:[%s297 + $0x168] sm:$0xff]
        %v1791 = vld [vmem:[%s297 + $0x170] sm:$0xff]
        %v1792 = vld [vmem:[%s297 + $0x178] sm:$0xff]
        %v1793 = vld [vmem:[%s297 + $0x180] sm:$0xff]
        %v1794 = vld [vmem:[%s297 + $0x188] sm:$0xff]
        %v1795 = vld [vmem:[%s297 + $0x190] sm:$0xff]
        %v1796 = vld [vmem:[%s297 + $0x198] sm:$0xff]
        %v1797 = vld [vmem:[%s297 + $0x1a0] sm:$0xff]
        %v1798 = vld [vmem:[%s297 + $0x1a8] sm:$0xff]
        %v1799 = vld [vmem:[%s297 + $0x1b0] sm:$0xff]
        %v1800 = vld [vmem:[%s297 + $0x1b8] sm:$0xff]
        %v1801 = vld [vmem:[%s297 + $0x1c0] sm:$0xff]
        %v1802 = vld [vmem:[%s297 + $0x1c8] sm:$0xff]
        %v1803 = vld [vmem:[%s297 + $0x1d0] sm:$0xff]
        %v1804 = vld [vmem:[%s297 + $0x1d8] sm:$0xff]
        %v1805 = vld [vmem:[%s297 + $0x1e0] sm:$0xff]
        %v1806 = vld [vmem:[%s297 + $0x1e8] sm:$0xff]
        %v1807 = vld [vmem:[%s297 + $0x1f0] sm:$0xff]
        %v1808 = vld [vmem:[%s297 + $0x1f8] sm:$0xff]
        %v1809 = vld [vmem:[%s297 + $0x200] sm:$0xff]
        %v1810 = vld [vmem:[%s297 + $0x208] sm:$0xff]
        %v1811 = vld [vmem:[%s297 + $0x210] sm:$0xff]
        %v1812 = vld [vmem:[%s297 + $0x218] sm:$0xff]
        %v1813 = vld [vmem:[%s297 + $0x220] sm:$0xff]
        %v1814 = vld [vmem:[%s297 + $0x228] sm:$0xff]
        %v1815 = vld [vmem:[%s297 + $0x230] sm:$0xff]
        %v1816 = vld [vmem:[%s297 + $0x238] sm:$0xff]
        %v1817 = vld [vmem:[%s297 + $0x240] sm:$0xff]
        %v1818 = vld [vmem:[%s297 + $0x248] sm:$0xff]
        %v1819 = vld [vmem:[%s297 + $0x250] sm:$0xff]
        %v1820 = vld [vmem:[%s297 + $0x258] sm:$0xff]
        %v1821 = vld [vmem:[%s297 + $0x260] sm:$0xff]
        %v1822 = vld [vmem:[%s297 + $0x268] sm:$0xff]
        %v1823 = vld [vmem:[%s297 + $0x270] sm:$0xff]
        %v1824 = vld [vmem:[%s297 + $0x278] sm:$0xff]
        %v1825 = vld [vmem:[%s297 + $0x280] sm:$0xff]
        %v1826 = vld [vmem:[%s297 + $0x288] sm:$0xff]
        %v1827 = vld [vmem:[%s297 + $0x290] sm:$0xff]
        %v1828 = vld [vmem:[%s297 + $0x298] sm:$0xff]
        %v1829 = vld [vmem:[%s297 + $0x2a0] sm:$0xff]
        %v1830 = vld [vmem:[%s297 + $0x2a8] sm:$0xff]
        %v1831 = vld [vmem:[%s297 + $0x2b0] sm:$0xff]
        %v1832 = vld [vmem:[%s297 + $0x2b8] sm:$0xff]
        %v1833 = vld [vmem:[%s297 + $0x2c0] sm:$0xff]
        %v1834 = vld [vmem:[%s297 + $0x2c8] sm:$0xff]
        %v1835 = vld [vmem:[%s297 + $0x2d0] sm:$0xff]
        %v1836 = vld [vmem:[%s297 + $0x2d8] sm:$0xff]
        %v1837 = vld [vmem:[%s297 + $0x2e0] sm:$0xff]
        %v1838 = vld [vmem:[%s297 + $0x2e8] sm:$0xff]
        %v1839 = vld [vmem:[%s297 + $0x2f0] sm:$0xff]
        %v1840 = vld [vmem:[%s297 + $0x2f8] sm:$0xff]
        %v1841 = vld [vmem:[%s297 + $0x300] sm:$0xff]
        %v1842 = vld [vmem:[%s297 + $0x308] sm:$0xff]
        %v1843 = vld [vmem:[%s297 + $0x310] sm:$0xff]
        %v1844 = vld [vmem:[%s297 + $0x318] sm:$0xff]
        %v1845 = vld [vmem:[%s297 + $0x320] sm:$0xff]
        %v1846 = vld [vmem:[%s297 + $0x328] sm:$0xff]
        %v1847 = vld [vmem:[%s297 + $0x330] sm:$0xff]
        %v1848 = vld [vmem:[%s297 + $0x338] sm:$0xff]
        %v1849 = vld [vmem:[%s297 + $0x340] sm:$0xff]
        %v1850 = vld [vmem:[%s297 + $0x348] sm:$0xff]
        %v1851 = vld [vmem:[%s297 + $0x350] sm:$0xff]
        %v1852 = vld [vmem:[%s297 + $0x358] sm:$0xff]
        %v1853 = vld [vmem:[%s297 + $0x360] sm:$0xff]
        %v1854 = vld [vmem:[%s297 + $0x368] sm:$0xff]
        %v1855 = vld [vmem:[%s297 + $0x370] sm:$0xff]
        %v1856 = vld [vmem:[%s297 + $0x378] sm:$0xff]
        %v1857 = vld [vmem:[%s297 + $0x380] sm:$0xff]
        %v1858 = vld [vmem:[%s297 + $0x388] sm:$0xff]
        %v1859 = vld [vmem:[%s297 + $0x390] sm:$0xff]
        %v1860 = vld [vmem:[%s297 + $0x398] sm:$0xff]
        %v1861 = vld [vmem:[%s297 + $0x3a0] sm:$0xff]
        %v1862 = vld [vmem:[%s297 + $0x3a8] sm:$0xff]
        %v1863 = vld [vmem:[%s297 + $0x3b0] sm:$0xff]
        %v1864 = vld [vmem:[%s297 + $0x3b8] sm:$0xff]
        %v1865 = vld [vmem:[%s297 + $0x3c0] sm:$0xff]
        %v1866 = vld [vmem:[%s297 + $0x3c8] sm:$0xff]
        %v1867 = vld [vmem:[%s297 + $0x3d0] sm:$0xff]
        %v1868 = vld [vmem:[%s297 + $0x3d8] sm:$0xff]
        %v1869 = vld [vmem:[%s297 + $0x3e0] sm:$0xff]
        %v1870 = vld [vmem:[%s297 + $0x3e8] sm:$0xff]
        %v1871 = vld [vmem:[%s297 + $0x3f0] sm:$0xff]
        %v1872 = vld [vmem:[%s297 + $0x3f8] sm:$0xff]
        %v1873 = vld [vmem:[#allocation2] sm:$0xff]
        %v1874 = vld [vmem:[#allocation2 + $0x8] sm:$0xff]
        %v1875 = vld [vmem:[#allocation2 + $0x10] sm:$0xff]
        %v1876 = vld [vmem:[#allocation2 + $0x18] sm:$0xff]
        %v1877 = vunpack.c.l.bf16 %v1873
        %v1878 = vunpack.c.h.bf16 %v1873
        %v1879 = vunpack.c.l.bf16 %v1874
        %v1880 = vunpack.c.h.bf16 %v1874
        %v1881 = vunpack.c.l.bf16 %v1875
        %v1882 = vunpack.c.h.bf16 %v1875
        %v1883 = vunpack.c.l.bf16 %v1876
        %v1884 = vunpack.c.h.bf16 %v1876
        %v2013 = vunpack.c.l.b16 %v1745
        %v2014 = vunpack.c.h.b16 %v1745
        %v2015 = vunpack.c.l.b16 %v1746
        %v2016 = vunpack.c.h.b16 %v1746
        %v2017 = vunpack.c.l.b16 %v1747
        %v2018 = vunpack.c.h.b16 %v1747
        %v2019 = vunpack.c.l.b16 %v1748
        %v2020 = vunpack.c.h.b16 %v1748
        %v2021 = vunpack.c.l.b16 %v1749
        %v2022 = vunpack.c.h.b16 %v1749
        %v2023 = vunpack.c.l.b16 %v1750
        %v2024 = vunpack.c.h.b16 %v1750
        %v2025 = vunpack.c.l.b16 %v1751
        %v2026 = vunpack.c.h.b16 %v1751
        %v2027 = vunpack.c.l.b16 %v1752
        %v2028 = vunpack.c.h.b16 %v1752
        %v2029 = vunpack.c.l.b16 %v1753
        %v2030 = vunpack.c.h.b16 %v1753
        %v2031 = vunpack.c.l.b16 %v1754
        %v2032 = vunpack.c.h.b16 %v1754
        %v2033 = vunpack.c.l.b16 %v1755
        %v2034 = vunpack.c.h.b16 %v1755
        %v2035 = vunpack.c.l.b16 %v1756
        %v2036 = vunpack.c.h.b16 %v1756
        %v2037 = vunpack.c.l.b16 %v1757
        %v2038 = vunpack.c.h.b16 %v1757
        %v2039 = vunpack.c.l.b16 %v1758
        %v2040 = vunpack.c.h.b16 %v1758
        %v2041 = vunpack.c.l.b16 %v1759
        %v2042 = vunpack.c.h.b16 %v1759
        %v2043 = vunpack.c.l.b16 %v1760
        %v2044 = vunpack.c.h.b16 %v1760
        %v2045 = vunpack.c.l.b16 %v1761
        %v2046 = vunpack.c.h.b16 %v1761
        %v2047 = vunpack.c.l.b16 %v1762
        %v2048 = vunpack.c.h.b16 %v1762
        %v2049 = vunpack.c.l.b16 %v1763
        %v2050 = vunpack.c.h.b16 %v1763
        %v2051 = vunpack.c.l.b16 %v1764
        %v2052 = vunpack.c.h.b16 %v1764
        %v2053 = vunpack.c.l.b16 %v1765
        %v2054 = vunpack.c.h.b16 %v1765
        %v2055 = vunpack.c.l.b16 %v1766
        %v2056 = vunpack.c.h.b16 %v1766
        %v2057 = vunpack.c.l.b16 %v1767
        %v2058 = vunpack.c.h.b16 %v1767
        %v2059 = vunpack.c.l.b16 %v1768
        %v2060 = vunpack.c.h.b16 %v1768
        %v2061 = vunpack.c.l.b16 %v1769
        %v2062 = vunpack.c.h.b16 %v1769
        %v2063 = vunpack.c.l.b16 %v1770
        %v2064 = vunpack.c.h.b16 %v1770
        %v2065 = vunpack.c.l.b16 %v1771
        %v2066 = vunpack.c.h.b16 %v1771
        %v2067 = vunpack.c.l.b16 %v1772
        %v2068 = vunpack.c.h.b16 %v1772
        %v2069 = vunpack.c.l.b16 %v1773
        %v2070 = vunpack.c.h.b16 %v1773
        %v2071 = vunpack.c.l.b16 %v1774
        %v2072 = vunpack.c.h.b16 %v1774
        %v2073 = vunpack.c.l.b16 %v1775
        %v2074 = vunpack.c.h.b16 %v1775
        %v2075 = vunpack.c.l.b16 %v1776
        %v2076 = vunpack.c.h.b16 %v1776
        %v2077 = vunpack.c.l.b16 %v1777
        %v2078 = vunpack.c.h.b16 %v1777
        %v2079 = vunpack.c.l.b16 %v1778
        %v2080 = vunpack.c.h.b16 %v1778
        %v2081 = vunpack.c.l.b16 %v1779
        %v2082 = vunpack.c.h.b16 %v1779
        %v2083 = vunpack.c.l.b16 %v1780
        %v2084 = vunpack.c.h.b16 %v1780
        %v2085 = vunpack.c.l.b16 %v1781
        %v2086 = vunpack.c.h.b16 %v1781
        %v2087 = vunpack.c.l.b16 %v1782
        %v2088 = vunpack.c.h.b16 %v1782
        %v2089 = vunpack.c.l.b16 %v1783
        %v2090 = vunpack.c.h.b16 %v1783
        %v2091 = vunpack.c.l.b16 %v1784
        %v2092 = vunpack.c.h.b16 %v1784
        %v2093 = vunpack.c.l.b16 %v1785
        %v2094 = vunpack.c.h.b16 %v1785
        %v2095 = vunpack.c.l.b16 %v1786
        %v2096 = vunpack.c.h.b16 %v1786
        %v2097 = vunpack.c.l.b16 %v1787
        %v2098 = vunpack.c.h.b16 %v1787
        %v2099 = vunpack.c.l.b16 %v1788
        %v2100 = vunpack.c.h.b16 %v1788
        %v2101 = vunpack.c.l.b16 %v1789
        %v2102 = vunpack.c.h.b16 %v1789
        %v2103 = vunpack.c.l.b16 %v1790
        %v2104 = vunpack.c.h.b16 %v1790
        %v2105 = vunpack.c.l.b16 %v1791
        %v2106 = vunpack.c.h.b16 %v1791
        %v2107 = vunpack.c.l.b16 %v1792
        %v2108 = vunpack.c.h.b16 %v1792
        %v2109 = vunpack.c.l.b16 %v1793
        %v2110 = vunpack.c.h.b16 %v1793
        %v2111 = vunpack.c.l.b16 %v1794
        %v2112 = vunpack.c.h.b16 %v1794
        %v2113 = vunpack.c.l.b16 %v1795
        %v2114 = vunpack.c.h.b16 %v1795
        %v2115 = vunpack.c.l.b16 %v1796
        %v2116 = vunpack.c.h.b16 %v1796
        %v2117 = vunpack.c.l.b16 %v1797
        %v2118 = vunpack.c.h.b16 %v1797
        %v2119 = vunpack.c.l.b16 %v1798
        %v2120 = vunpack.c.h.b16 %v1798
        %v2121 = vunpack.c.l.b16 %v1799
        %v2122 = vunpack.c.h.b16 %v1799
        %v2123 = vunpack.c.l.b16 %v1800
        %v2124 = vunpack.c.h.b16 %v1800
        %v2125 = vunpack.c.l.b16 %v1801
        %v2126 = vunpack.c.h.b16 %v1801
        %v2127 = vunpack.c.l.b16 %v1802
        %v2128 = vunpack.c.h.b16 %v1802
        %v2129 = vunpack.c.l.b16 %v1803
        %v2130 = vunpack.c.h.b16 %v1803
        %v2131 = vunpack.c.l.b16 %v1804
        %v2132 = vunpack.c.h.b16 %v1804
        %v2133 = vunpack.c.l.b16 %v1805
        %v2134 = vunpack.c.h.b16 %v1805
        %v2135 = vunpack.c.l.b16 %v1806
        %v2136 = vunpack.c.h.b16 %v1806
        %v2137 = vunpack.c.l.b16 %v1807
        %v2138 = vunpack.c.h.b16 %v1807
        %v2139 = vunpack.c.l.b16 %v1808
        %v2140 = vunpack.c.h.b16 %v1808
        %v2141 = vunpack.c.l.b16 %v1809
        %v2142 = vunpack.c.h.b16 %v1809
        %v2143 = vunpack.c.l.b16 %v1810
        %v2144 = vunpack.c.h.b16 %v1810
        %v2145 = vunpack.c.l.b16 %v1811
        %v2146 = vunpack.c.h.b16 %v1811
        %v2147 = vunpack.c.l.b16 %v1812
        %v2148 = vunpack.c.h.b16 %v1812
        %v2149 = vunpack.c.l.b16 %v1813
        %v2150 = vunpack.c.h.b16 %v1813
        %v2151 = vunpack.c.l.b16 %v1814
        %v2152 = vunpack.c.h.b16 %v1814
        %v2153 = vunpack.c.l.b16 %v1815
        %v2154 = vunpack.c.h.b16 %v1815
        %v2155 = vunpack.c.l.b16 %v1816
        %v2156 = vunpack.c.h.b16 %v1816
        %v2157 = vunpack.c.l.b16 %v1817
        %v2158 = vunpack.c.h.b16 %v1817
        %v2159 = vunpack.c.l.b16 %v1818
        %v2160 = vunpack.c.h.b16 %v1818
        %v2161 = vunpack.c.l.b16 %v1819
        %v2162 = vunpack.c.h.b16 %v1819
        %v2163 = vunpack.c.l.b16 %v1820
        %v2164 = vunpack.c.h.b16 %v1820
        %v2165 = vunpack.c.l.b16 %v1821
        %v2166 = vunpack.c.h.b16 %v1821
        %v2167 = vunpack.c.l.b16 %v1822
        %v2168 = vunpack.c.h.b16 %v1822
        %v2169 = vunpack.c.l.b16 %v1823
        %v2170 = vunpack.c.h.b16 %v1823
        %v2171 = vunpack.c.l.b16 %v1824
        %v2172 = vunpack.c.h.b16 %v1824
        %v2173 = vunpack.c.l.b16 %v1825
        %v2174 = vunpack.c.h.b16 %v1825
        %v2175 = vunpack.c.l.b16 %v1826
        %v2176 = vunpack.c.h.b16 %v1826
        %v2177 = vunpack.c.l.b16 %v1827
        %v2178 = vunpack.c.h.b16 %v1827
        %v2179 = vunpack.c.l.b16 %v1828
        %v2180 = vunpack.c.h.b16 %v1828
        %v2181 = vunpack.c.l.b16 %v1829
        %v2182 = vunpack.c.h.b16 %v1829
        %v2183 = vunpack.c.l.b16 %v1830
        %v2184 = vunpack.c.h.b16 %v1830
        %v2185 = vunpack.c.l.b16 %v1831
        %v2186 = vunpack.c.h.b16 %v1831
        %v2187 = vunpack.c.l.b16 %v1832
        %v2188 = vunpack.c.h.b16 %v1832
        %v2189 = vunpack.c.l.b16 %v1833
        %v2190 = vunpack.c.h.b16 %v1833
        %v2191 = vunpack.c.l.b16 %v1834
        %v2192 = vunpack.c.h.b16 %v1834
        %v2193 = vunpack.c.l.b16 %v1835
        %v2194 = vunpack.c.h.b16 %v1835
        %v2195 = vunpack.c.l.b16 %v1836
        %v2196 = vunpack.c.h.b16 %v1836
        %v2197 = vunpack.c.l.b16 %v1837
        %v2198 = vunpack.c.h.b16 %v1837
        %v2199 = vunpack.c.l.b16 %v1838
        %v2200 = vunpack.c.h.b16 %v1838
        %v2201 = vunpack.c.l.b16 %v1839
        %v2202 = vunpack.c.h.b16 %v1839
        %v2203 = vunpack.c.l.b16 %v1840
        %v2204 = vunpack.c.h.b16 %v1840
        %v2205 = vunpack.c.l.b16 %v1841
        %v2206 = vunpack.c.h.b16 %v1841
        %v2207 = vunpack.c.l.b16 %v1842
        %v2208 = vunpack.c.h.b16 %v1842
        %v2209 = vunpack.c.l.b16 %v1843
        %v2210 = vunpack.c.h.b16 %v1843
        %v2211 = vunpack.c.l.b16 %v1844
        %v2212 = vunpack.c.h.b16 %v1844
        %v2213 = vunpack.c.l.b16 %v1845
        %v2214 = vunpack.c.h.b16 %v1845
        %v2215 = vunpack.c.l.b16 %v1846
        %v2216 = vunpack.c.h.b16 %v1846
        %v2217 = vunpack.c.l.b16 %v1847
        %v2218 = vunpack.c.h.b16 %v1847
        %v2219 = vunpack.c.l.b16 %v1848
        %v2220 = vunpack.c.h.b16 %v1848
        %v2221 = vunpack.c.l.b16 %v1849
        %v2222 = vunpack.c.h.b16 %v1849
        %v2223 = vunpack.c.l.b16 %v1850
        %v2224 = vunpack.c.h.b16 %v1850
        %v2225 = vunpack.c.l.b16 %v1851
        %v2226 = vunpack.c.h.b16 %v1851
        %v2227 = vunpack.c.l.b16 %v1852
        %v2228 = vunpack.c.h.b16 %v1852
        %v2229 = vunpack.c.l.b16 %v1853
        %v2230 = vunpack.c.h.b16 %v1853
        %v2231 = vunpack.c.l.b16 %v1854
        %v2232 = vunpack.c.h.b16 %v1854
        %v2233 = vunpack.c.l.b16 %v1855
        %v2234 = vunpack.c.h.b16 %v1855
        %v2235 = vunpack.c.l.b16 %v1856
        %v2236 = vunpack.c.h.b16 %v1856
        %v2237 = vunpack.c.l.b16 %v1857
        %v2238 = vunpack.c.h.b16 %v1857
        %v2239 = vunpack.c.l.b16 %v1858
        %v2240 = vunpack.c.h.b16 %v1858
        %v2241 = vunpack.c.l.b16 %v1859
        %v2242 = vunpack.c.h.b16 %v1859
        %v2243 = vunpack.c.l.b16 %v1860
        %v2244 = vunpack.c.h.b16 %v1860
        %v2245 = vunpack.c.l.b16 %v1861
        %v2246 = vunpack.c.h.b16 %v1861
        %v2247 = vunpack.c.l.b16 %v1862
        %v2248 = vunpack.c.h.b16 %v1862
        %v2249 = vunpack.c.l.b16 %v1863
        %v2250 = vunpack.c.h.b16 %v1863
        %v2251 = vunpack.c.l.b16 %v1864
        %v2252 = vunpack.c.h.b16 %v1864
        %v2253 = vunpack.c.l.b16 %v1865
        %v2254 = vunpack.c.h.b16 %v1865
        %v2255 = vunpack.c.l.b16 %v1866
        %v2256 = vunpack.c.h.b16 %v1866
        %v2257 = vunpack.c.l.b16 %v1867
        %v2258 = vunpack.c.h.b16 %v1867
        %v2259 = vunpack.c.l.b16 %v1868
        %v2260 = vunpack.c.h.b16 %v1868
        %v2261 = vunpack.c.l.b16 %v1869
        %v2262 = vunpack.c.h.b16 %v1869
        %v2263 = vunpack.c.l.b16 %v1870
        %v2264 = vunpack.c.h.b16 %v1870
        %v2265 = vunpack.c.l.b16 %v1871
        %v2266 = vunpack.c.h.b16 %v1871
        %v2267 = vunpack.c.l.b16 %v1872
        %v2268 = vunpack.c.h.b16 %v1872
        %v2269 = vpack.c.b16 %v2021, %v2013
        %v2270 = vpack.c.b16 %v2022, %v2014
        %v2271 = vpack.c.b16 %v2023, %v2015
        %v2272 = vpack.c.b16 %v2024, %v2016
        %v2273 = vpack.c.b16 %v2025, %v2017
        %v2274 = vpack.c.b16 %v2026, %v2018
        %v2275 = vpack.c.b16 %v2027, %v2019
        %v2276 = vpack.c.b16 %v2028, %v2020
        %v2277 = vpack.c.b16 %v2037, %v2029
        %v2278 = vpack.c.b16 %v2038, %v2030
        %v2279 = vpack.c.b16 %v2039, %v2031
        %v2280 = vpack.c.b16 %v2040, %v2032
        %v2281 = vpack.c.b16 %v2041, %v2033
        %v2282 = vpack.c.b16 %v2042, %v2034
        %v2283 = vpack.c.b16 %v2043, %v2035
        %v2284 = vpack.c.b16 %v2044, %v2036
        %v2285 = vpack.c.b16 %v2053, %v2045
        %v2286 = vpack.c.b16 %v2054, %v2046
        %v2287 = vpack.c.b16 %v2055, %v2047
        %v2288 = vpack.c.b16 %v2056, %v2048
        %v2289 = vpack.c.b16 %v2057, %v2049
        %v2290 = vpack.c.b16 %v2058, %v2050
        %v2291 = vpack.c.b16 %v2059, %v2051
        %v2292 = vpack.c.b16 %v2060, %v2052
        %v2293 = vpack.c.b16 %v2069, %v2061
        %v2294 = vpack.c.b16 %v2070, %v2062
        %v2295 = vpack.c.b16 %v2071, %v2063
        %v2296 = vpack.c.b16 %v2072, %v2064
        %v2297 = vpack.c.b16 %v2073, %v2065
        %v2298 = vpack.c.b16 %v2074, %v2066
        %v2299 = vpack.c.b16 %v2075, %v2067
        %v2300 = vpack.c.b16 %v2076, %v2068
        %v2301 = vpack.c.b16 %v2085, %v2077
        %v2302 = vpack.c.b16 %v2086, %v2078
        %v2303 = vpack.c.b16 %v2087, %v2079
        %v2304 = vpack.c.b16 %v2088, %v2080
        %v2305 = vpack.c.b16 %v2089, %v2081
        %v2306 = vpack.c.b16 %v2090, %v2082
        %v2307 = vpack.c.b16 %v2091, %v2083
        %v2308 = vpack.c.b16 %v2092, %v2084
        %v2309 = vpack.c.b16 %v2101, %v2093
        %v2310 = vpack.c.b16 %v2102, %v2094
        %v2311 = vpack.c.b16 %v2103, %v2095
        %v2312 = vpack.c.b16 %v2104, %v2096
        %v2313 = vpack.c.b16 %v2105, %v2097
        %v2314 = vpack.c.b16 %v2106, %v2098
        %v2315 = vpack.c.b16 %v2107, %v2099
        %v2316 = vpack.c.b16 %v2108, %v2100
        %v2317 = vpack.c.b16 %v2117, %v2109
        %v2318 = vpack.c.b16 %v2118, %v2110
        %v2319 = vpack.c.b16 %v2119, %v2111
        %v2320 = vpack.c.b16 %v2120, %v2112
        %v2321 = vpack.c.b16 %v2121, %v2113
        %v2322 = vpack.c.b16 %v2122, %v2114
        %v2323 = vpack.c.b16 %v2123, %v2115
        %v2324 = vpack.c.b16 %v2124, %v2116
        %v2325 = vpack.c.b16 %v2133, %v2125
        %v2326 = vpack.c.b16 %v2134, %v2126
        %v2327 = vpack.c.b16 %v2135, %v2127
        %v2328 = vpack.c.b16 %v2136, %v2128
        %v2329 = vpack.c.b16 %v2137, %v2129
        %v2330 = vpack.c.b16 %v2138, %v2130
        %v2331 = vpack.c.b16 %v2139, %v2131
        %v2332 = vpack.c.b16 %v2140, %v2132
        %v2333 = vpack.c.b16 %v2149, %v2141
        %v2334 = vpack.c.b16 %v2150, %v2142
        %v2335 = vpack.c.b16 %v2151, %v2143
        %v2336 = vpack.c.b16 %v2152, %v2144
        %v2337 = vpack.c.b16 %v2153, %v2145
        %v2338 = vpack.c.b16 %v2154, %v2146
        %v2339 = vpack.c.b16 %v2155, %v2147
        %v2340 = vpack.c.b16 %v2156, %v2148
        %v2341 = vpack.c.b16 %v2165, %v2157
        %v2342 = vpack.c.b16 %v2166, %v2158
        %v2343 = vpack.c.b16 %v2167, %v2159
        %v2344 = vpack.c.b16 %v2168, %v2160
        %v2345 = vpack.c.b16 %v2169, %v2161
        %v2346 = vpack.c.b16 %v2170, %v2162
        %v2347 = vpack.c.b16 %v2171, %v2163
        %v2348 = vpack.c.b16 %v2172, %v2164
        %v2349 = vpack.c.b16 %v2181, %v2173
        %v2350 = vpack.c.b16 %v2182, %v2174
        %v2351 = vpack.c.b16 %v2183, %v2175
        %v2352 = vpack.c.b16 %v2184, %v2176
        %v2353 = vpack.c.b16 %v2185, %v2177
        %v2354 = vpack.c.b16 %v2186, %v2178
        %v2355 = vpack.c.b16 %v2187, %v2179
        %v2356 = vpack.c.b16 %v2188, %v2180
        %v2357 = vpack.c.b16 %v2197, %v2189
        %v2358 = vpack.c.b16 %v2198, %v2190
        %v2359 = vpack.c.b16 %v2199, %v2191
        %v2360 = vpack.c.b16 %v2200, %v2192
        %v2361 = vpack.c.b16 %v2201, %v2193
        %v2362 = vpack.c.b16 %v2202, %v2194
        %v2363 = vpack.c.b16 %v2203, %v2195
        %v2364 = vpack.c.b16 %v2204, %v2196
        %v2365 = vpack.c.b16 %v2213, %v2205
        %v2366 = vpack.c.b16 %v2214, %v2206
        %v2367 = vpack.c.b16 %v2215, %v2207
        %v2368 = vpack.c.b16 %v2216, %v2208
        %v2369 = vpack.c.b16 %v2217, %v2209
        %v2370 = vpack.c.b16 %v2218, %v2210
        %v2371 = vpack.c.b16 %v2219, %v2211
        %v2372 = vpack.c.b16 %v2220, %v2212
        %v2373 = vpack.c.b16 %v2229, %v2221
        %v2374 = vpack.c.b16 %v2230, %v2222
        %v2375 = vpack.c.b16 %v2231, %v2223
        %v2376 = vpack.c.b16 %v2232, %v2224
        %v2377 = vpack.c.b16 %v2233, %v2225
        %v2378 = vpack.c.b16 %v2234, %v2226
        %v2379 = vpack.c.b16 %v2235, %v2227
        %v2380 = vpack.c.b16 %v2236, %v2228
        %v2381 = vpack.c.b16 %v2245, %v2237
        %v2382 = vpack.c.b16 %v2246, %v2238
        %v2383 = vpack.c.b16 %v2247, %v2239
        %v2384 = vpack.c.b16 %v2248, %v2240
        %v2385 = vpack.c.b16 %v2249, %v2241
        %v2386 = vpack.c.b16 %v2250, %v2242
        %v2387 = vpack.c.b16 %v2251, %v2243
        %v2388 = vpack.c.b16 %v2252, %v2244
        %v2389 = vpack.c.b16 %v2261, %v2253
        %v2390 = vpack.c.b16 %v2262, %v2254
        %v2391 = vpack.c.b16 %v2263, %v2255
        %v2392 = vpack.c.b16 %v2264, %v2256
        %v2393 = vpack.c.b16 %v2265, %v2257
        %v2394 = vpack.c.b16 %v2266, %v2258
        %v2395 = vpack.c.b16 %v2267, %v2259
        %v2396 = vpack.c.b16 %v2268, %v2260
        %2525 = vmatpush.bf16.msra.mxu0 %v2325
        %2526 = vmatpush.bf16.msra.mxu0 %v2317
        %2527 = vmatpush.bf16.msra.mxu0 %v2309
        %2528 = vmatpush.bf16.msra.mxu0 %v2301
        %2529 = vmatpush.bf16.msra.mxu0 %v2293
        %2530 = vmatpush.bf16.msra.mxu0 %v2285
        %2531 = vmatpush.bf16.msra.mxu0 %v2277
        %2532 = vmatpush.bf16.msra.mxu0 %v2269
        %2533 = vmatmul.bf16.gmra.mxu0 0
        %v2534 = vpop.f32.mrf.mxu0
        %v2535 = vadd.f32 0.0, %v2534
        %v2536 = vpop.f32.mrf.mxu0
        %2537 = vdwg.mxu0
        %2538 = vmatpush.bf16.msra.mxu0 %v2389
        %2539 = vmatpush.bf16.msra.mxu0 %v2381
        %2540 = vmatpush.bf16.msra.mxu0 %v2373
        %2541 = vmatpush.bf16.msra.mxu0 %v2365
        %2542 = vmatpush.bf16.msra.mxu0 %v2357
        %2543 = vmatpush.bf16.msra.mxu0 %v2349
        %2544 = vmatpush.bf16.msra.mxu0 %v2341
        %2545 = vmatpush.bf16.msra.mxu0 %v2333
        %2546 = vmatmul.bf16.gmra.mxu0 0
        %v2547 = vpop.f32.mrf.mxu0
        %v2548 = vadd.f32 %v2535, %v2547
        %v2549 = vpop.f32.mrf.mxu0
        %2550 = vdwg.mxu0
        %2551 = vmatpush.bf16.msra.mxu0 %v2326
        %2552 = vmatpush.bf16.msra.mxu0 %v2318
        %2553 = vmatpush.bf16.msra.mxu0 %v2310
        %2554 = vmatpush.bf16.msra.mxu0 %v2302
        %2555 = vmatpush.bf16.msra.mxu0 %v2294
        %2556 = vmatpush.bf16.msra.mxu0 %v2286
        %2557 = vmatpush.bf16.msra.mxu0 %v2278
        %2558 = vmatpush.bf16.msra.mxu0 %v2270
        %2559 = vmatmul.bf16.gmra.mxu0 0
        %v2560 = vpop.f32.mrf.mxu0
        %v2561 = vadd.f32 0.0, %v2560
        %v2562 = vpop.f32.mrf.mxu0
        %2563 = vdwg.mxu0
        %2564 = vmatpush.bf16.msra.mxu0 %v2390
        %2565 = vmatpush.bf16.msra.mxu0 %v2382
        %2566 = vmatpush.bf16.msra.mxu0 %v2374
        %2567 = vmatpush.bf16.msra.mxu0 %v2366
        %2568 = vmatpush.bf16.msra.mxu0 %v2358
        %2569 = vmatpush.bf16.msra.mxu0 %v2350
        %2570 = vmatpush.bf16.msra.mxu0 %v2342
        %2571 = vmatpush.bf16.msra.mxu0 %v2334
        %2572 = vmatmul.bf16.gmra.mxu0 0
        %v2573 = vpop.f32.mrf.mxu0
        %v2574 = vadd.f32 %v2561, %v2573
        %v2575 = vpop.f32.mrf.mxu0
        %2576 = vdwg.mxu0
        %2577 = vmatpush.bf16.msra.mxu0 %v2327
        %2578 = vmatpush.bf16.msra.mxu0 %v2319
        %2579 = vmatpush.bf16.msra.mxu0 %v2311
        %2580 = vmatpush.bf16.msra.mxu0 %v2303
        %2581 = vmatpush.bf16.msra.mxu0 %v2295
        %2582 = vmatpush.bf16.msra.mxu0 %v2287
        %2583 = vmatpush.bf16.msra.mxu0 %v2279
        %2584 = vmatpush.bf16.msra.mxu0 %v2271
        %2585 = vmatmul.bf16.gmra.mxu0 0
        %v2586 = vpop.f32.mrf.mxu0
        %v2587 = vadd.f32 0.0, %v2586
        %v2588 = vpop.f32.mrf.mxu0
        %2589 = vdwg.mxu0
        %2590 = vmatpush.bf16.msra.mxu0 %v2391
        %2591 = vmatpush.bf16.msra.mxu0 %v2383
        %2592 = vmatpush.bf16.msra.mxu0 %v2375
        %2593 = vmatpush.bf16.msra.mxu0 %v2367
        %2594 = vmatpush.bf16.msra.mxu0 %v2359
        %2595 = vmatpush.bf16.msra.mxu0 %v2351
        %2596 = vmatpush.bf16.msra.mxu0 %v2343
        %2597 = vmatpush.bf16.msra.mxu0 %v2335
        %2598 = vmatmul.bf16.gmra.mxu0 0
        %v2599 = vpop.f32.mrf.mxu0
        %v2600 = vadd.f32 %v2587, %v2599
        %v2601 = vpop.f32.mrf.mxu0
        %2602 = vdwg.mxu0
        %2603 = vmatpush.bf16.msra.mxu0 %v2328
        %2604 = vmatpush.bf16.msra.mxu0 %v2320
        %2605 = vmatpush.bf16.msra.mxu0 %v2312
        %2606 = vmatpush.bf16.msra.mxu0 %v2304
        %2607 = vmatpush.bf16.msra.mxu0 %v2296
        %2608 = vmatpush.bf16.msra.mxu0 %v2288
        %2609 = vmatpush.bf16.msra.mxu0 %v2280
        %2610 = vmatpush.bf16.msra.mxu0 %v2272
        %2611 = vmatmul.bf16.gmra.mxu0 0
        %v2612 = vpop.f32.mrf.mxu0
        %v2613 = vadd.f32 0.0, %v2612
        %v2614 = vpop.f32.mrf.mxu0
        %2615 = vdwg.mxu0
        %2616 = vmatpush.bf16.msra.mxu0 %v2392
        %2617 = vmatpush.bf16.msra.mxu0 %v2384
        %2618 = vmatpush.bf16.msra.mxu0 %v2376
        %2619 = vmatpush.bf16.msra.mxu0 %v2368
        %2620 = vmatpush.bf16.msra.mxu0 %v2360
        %2621 = vmatpush.bf16.msra.mxu0 %v2352
        %2622 = vmatpush.bf16.msra.mxu0 %v2344
        %2623 = vmatpush.bf16.msra.mxu0 %v2336
        %2624 = vmatmul.bf16.gmra.mxu0 0
        %v2625 = vpop.f32.mrf.mxu0
        %v2626 = vadd.f32 %v2613, %v2625
        %v2627 = vpop.f32.mrf.mxu0
        %2628 = vdwg.mxu0
        %2629 = vmatpush.bf16.msra.mxu0 %v2329
        %2630 = vmatpush.bf16.msra.mxu0 %v2321
        %2631 = vmatpush.bf16.msra.mxu0 %v2313
        %2632 = vmatpush.bf16.msra.mxu0 %v2305
        %2633 = vmatpush.bf16.msra.mxu0 %v2297
        %2634 = vmatpush.bf16.msra.mxu0 %v2289
        %2635 = vmatpush.bf16.msra.mxu0 %v2281
        %2636 = vmatpush.bf16.msra.mxu0 %v2273
        %2637 = vmatmul.bf16.gmra.mxu0 0
        %v2638 = vpop.f32.mrf.mxu0
        %v2639 = vadd.f32 0.0, %v2638
        %v2640 = vpop.f32.mrf.mxu0
        %2641 = vdwg.mxu0
        %2642 = vmatpush.bf16.msra.mxu0 %v2393
        %2643 = vmatpush.bf16.msra.mxu0 %v2385
        %2644 = vmatpush.bf16.msra.mxu0 %v2377
        %2645 = vmatpush.bf16.msra.mxu0 %v2369
        %2646 = vmatpush.bf16.msra.mxu0 %v2361
        %2647 = vmatpush.bf16.msra.mxu0 %v2353
        %2648 = vmatpush.bf16.msra.mxu0 %v2345
        %2649 = vmatpush.bf16.msra.mxu0 %v2337
        %2650 = vmatmul.bf16.gmra.mxu0 0
        %v2651 = vpop.f32.mrf.mxu0
        %v2652 = vadd.f32 %v2639, %v2651
        %v2653 = vpop.f32.mrf.mxu0
        %2654 = vdwg.mxu0
        %2655 = vmatpush.bf16.msra.mxu0 %v2330
        %2656 = vmatpush.bf16.msra.mxu0 %v2322
        %2657 = vmatpush.bf16.msra.mxu0 %v2314
        %2658 = vmatpush.bf16.msra.mxu0 %v2306
        %2659 = vmatpush.bf16.msra.mxu0 %v2298
        %2660 = vmatpush.bf16.msra.mxu0 %v2290
        %2661 = vmatpush.bf16.msra.mxu0 %v2282
        %2662 = vmatpush.bf16.msra.mxu0 %v2274
        %2663 = vmatmul.bf16.gmra.mxu0 0
        %v2664 = vpop.f32.mrf.mxu0
        %v2665 = vadd.f32 0.0, %v2664
        %v2666 = vpop.f32.mrf.mxu0
        %2667 = vdwg.mxu0
        %2668 = vmatpush.bf16.msra.mxu0 %v2394
        %2669 = vmatpush.bf16.msra.mxu0 %v2386
        %2670 = vmatpush.bf16.msra.mxu0 %v2378
        %2671 = vmatpush.bf16.msra.mxu0 %v2370
        %2672 = vmatpush.bf16.msra.mxu0 %v2362
        %2673 = vmatpush.bf16.msra.mxu0 %v2354
        %2674 = vmatpush.bf16.msra.mxu0 %v2346
        %2675 = vmatpush.bf16.msra.mxu0 %v2338
        %2676 = vmatmul.bf16.gmra.mxu0 0
        %v2677 = vpop.f32.mrf.mxu0
        %v2678 = vadd.f32 %v2665, %v2677
        %v2679 = vpop.f32.mrf.mxu0
        %2680 = vdwg.mxu0
        %2681 = vmatpush.bf16.msra.mxu0 %v2331
        %2682 = vmatpush.bf16.msra.mxu0 %v2323
        %2683 = vmatpush.bf16.msra.mxu0 %v2315
        %2684 = vmatpush.bf16.msra.mxu0 %v2307
        %2685 = vmatpush.bf16.msra.mxu0 %v2299
        %2686 = vmatpush.bf16.msra.mxu0 %v2291
        %2687 = vmatpush.bf16.msra.mxu0 %v2283
        %2688 = vmatpush.bf16.msra.mxu0 %v2275
        %2689 = vmatmul.bf16.gmra.mxu0 0
        %v2690 = vpop.f32.mrf.mxu0
        %v2691 = vadd.f32 0.0, %v2690
        %v2692 = vpop.f32.mrf.mxu0
        %2693 = vdwg.mxu0
        %2694 = vmatpush.bf16.msra.mxu0 %v2395
        %2695 = vmatpush.bf16.msra.mxu0 %v2387
        %2696 = vmatpush.bf16.msra.mxu0 %v2379
        %2697 = vmatpush.bf16.msra.mxu0 %v2371
        %2698 = vmatpush.bf16.msra.mxu0 %v2363
        %2699 = vmatpush.bf16.msra.mxu0 %v2355
        %2700 = vmatpush.bf16.msra.mxu0 %v2347
        %2701 = vmatpush.bf16.msra.mxu0 %v2339
        %2702 = vmatmul.bf16.gmra.mxu0 0
        %v2703 = vpop.f32.mrf.mxu0
        %v2704 = vadd.f32 %v2691, %v2703
        %v2705 = vpop.f32.mrf.mxu0
        %2706 = vdwg.mxu0
        %2707 = vmatpush.bf16.msra.mxu0 %v2332
        %2708 = vmatpush.bf16.msra.mxu0 %v2324
        %2709 = vmatpush.bf16.msra.mxu0 %v2316
        %2710 = vmatpush.bf16.msra.mxu0 %v2308
        %2711 = vmatpush.bf16.msra.mxu0 %v2300
        %2712 = vmatpush.bf16.msra.mxu0 %v2292
        %2713 = vmatpush.bf16.msra.mxu0 %v2284
        %2714 = vmatpush.bf16.msra.mxu0 %v2276
        %2715 = vmatmul.bf16.gmra.mxu0 0
        %v2716 = vpop.f32.mrf.mxu0
        %v2717 = vadd.f32 0.0, %v2716
        %v2718 = vpop.f32.mrf.mxu0
        %2719 = vdwg.mxu0
        %2720 = vmatpush.bf16.msra.mxu0 %v2396
        %2721 = vmatpush.bf16.msra.mxu0 %v2388
        %2722 = vmatpush.bf16.msra.mxu0 %v2380
        %2723 = vmatpush.bf16.msra.mxu0 %v2372
        %2724 = vmatpush.bf16.msra.mxu0 %v2364
        %2725 = vmatpush.bf16.msra.mxu0 %v2356
        %2726 = vmatpush.bf16.msra.mxu0 %v2348
        %2727 = vmatpush.bf16.msra.mxu0 %v2340
        %2728 = vmatmul.bf16.gmra.mxu0 0
        %v2729 = vpop.f32.mrf.mxu0
        %v2730 = vadd.f32 %v2717, %v2729
        %v2731 = vpop.f32.mrf.mxu0
        %2732 = vdwg.mxu0
        %v2733 = vadd.f32 %v1877, %v2548
        %v2734 = vadd.f32 %v1878, %v2574
        %v2735 = vadd.f32 %v1879, %v2600
        %v2736 = vadd.f32 %v1880, %v2626
        %v2737 = vadd.f32 %v1881, %v2652
        %v2738 = vadd.f32 %v1882, %v2678
        %v2739 = vadd.f32 %v1883, %v2704
        %v2740 = vadd.f32 %v1884, %v2730
        %v2741 = vxor.u32 %v2733, 2147483648
        %v2742 = vxor.u32 %v2734, 2147483648
        %v2743 = vxor.u32 %v2735, 2147483648
        %v2744 = vxor.u32 %v2736, 2147483648
        %v2745 = vxor.u32 %v2737, 2147483648
        %v2746 = vxor.u32 %v2738, 2147483648
        %v2747 = vmul.f32 %v2741, 1.442695
        %v2748 = vpow.pop %v2747
        %v2749 = vmul.f32 %v2742, 1.442695
        %v2750 = vpow.pop %v2749
        %v2751 = vmul.f32 %v2743, 1.442695
        %v2752 = vpow.pop %v2751
        %v2753 = vmul.f32 %v2744, 1.442695
        %v2754 = vpow.pop %v2753
        %v2755 = vmul.f32 %v2745, 1.442695
        %v2756 = vpow.pop %v2755
        %v2757 = vmul.f32 %v2746, 1.442695
        %v2758 = vpow.pop %v2757
        %v2759 = vadd.f32 %v2748, 1.0
        %v2760 = vadd.f32 %v2750, 1.0
        %v2761 = vadd.f32 %v2752, 1.0
        %v2762 = vadd.f32 %v2754, 1.0
        %v2763 = vadd.f32 %v2756, 1.0
        %v2764 = vadd.f32 %v2758, 1.0
        %v2765 = vrcp.pop %v2759
        %v2766 = vmul.f32 %v2759, %v2765
        %v2767 = vsub.f32 1.0, %v2766
        %v2768 = vmul.f32 %v2765, %v2767
        %v2769 = vadd.f32 %v2765, %v2768
        %vm2770 = vweird.f32 %v2759
        %vm2771 = vweird.f32 %v2765
        %vm2772 = vmor %vm2770, %vm2771
        %v2773 = vsel %vm2772, %v2765, %v2769
        %v2774 = vand.u32 2147483647, %v2759
        %vm2775 = vcmp.eq.f32.partialorder %v2774, 8.507059e+37
        %v2776 = vand.u32 %v2759, 2147483648
        %v2777 = vor.u32 1.1754944e-38, %v2776
        %v2778 = vsel %vm2775, %v2777, %v2773
        %v2779 = vmul.f32 1.0, %v2778
        %v2780 = vrcp.pop %v2760
        %v2781 = vmul.f32 %v2760, %v2780
        %v2782 = vsub.f32 1.0, %v2781
        %v2783 = vmul.f32 %v2780, %v2782
        %v2784 = vadd.f32 %v2780, %v2783
        %vm2785 = vweird.f32 %v2760
        %vm2786 = vweird.f32 %v2780
        %vm2787 = vmor %vm2785, %vm2786
        %v2788 = vsel %vm2787, %v2780, %v2784
        %v2789 = vand.u32 2147483647, %v2760
        %vm2790 = vcmp.eq.f32.partialorder %v2789, 8.507059e+37
        %v2791 = vand.u32 %v2760, 2147483648
        %v2792 = vor.u32 1.1754944e-38, %v2791
        %v2793 = vsel %vm2790, %v2792, %v2788
        %v2794 = vmul.f32 1.0, %v2793
        %v2795 = vrcp.pop %v2761
        %v2796 = vmul.f32 %v2761, %v2795
        %v2797 = vsub.f32 1.0, %v2796
        %v2798 = vmul.f32 %v2795, %v2797
        %v2799 = vadd.f32 %v2795, %v2798
        %vm2800 = vweird.f32 %v2761
        %vm2801 = vweird.f32 %v2795
        %vm2802 = vmor %vm2800, %vm2801
        %v2803 = vsel %vm2802, %v2795, %v2799
        %v2804 = vand.u32 2147483647, %v2761
        %vm2805 = vcmp.eq.f32.partialorder %v2804, 8.507059e+37
        %v2806 = vand.u32 %v2761, 2147483648
        %v2807 = vor.u32 1.1754944e-38, %v2806
        %v2808 = vsel %vm2805, %v2807, %v2803
        %v2809 = vmul.f32 1.0, %v2808
        %v2810 = vrcp.pop %v2762
        %v2811 = vmul.f32 %v2762, %v2810
        %v2812 = vsub.f32 1.0, %v2811
        %v2813 = vmul.f32 %v2810, %v2812
        %v2814 = vadd.f32 %v2810, %v2813
        %vm2815 = vweird.f32 %v2762
        %vm2816 = vweird.f32 %v2810
        %vm2817 = vmor %vm2815, %vm2816
        %v2818 = vsel %vm2817, %v2810, %v2814
        %v2819 = vand.u32 2147483647, %v2762
        %vm2820 = vcmp.eq.f32.partialorder %v2819, 8.507059e+37
        %v2821 = vand.u32 %v2762, 2147483648
        %v2822 = vor.u32 1.1754944e-38, %v2821
        %v2823 = vsel %vm2820, %v2822, %v2818
        %v2824 = vmul.f32 1.0, %v2823
        %v2825 = vrcp.pop %v2763
        %v2826 = vmul.f32 %v2763, %v2825
        %v2827 = vsub.f32 1.0, %v2826
        %v2828 = vmul.f32 %v2825, %v2827
        %v2829 = vadd.f32 %v2825, %v2828
        %vm2830 = vweird.f32 %v2763
        %vm2831 = vweird.f32 %v2825
        %vm2832 = vmor %vm2830, %vm2831
        %v2833 = vsel %vm2832, %v2825, %v2829
        %v2834 = vand.u32 2147483647, %v2763
        %vm2835 = vcmp.eq.f32.partialorder %v2834, 8.507059e+37
        %v2836 = vand.u32 %v2763, 2147483648
        %v2837 = vor.u32 1.1754944e-38, %v2836
        %v2838 = vsel %vm2835, %v2837, %v2833
        %v2839 = vmul.f32 1.0, %v2838
        %v2840 = vrcp.pop %v2764
        %v2841 = vmul.f32 %v2764, %v2840
        %v2842 = vsub.f32 1.0, %v2841
        %v2843 = vmul.f32 %v2840, %v2842
        %v2844 = vadd.f32 %v2840, %v2843
        %vm2845 = vweird.f32 %v2764
        %vm2846 = vweird.f32 %v2840
        %vm2847 = vmor %vm2845, %vm2846
        %v2848 = vsel %vm2847, %v2840, %v2844
        %v2849 = vand.u32 2147483647, %v2764
        %vm2850 = vcmp.eq.f32.partialorder %v2849, 8.507059e+37
        %v2851 = vand.u32 %v2764, 2147483648
        %v2852 = vor.u32 1.1754944e-38, %v2851
        %v2853 = vsel %vm2850, %v2852, %v2848
        %v2854 = vmul.f32 1.0, %v2853
        %v2855 = vtanh.pop %v2739
        %v2856 = vtanh.pop %v2740
        %v2857 = vmul.f32 %v2809, 0.0
        %v2858 = vmul.f32 %v2824, 0.0
        %v2859 = vmul.f32 %v2779, %v2855
        %v2860 = vmul.f32 %v2794, %v2856
        %v2861 = vadd.f32 %v2857, %v2859
        %v2862 = vadd.f32 %v2858, %v2860
        %v2863 = vtanh.pop %v2861
        %v2864 = vtanh.pop %v2862
        %v2865 = vmul.f32 %v2839, %v2863
        %v2866 = vmul.f32 %v2854, %v2864
        %v2867 = vpack.c.bf16 %v2866, %v2865
        %2868 = vst [vmem:[%s6] sm:$0xff] %v2867
        %s2869 = scalar_lea.vmem [#allocation2], 32
        %v2870 = vld [vmem:[%s2869] sm:$0xff]
        %v2871 = vld [vmem:[%s2869 + $0x8] sm:$0xff]
        %v2872 = vld [vmem:[%s2869 + $0x10] sm:$0xff]
        %v2873 = vld [vmem:[%s2869 + $0x18] sm:$0xff]
        %v2874 = vunpack.c.l.bf16 %v2870
        %v2875 = vunpack.c.h.bf16 %v2870
        %v2876 = vunpack.c.l.bf16 %v2871
        %v2877 = vunpack.c.h.bf16 %v2871
        %v2878 = vunpack.c.l.bf16 %v2872
        %v2879 = vunpack.c.h.bf16 %v2872
        %v2880 = vunpack.c.l.bf16 %v2873
        %v2881 = vunpack.c.h.bf16 %v2873
        %v2883 = vunpack.c.l.b16 %v2867
        %v2884 = vunpack.c.h.b16 %v2867
        %v2885 = vpack.c.b16 %v2883, %v2883
        %v2886 = vpack.c.b16 %v2884, %v2884
        %2889 = vmatpush.bf16.msra.mxu0 %v2325
        %2890 = vmatpush.bf16.msra.mxu0 %v2317
        %2891 = vmatpush.bf16.msra.mxu0 %v2309
        %2892 = vmatpush.bf16.msra.mxu0 %v2301
        %2893 = vmatpush.bf16.msra.mxu0 %v2293
        %2894 = vmatpush.bf16.msra.mxu0 %v2285
        %2895 = vmatpush.bf16.msra.mxu0 %v2277
        %2896 = vmatpush.bf16.msra.mxu0 %v2269
        %2897 = vmatmul.bf16.gmra.mxu0 %v2885
        %v2898 = vpop.f32.mrf.mxu0
        %v2899 = vadd.f32 0.0, %v2898
        %v2900 = vpop.f32.mrf.mxu0
        %2901 = vdwg.mxu0
        %2902 = vmatpush.bf16.msra.mxu0 %v2389
        %2903 = vmatpush.bf16.msra.mxu0 %v2381
        %2904 = vmatpush.bf16.msra.mxu0 %v2373
        %2905 = vmatpush.bf16.msra.mxu0 %v2365
        %2906 = vmatpush.bf16.msra.mxu0 %v2357
        %2907 = vmatpush.bf16.msra.mxu0 %v2349
        %2908 = vmatpush.bf16.msra.mxu0 %v2341
        %2909 = vmatpush.bf16.msra.mxu0 %v2333
        %2910 = vmatmul.bf16.gmra.mxu0 %v2886
        %v2911 = vpop.f32.mrf.mxu0
        %v2912 = vadd.f32 %v2899, %v2911
        %v2913 = vpop.f32.mrf.mxu0
        %2914 = vdwg.mxu0
        %2915 = vmatpush.bf16.msra.mxu0 %v2326
        %2916 = vmatpush.bf16.msra.mxu0 %v2318
        %2917 = vmatpush.bf16.msra.mxu0 %v2310
        %2918 = vmatpush.bf16.msra.mxu0 %v2302
        %2919 = vmatpush.bf16.msra.mxu0 %v2294
        %2920 = vmatpush.bf16.msra.mxu0 %v2286
        %2921 = vmatpush.bf16.msra.mxu0 %v2278
        %2922 = vmatpush.bf16.msra.mxu0 %v2270
        %2923 = vmatmul.bf16.gmra.mxu0 %v2885
        %v2924 = vpop.f32.mrf.mxu0
        %v2925 = vadd.f32 0.0, %v2924
        %v2926 = vpop.f32.mrf.mxu0
        %2927 = vdwg.mxu0
        %2928 = vmatpush.bf16.msra.mxu0 %v2390
        %2929 = vmatpush.bf16.msra.mxu0 %v2382
        %2930 = vmatpush.bf16.msra.mxu0 %v2374
        %2931 = vmatpush.bf16.msra.mxu0 %v2366
        %2932 = vmatpush.bf16.msra.mxu0 %v2358
        %2933 = vmatpush.bf16.msra.mxu0 %v2350
        %2934 = vmatpush.bf16.msra.mxu0 %v2342
        %2935 = vmatpush.bf16.msra.mxu0 %v2334
        %2936 = vmatmul.bf16.gmra.mxu0 %v2886
        %v2937 = vpop.f32.mrf.mxu0
        %v2938 = vadd.f32 %v2925, %v2937
        %v2939 = vpop.f32.mrf.mxu0
        %2940 = vdwg.mxu0
        %2941 = vmatpush.bf16.msra.mxu0 %v2327
        %2942 = vmatpush.bf16.msra.mxu0 %v2319
        %2943 = vmatpush.bf16.msra.mxu0 %v2311
        %2944 = vmatpush.bf16.msra.mxu0 %v2303
        %2945 = vmatpush.bf16.msra.mxu0 %v2295
        %2946 = vmatpush.bf16.msra.mxu0 %v2287
        %2947 = vmatpush.bf16.msra.mxu0 %v2279
        %2948 = vmatpush.bf16.msra.mxu0 %v2271
        %2949 = vmatmul.bf16.gmra.mxu0 %v2885
        %v2950 = vpop.f32.mrf.mxu0
        %v2951 = vadd.f32 0.0, %v2950
        %v2952 = vpop.f32.mrf.mxu0
        %2953 = vdwg.mxu0
        %2954 = vmatpush.bf16.msra.mxu0 %v2391
        %2955 = vmatpush.bf16.msra.mxu0 %v2383
        %2956 = vmatpush.bf16.msra.mxu0 %v2375
        %2957 = vmatpush.bf16.msra.mxu0 %v2367
        %2958 = vmatpush.bf16.msra.mxu0 %v2359
        %2959 = vmatpush.bf16.msra.mxu0 %v2351
        %2960 = vmatpush.bf16.msra.mxu0 %v2343
        %2961 = vmatpush.bf16.msra.mxu0 %v2335
        %2962 = vmatmul.bf16.gmra.mxu0 %v2886
        %v2963 = vpop.f32.mrf.mxu0
        %v2964 = vadd.f32 %v2951, %v2963
        %v2965 = vpop.f32.mrf.mxu0
        %2966 = vdwg.mxu0
        %2967 = vmatpush.bf16.msra.mxu0 %v2328
        %2968 = vmatpush.bf16.msra.mxu0 %v2320
        %2969 = vmatpush.bf16.msra.mxu0 %v2312
        %2970 = vmatpush.bf16.msra.mxu0 %v2304
        %2971 = vmatpush.bf16.msra.mxu0 %v2296
        %2972 = vmatpush.bf16.msra.mxu0 %v2288
        %2973 = vmatpush.bf16.msra.mxu0 %v2280
        %2974 = vmatpush.bf16.msra.mxu0 %v2272
        %2975 = vmatmul.bf16.gmra.mxu0 %v2885
        %v2976 = vpop.f32.mrf.mxu0
        %v2977 = vadd.f32 0.0, %v2976
        %v2978 = vpop.f32.mrf.mxu0
        %2979 = vdwg.mxu0
        %2980 = vmatpush.bf16.msra.mxu0 %v2392
        %2981 = vmatpush.bf16.msra.mxu0 %v2384
        %2982 = vmatpush.bf16.msra.mxu0 %v2376
        %2983 = vmatpush.bf16.msra.mxu0 %v2368
        %2984 = vmatpush.bf16.msra.mxu0 %v2360
        %2985 = vmatpush.bf16.msra.mxu0 %v2352
        %2986 = vmatpush.bf16.msra.mxu0 %v2344
        %2987 = vmatpush.bf16.msra.mxu0 %v2336
        %2988 = vmatmul.bf16.gmra.mxu0 %v2886
        %v2989 = vpop.f32.mrf.mxu0
        %v2990 = vadd.f32 %v2977, %v2989
        %v2991 = vpop.f32.mrf.mxu0
        %2992 = vdwg.mxu0
        %2993 = vmatpush.bf16.msra.mxu0 %v2329
        %2994 = vmatpush.bf16.msra.mxu0 %v2321
        %2995 = vmatpush.bf16.msra.mxu0 %v2313
        %2996 = vmatpush.bf16.msra.mxu0 %v2305
        %2997 = vmatpush.bf16.msra.mxu0 %v2297
        %2998 = vmatpush.bf16.msra.mxu0 %v2289
        %2999 = vmatpush.bf16.msra.mxu0 %v2281
        %3000 = vmatpush.bf16.msra.mxu0 %v2273
        %3001 = vmatmul.bf16.gmra.mxu0 %v2885
        %v3002 = vpop.f32.mrf.mxu0
        %v3003 = vadd.f32 0.0, %v3002
        %v3004 = vpop.f32.mrf.mxu0
        %3005 = vdwg.mxu0
        %3006 = vmatpush.bf16.msra.mxu0 %v2393
        %3007 = vmatpush.bf16.msra.mxu0 %v2385
        %3008 = vmatpush.bf16.msra.mxu0 %v2377
        %3009 = vmatpush.bf16.msra.mxu0 %v2369
        %3010 = vmatpush.bf16.msra.mxu0 %v2361
        %3011 = vmatpush.bf16.msra.mxu0 %v2353
        %3012 = vmatpush.bf16.msra.mxu0 %v2345
        %3013 = vmatpush.bf16.msra.mxu0 %v2337
        %3014 = vmatmul.bf16.gmra.mxu0 %v2886
        %v3015 = vpop.f32.mrf.mxu0
        %v3016 = vadd.f32 %v3003, %v3015
        %v3017 = vpop.f32.mrf.mxu0
        %3018 = vdwg.mxu0
        %3019 = vmatpush.bf16.msra.mxu0 %v2330
        %3020 = vmatpush.bf16.msra.mxu0 %v2322
        %3021 = vmatpush.bf16.msra.mxu0 %v2314
        %3022 = vmatpush.bf16.msra.mxu0 %v2306
        %3023 = vmatpush.bf16.msra.mxu0 %v2298
        %3024 = vmatpush.bf16.msra.mxu0 %v2290
        %3025 = vmatpush.bf16.msra.mxu0 %v2282
        %3026 = vmatpush.bf16.msra.mxu0 %v2274
        %3027 = vmatmul.bf16.gmra.mxu0 %v2885
        %v3028 = vpop.f32.mrf.mxu0
        %v3029 = vadd.f32 0.0, %v3028
        %v3030 = vpop.f32.mrf.mxu0
        %3031 = vdwg.mxu0
        %3032 = vmatpush.bf16.msra.mxu0 %v2394
        %3033 = vmatpush.bf16.msra.mxu0 %v2386
        %3034 = vmatpush.bf16.msra.mxu0 %v2378
        %3035 = vmatpush.bf16.msra.mxu0 %v2370
        %3036 = vmatpush.bf16.msra.mxu0 %v2362
        %3037 = vmatpush.bf16.msra.mxu0 %v2354
        %3038 = vmatpush.bf16.msra.mxu0 %v2346
        %3039 = vmatpush.bf16.msra.mxu0 %v2338
        %3040 = vmatmul.bf16.gmra.mxu0 %v2886
        %v3041 = vpop.f32.mrf.mxu0
        %v3042 = vadd.f32 %v3029, %v3041
        %v3043 = vpop.f32.mrf.mxu0
        %3044 = vdwg.mxu0
        %3045 = vmatpush.bf16.msra.mxu0 %v2331
        %3046 = vmatpush.bf16.msra.mxu0 %v2323
        %3047 = vmatpush.bf16.msra.mxu0 %v2315
        %3048 = vmatpush.bf16.msra.mxu0 %v2307
        %3049 = vmatpush.bf16.msra.mxu0 %v2299
        %3050 = vmatpush.bf16.msra.mxu0 %v2291
        %3051 = vmatpush.bf16.msra.mxu0 %v2283
        %3052 = vmatpush.bf16.msra.mxu0 %v2275
        %3053 = vmatmul.bf16.gmra.mxu0 %v2885
        %v3054 = vpop.f32.mrf.mxu0
        %v3055 = vadd.f32 0.0, %v3054
        %v3056 = vpop.f32.mrf.mxu0
        %3057 = vdwg.mxu0
        %3058 = vmatpush.bf16.msra.mxu0 %v2395
        %3059 = vmatpush.bf16.msra.mxu0 %v2387
        %3060 = vmatpush.bf16.msra.mxu0 %v2379
        %3061 = vmatpush.bf16.msra.mxu0 %v2371
        %3062 = vmatpush.bf16.msra.mxu0 %v2363
        %3063 = vmatpush.bf16.msra.mxu0 %v2355
        %3064 = vmatpush.bf16.msra.mxu0 %v2347
        %3065 = vmatpush.bf16.msra.mxu0 %v2339
        %3066 = vmatmul.bf16.gmra.mxu0 %v2886
        %v3067 = vpop.f32.mrf.mxu0
        %v3068 = vadd.f32 %v3055, %v3067
        %v3069 = vpop.f32.mrf.mxu0
        %3070 = vdwg.mxu0
        %3071 = vmatpush.bf16.msra.mxu0 %v2332
        %3072 = vmatpush.bf16.msra.mxu0 %v2324
        %3073 = vmatpush.bf16.msra.mxu0 %v2316
        %3074 = vmatpush.bf16.msra.mxu0 %v2308
        %3075 = vmatpush.bf16.msra.mxu0 %v2300
        %3076 = vmatpush.bf16.msra.mxu0 %v2292
        %3077 = vmatpush.bf16.msra.mxu0 %v2284
        %3078 = vmatpush.bf16.msra.mxu0 %v2276
        %3079 = vmatmul.bf16.gmra.mxu0 %v2885
        %v3080 = vpop.f32.mrf.mxu0
        %v3081 = vadd.f32 0.0, %v3080
        %v3082 = vpop.f32.mrf.mxu0
        %3083 = vdwg.mxu0
        %3084 = vmatpush.bf16.msra.mxu0 %v2396
        %3085 = vmatpush.bf16.msra.mxu0 %v2388
        %3086 = vmatpush.bf16.msra.mxu0 %v2380
        %3087 = vmatpush.bf16.msra.mxu0 %v2372
        %3088 = vmatpush.bf16.msra.mxu0 %v2364
        %3089 = vmatpush.bf16.msra.mxu0 %v2356
        %3090 = vmatpush.bf16.msra.mxu0 %v2348
        %3091 = vmatpush.bf16.msra.mxu0 %v2340
        %3092 = vmatmul.bf16.gmra.mxu0 %v2886
        %v3093 = vpop.f32.mrf.mxu0
        %v3094 = vadd.f32 %v3081, %v3093
        %v3095 = vpop.f32.mrf.mxu0
        %3096 = vdwg.mxu0
        %v3097 = vadd.f32 %v2874, %v2912
        %v3098 = vadd.f32 %v2875, %v2938
        %v3099 = vadd.f32 %v2876, %v2964
        %v3100 = vadd.f32 %v2877, %v2990
        %v3101 = vadd.f32 %v2878, %v3016
        %v3102 = vadd.f32 %v2879, %v3042
        %v3103 = vadd.f32 %v2880, %v3068
        %v3104 = vadd.f32 %v2881, %v3094
        %v3105 = vxor.u32 %v3097, 2147483648
        %v3106 = vxor.u32 %v3098, 2147483648
        %v3107 = vxor.u32 %v3099, 2147483648
        %v3108 = vxor.u32 %v3100, 2147483648
        %v3109 = vxor.u32 %v3101, 2147483648
        %v3110 = vxor.u32 %v3102, 2147483648
        %v3111 = vmul.f32 %v3105, 1.442695
        %v3112 = vpow.pop %v3111
        %v3113 = vmul.f32 %v3106, 1.442695
        %v3114 = vpow.pop %v3113
        %v3115 = vmul.f32 %v3107, 1.442695
        %v3116 = vpow.pop %v3115
        %v3117 = vmul.f32 %v3108, 1.442695
        %v3118 = vpow.pop %v3117
        %v3119 = vmul.f32 %v3109, 1.442695
        %v3120 = vpow.pop %v3119
        %v3121 = vmul.f32 %v3110, 1.442695
        %v3122 = vpow.pop %v3121
        %v3123 = vadd.f32 %v3112, 1.0
        %v3124 = vadd.f32 %v3114, 1.0
        %v3125 = vadd.f32 %v3116, 1.0
        %v3126 = vadd.f32 %v3118, 1.0
        %v3127 = vadd.f32 %v3120, 1.0
        %v3128 = vadd.f32 %v3122, 1.0
        %v3129 = vrcp.pop %v3123
        %v3130 = vmul.f32 %v3123, %v3129
        %v3131 = vsub.f32 1.0, %v3130
        %v3132 = vmul.f32 %v3129, %v3131
        %v3133 = vadd.f32 %v3129, %v3132
        %vm3134 = vweird.f32 %v3123
        %vm3135 = vweird.f32 %v3129
        %vm3136 = vmor %vm3134, %vm3135
        %v3137 = vsel %vm3136, %v3129, %v3133
        %v3138 = vand.u32 2147483647, %v3123
        %vm3139 = vcmp.eq.f32.partialorder %v3138, 8.507059e+37
        %v3140 = vand.u32 %v3123, 2147483648
        %v3141 = vor.u32 1.1754944e-38, %v3140
        %v3142 = vsel %vm3139, %v3141, %v3137
        %v3143 = vmul.f32 1.0, %v3142
        %v3144 = vrcp.pop %v3124
        %v3145 = vmul.f32 %v3124, %v3144
        %v3146 = vsub.f32 1.0, %v3145
        %v3147 = vmul.f32 %v3144, %v3146
        %v3148 = vadd.f32 %v3144, %v3147
        %vm3149 = vweird.f32 %v3124
        %vm3150 = vweird.f32 %v3144
        %vm3151 = vmor %vm3149, %vm3150
        %v3152 = vsel %vm3151, %v3144, %v3148
        %v3153 = vand.u32 2147483647, %v3124
        %vm3154 = vcmp.eq.f32.partialorder %v3153, 8.507059e+37
        %v3155 = vand.u32 %v3124, 2147483648
        %v3156 = vor.u32 1.1754944e-38, %v3155
        %v3157 = vsel %vm3154, %v3156, %v3152
        %v3158 = vmul.f32 1.0, %v3157
        %v3159 = vrcp.pop %v3125
        %v3160 = vmul.f32 %v3125, %v3159
        %v3161 = vsub.f32 1.0, %v3160
        %v3162 = vmul.f32 %v3159, %v3161
        %v3163 = vadd.f32 %v3159, %v3162
        %vm3164 = vweird.f32 %v3125
        %vm3165 = vweird.f32 %v3159
        %vm3166 = vmor %vm3164, %vm3165
        %v3167 = vsel %vm3166, %v3159, %v3163
        %v3168 = vand.u32 2147483647, %v3125
        %vm3169 = vcmp.eq.f32.partialorder %v3168, 8.507059e+37
        %v3170 = vand.u32 %v3125, 2147483648
        %v3171 = vor.u32 1.1754944e-38, %v3170
        %v3172 = vsel %vm3169, %v3171, %v3167
        %v3173 = vmul.f32 1.0, %v3172
        %v3174 = vrcp.pop %v3126
        %v3175 = vmul.f32 %v3126, %v3174
        %v3176 = vsub.f32 1.0, %v3175
        %v3177 = vmul.f32 %v3174, %v3176
        %v3178 = vadd.f32 %v3174, %v3177
        %vm3179 = vweird.f32 %v3126
        %vm3180 = vweird.f32 %v3174
        %vm3181 = vmor %vm3179, %vm3180
        %v3182 = vsel %vm3181, %v3174, %v3178
        %v3183 = vand.u32 2147483647, %v3126
        %vm3184 = vcmp.eq.f32.partialorder %v3183, 8.507059e+37
        %v3185 = vand.u32 %v3126, 2147483648
        %v3186 = vor.u32 1.1754944e-38, %v3185
        %v3187 = vsel %vm3184, %v3186, %v3182
        %v3188 = vmul.f32 1.0, %v3187
        %v3189 = vrcp.pop %v3127
        %v3190 = vmul.f32 %v3127, %v3189
        %v3191 = vsub.f32 1.0, %v3190
        %v3192 = vmul.f32 %v3189, %v3191
        %v3193 = vadd.f32 %v3189, %v3192
        %vm3194 = vweird.f32 %v3127
        %vm3195 = vweird.f32 %v3189
        %vm3196 = vmor %vm3194, %vm3195
        %v3197 = vsel %vm3196, %v3189, %v3193
        %v3198 = vand.u32 2147483647, %v3127
        %vm3199 = vcmp.eq.f32.partialorder %v3198, 8.507059e+37
        %v3200 = vand.u32 %v3127, 2147483648
        %v3201 = vor.u32 1.1754944e-38, %v3200
        %v3202 = vsel %vm3199, %v3201, %v3197
        %v3203 = vmul.f32 1.0, %v3202
        %v3204 = vrcp.pop %v3128
        %v3205 = vmul.f32 %v3128, %v3204
        %v3206 = vsub.f32 1.0, %v3205
        %v3207 = vmul.f32 %v3204, %v3206
        %v3208 = vadd.f32 %v3204, %v3207
        %vm3209 = vweird.f32 %v3128
        %vm3210 = vweird.f32 %v3204
        %vm3211 = vmor %vm3209, %vm3210
        %v3212 = vsel %vm3211, %v3204, %v3208
        %v3213 = vand.u32 2147483647, %v3128
        %vm3214 = vcmp.eq.f32.partialorder %v3213, 8.507059e+37
        %v3215 = vand.u32 %v3128, 2147483648
        %v3216 = vor.u32 1.1754944e-38, %v3215
        %v3217 = vsel %vm3214, %v3216, %v3212
        %v3218 = vmul.f32 1.0, %v3217
        %v3219 = vtanh.pop %v3103
        %v3220 = vtanh.pop %v3104
        %v3221 = vmul.f32 %v3173, %v2861
        %v3222 = vmul.f32 %v3188, %v2862
        %v3223 = vmul.f32 %v3143, %v3219
        %v3224 = vmul.f32 %v3158, %v3220
        %v3225 = vadd.f32 %v3221, %v3223
        %v3226 = vadd.f32 %v3222, %v3224
        %v3227 = vtanh.pop %v3225
        %v3228 = vtanh.pop %v3226
        %v3229 = vmul.f32 %v3203, %v3227
        %v3230 = vmul.f32 %v3218, %v3228
        %v3231 = vpack.c.bf16 %v3230, %v3229
        %s3232 = scalar_lea.vmem %s6, 8
        %3233 = vst [vmem:[%s3232] sm:$0xff] %v3231
        %s3234 = scalar_lea.vmem [#allocation2], 64
        %v3235 = vld [vmem:[%s3234] sm:$0xff]
        %v3236 = vld [vmem:[%s3234 + $0x8] sm:$0xff]
        %v3237 = vld [vmem:[%s3234 + $0x10] sm:$0xff]
        %v3238 = vld [vmem:[%s3234 + $0x18] sm:$0xff]
        %v3239 = vunpack.c.l.bf16 %v3235
        %v3240 = vunpack.c.h.bf16 %v3235
        %v3241 = vunpack.c.l.bf16 %v3236
        %v3242 = vunpack.c.h.bf16 %v3236
        %v3243 = vunpack.c.l.bf16 %v3237
        %v3244 = vunpack.c.h.bf16 %v3237
        %v3245 = vunpack.c.l.bf16 %v3238
        %v3246 = vunpack.c.h.bf16 %v3238
        %v3248 = vunpack.c.l.b16 %v3231
        %v3249 = vunpack.c.h.b16 %v3231
        %v3250 = vpack.c.b16 %v3248, %v3248
        %v3251 = vpack.c.b16 %v3249, %v3249
        %3254 = vmatpush.bf16.msra.mxu0 %v2325
        %3255 = vmatpush.bf16.msra.mxu0 %v2317
        %3256 = vmatpush.bf16.msra.mxu0 %v2309
        %3257 = vmatpush.bf16.msra.mxu0 %v2301
        %3258 = vmatpush.bf16.msra.mxu0 %v2293
        %3259 = vmatpush.bf16.msra.mxu0 %v2285
        %3260 = vmatpush.bf16.msra.mxu0 %v2277
        %3261 = vmatpush.bf16.msra.mxu0 %v2269
        %3262 = vmatmul.bf16.gmra.mxu0 %v3250
        %v3263 = vpop.f32.mrf.mxu0
        %v3264 = vadd.f32 0.0, %v3263
        %v3265 = vpop.f32.mrf.mxu0
        %3266 = vdwg.mxu0
        %3267 = vmatpush.bf16.msra.mxu0 %v2389
        %3268 = vmatpush.bf16.msra.mxu0 %v2381
        %3269 = vmatpush.bf16.msra.mxu0 %v2373
        %3270 = vmatpush.bf16.msra.mxu0 %v2365
        %3271 = vmatpush.bf16.msra.mxu0 %v2357
        %3272 = vmatpush.bf16.msra.mxu0 %v2349
        %3273 = vmatpush.bf16.msra.mxu0 %v2341
        %3274 = vmatpush.bf16.msra.mxu0 %v2333
        %3275 = vmatmul.bf16.gmra.mxu0 %v3251
        %v3276 = vpop.f32.mrf.mxu0
        %v3277 = vadd.f32 %v3264, %v3276
        %v3278 = vpop.f32.mrf.mxu0
        %3279 = vdwg.mxu0
        %3280 = vmatpush.bf16.msra.mxu0 %v2326
        %3281 = vmatpush.bf16.msra.mxu0 %v2318
        %3282 = vmatpush.bf16.msra.mxu0 %v2310
        %3283 = vmatpush.bf16.msra.mxu0 %v2302
        %3284 = vmatpush.bf16.msra.mxu0 %v2294
        %3285 = vmatpush.bf16.msra.mxu0 %v2286
        %3286 = vmatpush.bf16.msra.mxu0 %v2278
        %3287 = vmatpush.bf16.msra.mxu0 %v2270
        %3288 = vmatmul.bf16.gmra.mxu0 %v3250
        %v3289 = vpop.f32.mrf.mxu0
        %v3290 = vadd.f32 0.0, %v3289
        %v3291 = vpop.f32.mrf.mxu0
        %3292 = vdwg.mxu0
        %3293 = vmatpush.bf16.msra.mxu0 %v2390
        %3294 = vmatpush.bf16.msra.mxu0 %v2382
        %3295 = vmatpush.bf16.msra.mxu0 %v2374
        %3296 = vmatpush.bf16.msra.mxu0 %v2366
        %3297 = vmatpush.bf16.msra.mxu0 %v2358
        %3298 = vmatpush.bf16.msra.mxu0 %v2350
        %3299 = vmatpush.bf16.msra.mxu0 %v2342
        %3300 = vmatpush.bf16.msra.mxu0 %v2334
        %3301 = vmatmul.bf16.gmra.mxu0 %v3251
        %v3302 = vpop.f32.mrf.mxu0
        %v3303 = vadd.f32 %v3290, %v3302
        %v3304 = vpop.f32.mrf.mxu0
        %3305 = vdwg.mxu0
        %3306 = vmatpush.bf16.msra.mxu0 %v2327
        %3307 = vmatpush.bf16.msra.mxu0 %v2319
        %3308 = vmatpush.bf16.msra.mxu0 %v2311
        %3309 = vmatpush.bf16.msra.mxu0 %v2303
        %3310 = vmatpush.bf16.msra.mxu0 %v2295
        %3311 = vmatpush.bf16.msra.mxu0 %v2287
        %3312 = vmatpush.bf16.msra.mxu0 %v2279
        %3313 = vmatpush.bf16.msra.mxu0 %v2271
        %3314 = vmatmul.bf16.gmra.mxu0 %v3250
        %v3315 = vpop.f32.mrf.mxu0
        %v3316 = vadd.f32 0.0, %v3315
        %v3317 = vpop.f32.mrf.mxu0
        %3318 = vdwg.mxu0
        %3319 = vmatpush.bf16.msra.mxu0 %v2391
        %3320 = vmatpush.bf16.msra.mxu0 %v2383
        %3321 = vmatpush.bf16.msra.mxu0 %v2375
        %3322 = vmatpush.bf16.msra.mxu0 %v2367
        %3323 = vmatpush.bf16.msra.mxu0 %v2359
        %3324 = vmatpush.bf16.msra.mxu0 %v2351
        %3325 = vmatpush.bf16.msra.mxu0 %v2343
        %3326 = vmatpush.bf16.msra.mxu0 %v2335
        %3327 = vmatmul.bf16.gmra.mxu0 %v3251
        %v3328 = vpop.f32.mrf.mxu0
        %v3329 = vadd.f32 %v3316, %v3328
        %v3330 = vpop.f32.mrf.mxu0
        %3331 = vdwg.mxu0
        %3332 = vmatpush.bf16.msra.mxu0 %v2328
        %3333 = vmatpush.bf16.msra.mxu0 %v2320
        %3334 = vmatpush.bf16.msra.mxu0 %v2312
        %3335 = vmatpush.bf16.msra.mxu0 %v2304
        %3336 = vmatpush.bf16.msra.mxu0 %v2296
        %3337 = vmatpush.bf16.msra.mxu0 %v2288
        %3338 = vmatpush.bf16.msra.mxu0 %v2280
        %3339 = vmatpush.bf16.msra.mxu0 %v2272
        %3340 = vmatmul.bf16.gmra.mxu0 %v3250
        %v3341 = vpop.f32.mrf.mxu0
        %v3342 = vadd.f32 0.0, %v3341
        %v3343 = vpop.f32.mrf.mxu0
        %3344 = vdwg.mxu0
        %3345 = vmatpush.bf16.msra.mxu0 %v2392
        %3346 = vmatpush.bf16.msra.mxu0 %v2384
        %3347 = vmatpush.bf16.msra.mxu0 %v2376
        %3348 = vmatpush.bf16.msra.mxu0 %v2368
        %3349 = vmatpush.bf16.msra.mxu0 %v2360
        %3350 = vmatpush.bf16.msra.mxu0 %v2352
        %3351 = vmatpush.bf16.msra.mxu0 %v2344
        %3352 = vmatpush.bf16.msra.mxu0 %v2336
        %3353 = vmatmul.bf16.gmra.mxu0 %v3251
        %v3354 = vpop.f32.mrf.mxu0
        %v3355 = vadd.f32 %v3342, %v3354
        %v3356 = vpop.f32.mrf.mxu0
        %3357 = vdwg.mxu0
        %3358 = vmatpush.bf16.msra.mxu0 %v2329
        %3359 = vmatpush.bf16.msra.mxu0 %v2321
        %3360 = vmatpush.bf16.msra.mxu0 %v2313
        %3361 = vmatpush.bf16.msra.mxu0 %v2305
        %3362 = vmatpush.bf16.msra.mxu0 %v2297
        %3363 = vmatpush.bf16.msra.mxu0 %v2289
        %3364 = vmatpush.bf16.msra.mxu0 %v2281
        %3365 = vmatpush.bf16.msra.mxu0 %v2273
        %3366 = vmatmul.bf16.gmra.mxu0 %v3250
        %v3367 = vpop.f32.mrf.mxu0
        %v3368 = vadd.f32 0.0, %v3367
        %v3369 = vpop.f32.mrf.mxu0
        %3370 = vdwg.mxu0
        %3371 = vmatpush.bf16.msra.mxu0 %v2393
        %3372 = vmatpush.bf16.msra.mxu0 %v2385
        %3373 = vmatpush.bf16.msra.mxu0 %v2377
        %3374 = vmatpush.bf16.msra.mxu0 %v2369
        %3375 = vmatpush.bf16.msra.mxu0 %v2361
        %3376 = vmatpush.bf16.msra.mxu0 %v2353
        %3377 = vmatpush.bf16.msra.mxu0 %v2345
        %3378 = vmatpush.bf16.msra.mxu0 %v2337
        %3379 = vmatmul.bf16.gmra.mxu0 %v3251
        %v3380 = vpop.f32.mrf.mxu0
        %v3381 = vadd.f32 %v3368, %v3380
        %v3382 = vpop.f32.mrf.mxu0
        %3383 = vdwg.mxu0
        %3384 = vmatpush.bf16.msra.mxu0 %v2330
        %3385 = vmatpush.bf16.msra.mxu0 %v2322
        %3386 = vmatpush.bf16.msra.mxu0 %v2314
        %3387 = vmatpush.bf16.msra.mxu0 %v2306
        %3388 = vmatpush.bf16.msra.mxu0 %v2298
        %3389 = vmatpush.bf16.msra.mxu0 %v2290
        %3390 = vmatpush.bf16.msra.mxu0 %v2282
        %3391 = vmatpush.bf16.msra.mxu0 %v2274
        %3392 = vmatmul.bf16.gmra.mxu0 %v3250
        %v3393 = vpop.f32.mrf.mxu0
        %v3394 = vadd.f32 0.0, %v3393
        %v3395 = vpop.f32.mrf.mxu0
        %3396 = vdwg.mxu0
        %3397 = vmatpush.bf16.msra.mxu0 %v2394
        %3398 = vmatpush.bf16.msra.mxu0 %v2386
        %3399 = vmatpush.bf16.msra.mxu0 %v2378
        %3400 = vmatpush.bf16.msra.mxu0 %v2370
        %3401 = vmatpush.bf16.msra.mxu0 %v2362
        %3402 = vmatpush.bf16.msra.mxu0 %v2354
        %3403 = vmatpush.bf16.msra.mxu0 %v2346
        %3404 = vmatpush.bf16.msra.mxu0 %v2338
        %3405 = vmatmul.bf16.gmra.mxu0 %v3251
        %v3406 = vpop.f32.mrf.mxu0
        %v3407 = vadd.f32 %v3394, %v3406
        %v3408 = vpop.f32.mrf.mxu0
        %3409 = vdwg.mxu0
        %3410 = vmatpush.bf16.msra.mxu0 %v2331
        %3411 = vmatpush.bf16.msra.mxu0 %v2323
        %3412 = vmatpush.bf16.msra.mxu0 %v2315
        %3413 = vmatpush.bf16.msra.mxu0 %v2307
        %3414 = vmatpush.bf16.msra.mxu0 %v2299
        %3415 = vmatpush.bf16.msra.mxu0 %v2291
        %3416 = vmatpush.bf16.msra.mxu0 %v2283
        %3417 = vmatpush.bf16.msra.mxu0 %v2275
        %3418 = vmatmul.bf16.gmra.mxu0 %v3250
        %v3419 = vpop.f32.mrf.mxu0
        %v3420 = vadd.f32 0.0, %v3419
        %v3421 = vpop.f32.mrf.mxu0
        %3422 = vdwg.mxu0
        %3423 = vmatpush.bf16.msra.mxu0 %v2395
        %3424 = vmatpush.bf16.msra.mxu0 %v2387
        %3425 = vmatpush.bf16.msra.mxu0 %v2379
        %3426 = vmatpush.bf16.msra.mxu0 %v2371
        %3427 = vmatpush.bf16.msra.mxu0 %v2363
        %3428 = vmatpush.bf16.msra.mxu0 %v2355
        %3429 = vmatpush.bf16.msra.mxu0 %v2347
        %3430 = vmatpush.bf16.msra.mxu0 %v2339
        %3431 = vmatmul.bf16.gmra.mxu0 %v3251
        %v3432 = vpop.f32.mrf.mxu0
        %v3433 = vadd.f32 %v3420, %v3432
        %v3434 = vpop.f32.mrf.mxu0
        %3435 = vdwg.mxu0
        %3436 = vmatpush.bf16.msra.mxu0 %v2332
        %3437 = vmatpush.bf16.msra.mxu0 %v2324
        %3438 = vmatpush.bf16.msra.mxu0 %v2316
        %3439 = vmatpush.bf16.msra.mxu0 %v2308
        %3440 = vmatpush.bf16.msra.mxu0 %v2300
        %3441 = vmatpush.bf16.msra.mxu0 %v2292
        %3442 = vmatpush.bf16.msra.mxu0 %v2284
        %3443 = vmatpush.bf16.msra.mxu0 %v2276
        %3444 = vmatmul.bf16.gmra.mxu0 %v3250
        %v3445 = vpop.f32.mrf.mxu0
        %v3446 = vadd.f32 0.0, %v3445
        %v3447 = vpop.f32.mrf.mxu0
        %3448 = vdwg.mxu0
        %3449 = vmatpush.bf16.msra.mxu0 %v2396
        %3450 = vmatpush.bf16.msra.mxu0 %v2388
        %3451 = vmatpush.bf16.msra.mxu0 %v2380
        %3452 = vmatpush.bf16.msra.mxu0 %v2372
        %3453 = vmatpush.bf16.msra.mxu0 %v2364
        %3454 = vmatpush.bf16.msra.mxu0 %v2356
        %3455 = vmatpush.bf16.msra.mxu0 %v2348
        %3456 = vmatpush.bf16.msra.mxu0 %v2340
        %3457 = vmatmul.bf16.gmra.mxu0 %v3251
        %v3458 = vpop.f32.mrf.mxu0
        %v3459 = vadd.f32 %v3446, %v3458
        %v3460 = vpop.f32.mrf.mxu0
        %3461 = vdwg.mxu0
        %v3462 = vadd.f32 %v3239, %v3277
        %v3463 = vadd.f32 %v3240, %v3303
        %v3464 = vadd.f32 %v3241, %v3329
        %v3465 = vadd.f32 %v3242, %v3355
        %v3466 = vadd.f32 %v3243, %v3381
        %v3467 = vadd.f32 %v3244, %v3407
        %v3468 = vadd.f32 %v3245, %v3433
        %v3469 = vadd.f32 %v3246, %v3459
        %v3470 = vxor.u32 %v3462, 2147483648
        %v3471 = vxor.u32 %v3463, 2147483648
        %v3472 = vxor.u32 %v3464, 2147483648
        %v3473 = vxor.u32 %v3465, 2147483648
        %v3474 = vxor.u32 %v3466, 2147483648
        %v3475 = vxor.u32 %v3467, 2147483648
        %v3476 = vmul.f32 %v3470, 1.442695
        %v3477 = vpow.pop %v3476
        %v3478 = vmul.f32 %v3471, 1.442695
        %v3479 = vpow.pop %v3478
        %v3480 = vmul.f32 %v3472, 1.442695
        %v3481 = vpow.pop %v3480
        %v3482 = vmul.f32 %v3473, 1.442695
        %v3483 = vpow.pop %v3482
        %v3484 = vmul.f32 %v3474, 1.442695
        %v3485 = vpow.pop %v3484
        %v3486 = vmul.f32 %v3475, 1.442695
        %v3487 = vpow.pop %v3486
        %v3488 = vadd.f32 %v3477, 1.0
        %v3489 = vadd.f32 %v3479, 1.0
        %v3490 = vadd.f32 %v3481, 1.0
        %v3491 = vadd.f32 %v3483, 1.0
        %v3492 = vadd.f32 %v3485, 1.0
        %v3493 = vadd.f32 %v3487, 1.0
        %v3494 = vrcp.pop %v3488
        %v3495 = vmul.f32 %v3488, %v3494
        %v3496 = vsub.f32 1.0, %v3495
        %v3497 = vmul.f32 %v3494, %v3496
        %v3498 = vadd.f32 %v3494, %v3497
        %vm3499 = vweird.f32 %v3488
        %vm3500 = vweird.f32 %v3494
        %vm3501 = vmor %vm3499, %vm3500
        %v3502 = vsel %vm3501, %v3494, %v3498
        %v3503 = vand.u32 2147483647, %v3488
        %vm3504 = vcmp.eq.f32.partialorder %v3503, 8.507059e+37
        %v3505 = vand.u32 %v3488, 2147483648
        %v3506 = vor.u32 1.1754944e-38, %v3505
        %v3507 = vsel %vm3504, %v3506, %v3502
        %v3508 = vmul.f32 1.0, %v3507
        %v3509 = vrcp.pop %v3489
        %v3510 = vmul.f32 %v3489, %v3509
        %v3511 = vsub.f32 1.0, %v3510
        %v3512 = vmul.f32 %v3509, %v3511
        %v3513 = vadd.f32 %v3509, %v3512
        %vm3514 = vweird.f32 %v3489
        %vm3515 = vweird.f32 %v3509
        %vm3516 = vmor %vm3514, %vm3515
        %v3517 = vsel %vm3516, %v3509, %v3513
        %v3518 = vand.u32 2147483647, %v3489
        %vm3519 = vcmp.eq.f32.partialorder %v3518, 8.507059e+37
        %v3520 = vand.u32 %v3489, 2147483648
        %v3521 = vor.u32 1.1754944e-38, %v3520
        %v3522 = vsel %vm3519, %v3521, %v3517
        %v3523 = vmul.f32 1.0, %v3522
        %v3524 = vrcp.pop %v3490
        %v3525 = vmul.f32 %v3490, %v3524
        %v3526 = vsub.f32 1.0, %v3525
        %v3527 = vmul.f32 %v3524, %v3526
        %v3528 = vadd.f32 %v3524, %v3527
        %vm3529 = vweird.f32 %v3490
        %vm3530 = vweird.f32 %v3524
        %vm3531 = vmor %vm3529, %vm3530
        %v3532 = vsel %vm3531, %v3524, %v3528
        %v3533 = vand.u32 2147483647, %v3490
        %vm3534 = vcmp.eq.f32.partialorder %v3533, 8.507059e+37
        %v3535 = vand.u32 %v3490, 2147483648
        %v3536 = vor.u32 1.1754944e-38, %v3535
        %v3537 = vsel %vm3534, %v3536, %v3532
        %v3538 = vmul.f32 1.0, %v3537
        %v3539 = vrcp.pop %v3491
        %v3540 = vmul.f32 %v3491, %v3539
        %v3541 = vsub.f32 1.0, %v3540
        %v3542 = vmul.f32 %v3539, %v3541
        %v3543 = vadd.f32 %v3539, %v3542
        %vm3544 = vweird.f32 %v3491
        %vm3545 = vweird.f32 %v3539
        %vm3546 = vmor %vm3544, %vm3545
        %v3547 = vsel %vm3546, %v3539, %v3543
        %v3548 = vand.u32 2147483647, %v3491
        %vm3549 = vcmp.eq.f32.partialorder %v3548, 8.507059e+37
        %v3550 = vand.u32 %v3491, 2147483648
        %v3551 = vor.u32 1.1754944e-38, %v3550
        %v3552 = vsel %vm3549, %v3551, %v3547
        %v3553 = vmul.f32 1.0, %v3552
        %v3554 = vrcp.pop %v3492
        %v3555 = vmul.f32 %v3492, %v3554
        %v3556 = vsub.f32 1.0, %v3555
        %v3557 = vmul.f32 %v3554, %v3556
        %v3558 = vadd.f32 %v3554, %v3557
        %vm3559 = vweird.f32 %v3492
        %vm3560 = vweird.f32 %v3554
        %vm3561 = vmor %vm3559, %vm3560
        %v3562 = vsel %vm3561, %v3554, %v3558
        %v3563 = vand.u32 2147483647, %v3492
        %vm3564 = vcmp.eq.f32.partialorder %v3563, 8.507059e+37
        %v3565 = vand.u32 %v3492, 2147483648
        %v3566 = vor.u32 1.1754944e-38, %v3565
        %v3567 = vsel %vm3564, %v3566, %v3562
        %v3568 = vmul.f32 1.0, %v3567
        %v3569 = vrcp.pop %v3493
        %v3570 = vmul.f32 %v3493, %v3569
        %v3571 = vsub.f32 1.0, %v3570
        %v3572 = vmul.f32 %v3569, %v3571
        %v3573 = vadd.f32 %v3569, %v3572
        %vm3574 = vweird.f32 %v3493
        %vm3575 = vweird.f32 %v3569
        %vm3576 = vmor %vm3574, %vm3575
        %v3577 = vsel %vm3576, %v3569, %v3573
        %v3578 = vand.u32 2147483647, %v3493
        %vm3579 = vcmp.eq.f32.partialorder %v3578, 8.507059e+37
        %v3580 = vand.u32 %v3493, 2147483648
        %v3581 = vor.u32 1.1754944e-38, %v3580
        %v3582 = vsel %vm3579, %v3581, %v3577
        %v3583 = vmul.f32 1.0, %v3582
        %v3584 = vtanh.pop %v3468
        %v3585 = vtanh.pop %v3469
        %v3586 = vmul.f32 %v3538, %v3225
        %v3587 = vmul.f32 %v3553, %v3226
        %v3588 = vmul.f32 %v3508, %v3584
        %v3589 = vmul.f32 %v3523, %v3585
        %v3590 = vadd.f32 %v3586, %v3588
        %v3591 = vadd.f32 %v3587, %v3589
        %v3592 = vtanh.pop %v3590
        %v3593 = vtanh.pop %v3591
        %v3594 = vmul.f32 %v3568, %v3592
        %v3595 = vmul.f32 %v3583, %v3593
        %v3596 = vpack.c.bf16 %v3595, %v3594
        %s3597 = scalar_lea.vmem %s6, 16
        %3598 = vst [vmem:[%s3597] sm:$0xff] %v3596
        %s3599 = scalar_lea.vmem [#allocation2], 96
        %v3600 = vld [vmem:[%s3599] sm:$0xff]
        %v3601 = vld [vmem:[%s3599 + $0x8] sm:$0xff]
        %v3602 = vld [vmem:[%s3599 + $0x10] sm:$0xff]
        %v3603 = vld [vmem:[%s3599 + $0x18] sm:$0xff]
        %v3604 = vunpack.c.l.bf16 %v3600
        %v3605 = vunpack.c.h.bf16 %v3600
        %v3606 = vunpack.c.l.bf16 %v3601
        %v3607 = vunpack.c.h.bf16 %v3601
        %v3608 = vunpack.c.l.bf16 %v3602
        %v3609 = vunpack.c.h.bf16 %v3602
        %v3610 = vunpack.c.l.bf16 %v3603
        %v3611 = vunpack.c.h.bf16 %v3603
        %v3613 = vunpack.c.l.b16 %v3596
        %v3614 = vunpack.c.h.b16 %v3596
        %v3615 = vpack.c.b16 %v3613, %v3613
        %v3616 = vpack.c.b16 %v3614, %v3614
        %3619 = vmatpush.bf16.msra.mxu0 %v2325
        %3620 = vmatpush.bf16.msra.mxu0 %v2317
        %3621 = vmatpush.bf16.msra.mxu0 %v2309
        %3622 = vmatpush.bf16.msra.mxu0 %v2301
        %3623 = vmatpush.bf16.msra.mxu0 %v2293
        %3624 = vmatpush.bf16.msra.mxu0 %v2285
        %3625 = vmatpush.bf16.msra.mxu0 %v2277
        %3626 = vmatpush.bf16.msra.mxu0 %v2269
        %3627 = vmatmul.bf16.gmra.mxu0 %v3615
        %v3628 = vpop.f32.mrf.mxu0
        %v3629 = vadd.f32 0.0, %v3628
        %v3630 = vpop.f32.mrf.mxu0
        %3631 = vdwg.mxu0
        %3632 = vmatpush.bf16.msra.mxu0 %v2389
        %3633 = vmatpush.bf16.msra.mxu0 %v2381
        %3634 = vmatpush.bf16.msra.mxu0 %v2373
        %3635 = vmatpush.bf16.msra.mxu0 %v2365
        %3636 = vmatpush.bf16.msra.mxu0 %v2357
        %3637 = vmatpush.bf16.msra.mxu0 %v2349
        %3638 = vmatpush.bf16.msra.mxu0 %v2341
        %3639 = vmatpush.bf16.msra.mxu0 %v2333
        %3640 = vmatmul.bf16.gmra.mxu0 %v3616
        %v3641 = vpop.f32.mrf.mxu0
        %v3642 = vadd.f32 %v3629, %v3641
        %v3643 = vpop.f32.mrf.mxu0
        %3644 = vdwg.mxu0
        %3645 = vmatpush.bf16.msra.mxu0 %v2326
        %3646 = vmatpush.bf16.msra.mxu0 %v2318
        %3647 = vmatpush.bf16.msra.mxu0 %v2310
        %3648 = vmatpush.bf16.msra.mxu0 %v2302
        %3649 = vmatpush.bf16.msra.mxu0 %v2294
        %3650 = vmatpush.bf16.msra.mxu0 %v2286
        %3651 = vmatpush.bf16.msra.mxu0 %v2278
        %3652 = vmatpush.bf16.msra.mxu0 %v2270
        %3653 = vmatmul.bf16.gmra.mxu0 %v3615
        %v3654 = vpop.f32.mrf.mxu0
        %v3655 = vadd.f32 0.0, %v3654
        %v3656 = vpop.f32.mrf.mxu0
        %3657 = vdwg.mxu0
        %3658 = vmatpush.bf16.msra.mxu0 %v2390
        %3659 = vmatpush.bf16.msra.mxu0 %v2382
        %3660 = vmatpush.bf16.msra.mxu0 %v2374
        %3661 = vmatpush.bf16.msra.mxu0 %v2366
        %3662 = vmatpush.bf16.msra.mxu0 %v2358
        %3663 = vmatpush.bf16.msra.mxu0 %v2350
        %3664 = vmatpush.bf16.msra.mxu0 %v2342
        %3665 = vmatpush.bf16.msra.mxu0 %v2334
        %3666 = vmatmul.bf16.gmra.mxu0 %v3616
        %v3667 = vpop.f32.mrf.mxu0
        %v3668 = vadd.f32 %v3655, %v3667
        %v3669 = vpop.f32.mrf.mxu0
        %3670 = vdwg.mxu0
        %3671 = vmatpush.bf16.msra.mxu0 %v2327
        %3672 = vmatpush.bf16.msra.mxu0 %v2319
        %3673 = vmatpush.bf16.msra.mxu0 %v2311
        %3674 = vmatpush.bf16.msra.mxu0 %v2303
        %3675 = vmatpush.bf16.msra.mxu0 %v2295
        %3676 = vmatpush.bf16.msra.mxu0 %v2287
        %3677 = vmatpush.bf16.msra.mxu0 %v2279
        %3678 = vmatpush.bf16.msra.mxu0 %v2271
        %3679 = vmatmul.bf16.gmra.mxu0 %v3615
        %v3680 = vpop.f32.mrf.mxu0
        %v3681 = vadd.f32 0.0, %v3680
        %v3682 = vpop.f32.mrf.mxu0
        %3683 = vdwg.mxu0
        %3684 = vmatpush.bf16.msra.mxu0 %v2391
        %3685 = vmatpush.bf16.msra.mxu0 %v2383
        %3686 = vmatpush.bf16.msra.mxu0 %v2375
        %3687 = vmatpush.bf16.msra.mxu0 %v2367
        %3688 = vmatpush.bf16.msra.mxu0 %v2359
        %3689 = vmatpush.bf16.msra.mxu0 %v2351
        %3690 = vmatpush.bf16.msra.mxu0 %v2343
        %3691 = vmatpush.bf16.msra.mxu0 %v2335
        %3692 = vmatmul.bf16.gmra.mxu0 %v3616
        %v3693 = vpop.f32.mrf.mxu0
        %v3694 = vadd.f32 %v3681, %v3693
        %v3695 = vpop.f32.mrf.mxu0
        %3696 = vdwg.mxu0
        %3697 = vmatpush.bf16.msra.mxu0 %v2328
        %3698 = vmatpush.bf16.msra.mxu0 %v2320
        %3699 = vmatpush.bf16.msra.mxu0 %v2312
        %3700 = vmatpush.bf16.msra.mxu0 %v2304
        %3701 = vmatpush.bf16.msra.mxu0 %v2296
        %3702 = vmatpush.bf16.msra.mxu0 %v2288
        %3703 = vmatpush.bf16.msra.mxu0 %v2280
        %3704 = vmatpush.bf16.msra.mxu0 %v2272
        %3705 = vmatmul.bf16.gmra.mxu0 %v3615
        %v3706 = vpop.f32.mrf.mxu0
        %v3707 = vadd.f32 0.0, %v3706
        %v3708 = vpop.f32.mrf.mxu0
        %3709 = vdwg.mxu0
        %3710 = vmatpush.bf16.msra.mxu0 %v2392
        %3711 = vmatpush.bf16.msra.mxu0 %v2384
        %3712 = vmatpush.bf16.msra.mxu0 %v2376
        %3713 = vmatpush.bf16.msra.mxu0 %v2368
        %3714 = vmatpush.bf16.msra.mxu0 %v2360
        %3715 = vmatpush.bf16.msra.mxu0 %v2352
        %3716 = vmatpush.bf16.msra.mxu0 %v2344
        %3717 = vmatpush.bf16.msra.mxu0 %v2336
        %3718 = vmatmul.bf16.gmra.mxu0 %v3616
        %v3719 = vpop.f32.mrf.mxu0
        %v3720 = vadd.f32 %v3707, %v3719
        %v3721 = vpop.f32.mrf.mxu0
        %3722 = vdwg.mxu0
        %3723 = vmatpush.bf16.msra.mxu0 %v2329
        %3724 = vmatpush.bf16.msra.mxu0 %v2321
        %3725 = vmatpush.bf16.msra.mxu0 %v2313
        %3726 = vmatpush.bf16.msra.mxu0 %v2305
        %3727 = vmatpush.bf16.msra.mxu0 %v2297
        %3728 = vmatpush.bf16.msra.mxu0 %v2289
        %3729 = vmatpush.bf16.msra.mxu0 %v2281
        %3730 = vmatpush.bf16.msra.mxu0 %v2273
        %3731 = vmatmul.bf16.gmra.mxu0 %v3615
        %v3732 = vpop.f32.mrf.mxu0
        %v3733 = vadd.f32 0.0, %v3732
        %v3734 = vpop.f32.mrf.mxu0
        %3735 = vdwg.mxu0
        %3736 = vmatpush.bf16.msra.mxu0 %v2393
        %3737 = vmatpush.bf16.msra.mxu0 %v2385
        %3738 = vmatpush.bf16.msra.mxu0 %v2377
        %3739 = vmatpush.bf16.msra.mxu0 %v2369
        %3740 = vmatpush.bf16.msra.mxu0 %v2361
        %3741 = vmatpush.bf16.msra.mxu0 %v2353
        %3742 = vmatpush.bf16.msra.mxu0 %v2345
        %3743 = vmatpush.bf16.msra.mxu0 %v2337
        %3744 = vmatmul.bf16.gmra.mxu0 %v3616
        %v3745 = vpop.f32.mrf.mxu0
        %v3746 = vadd.f32 %v3733, %v3745
        %v3747 = vpop.f32.mrf.mxu0
        %3748 = vdwg.mxu0
        %3749 = vmatpush.bf16.msra.mxu0 %v2330
        %3750 = vmatpush.bf16.msra.mxu0 %v2322
        %3751 = vmatpush.bf16.msra.mxu0 %v2314
        %3752 = vmatpush.bf16.msra.mxu0 %v2306
        %3753 = vmatpush.bf16.msra.mxu0 %v2298
        %3754 = vmatpush.bf16.msra.mxu0 %v2290
        %3755 = vmatpush.bf16.msra.mxu0 %v2282
        %3756 = vmatpush.bf16.msra.mxu0 %v2274
        %3757 = vmatmul.bf16.gmra.mxu0 %v3615
        %v3758 = vpop.f32.mrf.mxu0
        %v3759 = vadd.f32 0.0, %v3758
        %v3760 = vpop.f32.mrf.mxu0
        %3761 = vdwg.mxu0
        %3762 = vmatpush.bf16.msra.mxu0 %v2394
        %3763 = vmatpush.bf16.msra.mxu0 %v2386
        %3764 = vmatpush.bf16.msra.mxu0 %v2378
        %3765 = vmatpush.bf16.msra.mxu0 %v2370
        %3766 = vmatpush.bf16.msra.mxu0 %v2362
        %3767 = vmatpush.bf16.msra.mxu0 %v2354
        %3768 = vmatpush.bf16.msra.mxu0 %v2346
        %3769 = vmatpush.bf16.msra.mxu0 %v2338
        %3770 = vmatmul.bf16.gmra.mxu0 %v3616
        %v3771 = vpop.f32.mrf.mxu0
        %v3772 = vadd.f32 %v3759, %v3771
        %v3773 = vpop.f32.mrf.mxu0
        %3774 = vdwg.mxu0
        %3775 = vmatpush.bf16.msra.mxu0 %v2331
        %3776 = vmatpush.bf16.msra.mxu0 %v2323
        %3777 = vmatpush.bf16.msra.mxu0 %v2315
        %3778 = vmatpush.bf16.msra.mxu0 %v2307
        %3779 = vmatpush.bf16.msra.mxu0 %v2299
        %3780 = vmatpush.bf16.msra.mxu0 %v2291
        %3781 = vmatpush.bf16.msra.mxu0 %v2283
        %3782 = vmatpush.bf16.msra.mxu0 %v2275
        %3783 = vmatmul.bf16.gmra.mxu0 %v3615
        %v3784 = vpop.f32.mrf.mxu0
        %v3785 = vadd.f32 0.0, %v3784
        %v3786 = vpop.f32.mrf.mxu0
        %3787 = vdwg.mxu0
        %3788 = vmatpush.bf16.msra.mxu0 %v2395
        %3789 = vmatpush.bf16.msra.mxu0 %v2387
        %3790 = vmatpush.bf16.msra.mxu0 %v2379
        %3791 = vmatpush.bf16.msra.mxu0 %v2371
        %3792 = vmatpush.bf16.msra.mxu0 %v2363
        %3793 = vmatpush.bf16.msra.mxu0 %v2355
        %3794 = vmatpush.bf16.msra.mxu0 %v2347
        %3795 = vmatpush.bf16.msra.mxu0 %v2339
        %3796 = vmatmul.bf16.gmra.mxu0 %v3616
        %v3797 = vpop.f32.mrf.mxu0
        %v3798 = vadd.f32 %v3785, %v3797
        %v3799 = vpop.f32.mrf.mxu0
        %3800 = vdwg.mxu0
        %3801 = vmatpush.bf16.msra.mxu0 %v2332
        %3802 = vmatpush.bf16.msra.mxu0 %v2324
        %3803 = vmatpush.bf16.msra.mxu0 %v2316
        %3804 = vmatpush.bf16.msra.mxu0 %v2308
        %3805 = vmatpush.bf16.msra.mxu0 %v2300
        %3806 = vmatpush.bf16.msra.mxu0 %v2292
        %3807 = vmatpush.bf16.msra.mxu0 %v2284
        %3808 = vmatpush.bf16.msra.mxu0 %v2276
        %3809 = vmatmul.bf16.gmra.mxu0 %v3615
        %v3810 = vpop.f32.mrf.mxu0
        %v3811 = vadd.f32 0.0, %v3810
        %v3812 = vpop.f32.mrf.mxu0
        %3813 = vdwg.mxu0
        %3814 = vmatpush.bf16.msra.mxu0 %v2396
        %3815 = vmatpush.bf16.msra.mxu0 %v2388
        %3816 = vmatpush.bf16.msra.mxu0 %v2380
        %3817 = vmatpush.bf16.msra.mxu0 %v2372
        %3818 = vmatpush.bf16.msra.mxu0 %v2364
        %3819 = vmatpush.bf16.msra.mxu0 %v2356
        %3820 = vmatpush.bf16.msra.mxu0 %v2348
        %3821 = vmatpush.bf16.msra.mxu0 %v2340
        %3822 = vmatmul.bf16.gmra.mxu0 %v3616
        %v3823 = vpop.f32.mrf.mxu0
        %v3824 = vadd.f32 %v3811, %v3823
        %v3825 = vpop.f32.mrf.mxu0
        %3826 = vdwg.mxu0
        %v3827 = vadd.f32 %v3604, %v3642
        %v3828 = vadd.f32 %v3605, %v3668
        %v3829 = vadd.f32 %v3606, %v3694
        %v3830 = vadd.f32 %v3607, %v3720
        %v3831 = vadd.f32 %v3608, %v3746
        %v3832 = vadd.f32 %v3609, %v3772
        %v3833 = vadd.f32 %v3610, %v3798
        %v3834 = vadd.f32 %v3611, %v3824
        %v3835 = vxor.u32 %v3827, 2147483648
        %v3836 = vxor.u32 %v3828, 2147483648
        %v3837 = vxor.u32 %v3829, 2147483648
        %v3838 = vxor.u32 %v3830, 2147483648
        %v3839 = vxor.u32 %v3831, 2147483648
        %v3840 = vxor.u32 %v3832, 2147483648
        %v3841 = vmul.f32 %v3835, 1.442695
        %v3842 = vpow.pop %v3841
        %v3843 = vmul.f32 %v3836, 1.442695
        %v3844 = vpow.pop %v3843
        %v3845 = vmul.f32 %v3837, 1.442695
        %v3846 = vpow.pop %v3845
        %v3847 = vmul.f32 %v3838, 1.442695
        %v3848 = vpow.pop %v3847
        %v3849 = vmul.f32 %v3839, 1.442695
        %v3850 = vpow.pop %v3849
        %v3851 = vmul.f32 %v3840, 1.442695
        %v3852 = vpow.pop %v3851
        %v3853 = vadd.f32 %v3842, 1.0
        %v3854 = vadd.f32 %v3844, 1.0
        %v3855 = vadd.f32 %v3846, 1.0
        %v3856 = vadd.f32 %v3848, 1.0
        %v3857 = vadd.f32 %v3850, 1.0
        %v3858 = vadd.f32 %v3852, 1.0
        %v3859 = vrcp.pop %v3853
        %v3860 = vmul.f32 %v3853, %v3859
        %v3861 = vsub.f32 1.0, %v3860
        %v3862 = vmul.f32 %v3859, %v3861
        %v3863 = vadd.f32 %v3859, %v3862
        %vm3864 = vweird.f32 %v3853
        %vm3865 = vweird.f32 %v3859
        %vm3866 = vmor %vm3864, %vm3865
        %v3867 = vsel %vm3866, %v3859, %v3863
        %v3868 = vand.u32 2147483647, %v3853
        %vm3869 = vcmp.eq.f32.partialorder %v3868, 8.507059e+37
        %v3870 = vand.u32 %v3853, 2147483648
        %v3871 = vor.u32 1.1754944e-38, %v3870
        %v3872 = vsel %vm3869, %v3871, %v3867
        %v3873 = vmul.f32 1.0, %v3872
        %v3874 = vrcp.pop %v3854
        %v3875 = vmul.f32 %v3854, %v3874
        %v3876 = vsub.f32 1.0, %v3875
        %v3877 = vmul.f32 %v3874, %v3876
        %v3878 = vadd.f32 %v3874, %v3877
        %vm3879 = vweird.f32 %v3854
        %vm3880 = vweird.f32 %v3874
        %vm3881 = vmor %vm3879, %vm3880
        %v3882 = vsel %vm3881, %v3874, %v3878
        %v3883 = vand.u32 2147483647, %v3854
        %vm3884 = vcmp.eq.f32.partialorder %v3883, 8.507059e+37
        %v3885 = vand.u32 %v3854, 2147483648
        %v3886 = vor.u32 1.1754944e-38, %v3885
        %v3887 = vsel %vm3884, %v3886, %v3882
        %v3888 = vmul.f32 1.0, %v3887
        %v3889 = vrcp.pop %v3855
        %v3890 = vmul.f32 %v3855, %v3889
        %v3891 = vsub.f32 1.0, %v3890
        %v3892 = vmul.f32 %v3889, %v3891
        %v3893 = vadd.f32 %v3889, %v3892
        %vm3894 = vweird.f32 %v3855
        %vm3895 = vweird.f32 %v3889
        %vm3896 = vmor %vm3894, %vm3895
        %v3897 = vsel %vm3896, %v3889, %v3893
        %v3898 = vand.u32 2147483647, %v3855
        %vm3899 = vcmp.eq.f32.partialorder %v3898, 8.507059e+37
        %v3900 = vand.u32 %v3855, 2147483648
        %v3901 = vor.u32 1.1754944e-38, %v3900
        %v3902 = vsel %vm3899, %v3901, %v3897
        %v3903 = vmul.f32 1.0, %v3902
        %v3904 = vrcp.pop %v3856
        %v3905 = vmul.f32 %v3856, %v3904
        %v3906 = vsub.f32 1.0, %v3905
        %v3907 = vmul.f32 %v3904, %v3906
        %v3908 = vadd.f32 %v3904, %v3907
        %vm3909 = vweird.f32 %v3856
        %vm3910 = vweird.f32 %v3904
        %vm3911 = vmor %vm3909, %vm3910
        %v3912 = vsel %vm3911, %v3904, %v3908
        %v3913 = vand.u32 2147483647, %v3856
        %vm3914 = vcmp.eq.f32.partialorder %v3913, 8.507059e+37
        %v3915 = vand.u32 %v3856, 2147483648
        %v3916 = vor.u32 1.1754944e-38, %v3915
        %v3917 = vsel %vm3914, %v3916, %v3912
        %v3918 = vmul.f32 1.0, %v3917
        %v3919 = vrcp.pop %v3857
        %v3920 = vmul.f32 %v3857, %v3919
        %v3921 = vsub.f32 1.0, %v3920
        %v3922 = vmul.f32 %v3919, %v3921
        %v3923 = vadd.f32 %v3919, %v3922
        %vm3924 = vweird.f32 %v3857
        %vm3925 = vweird.f32 %v3919
        %vm3926 = vmor %vm3924, %vm3925
        %v3927 = vsel %vm3926, %v3919, %v3923
        %v3928 = vand.u32 2147483647, %v3857
        %vm3929 = vcmp.eq.f32.partialorder %v3928, 8.507059e+37
        %v3930 = vand.u32 %v3857, 2147483648
        %v3931 = vor.u32 1.1754944e-38, %v3930
        %v3932 = vsel %vm3929, %v3931, %v3927
        %v3933 = vmul.f32 1.0, %v3932
        %v3934 = vrcp.pop %v3858
        %v3935 = vmul.f32 %v3858, %v3934
        %v3936 = vsub.f32 1.0, %v3935
        %v3937 = vmul.f32 %v3934, %v3936
        %v3938 = vadd.f32 %v3934, %v3937
        %vm3939 = vweird.f32 %v3858
        %vm3940 = vweird.f32 %v3934
        %vm3941 = vmor %vm3939, %vm3940
        %v3942 = vsel %vm3941, %v3934, %v3938
        %v3943 = vand.u32 2147483647, %v3858
        %vm3944 = vcmp.eq.f32.partialorder %v3943, 8.507059e+37
        %v3945 = vand.u32 %v3858, 2147483648
        %v3946 = vor.u32 1.1754944e-38, %v3945
        %v3947 = vsel %vm3944, %v3946, %v3942
        %v3948 = vmul.f32 1.0, %v3947
        %v3949 = vtanh.pop %v3833
        %v3950 = vtanh.pop %v3834
        %v3951 = vmul.f32 %v3903, %v3590
        %v3952 = vmul.f32 %v3918, %v3591
        %v3953 = vmul.f32 %v3873, %v3949
        %v3954 = vmul.f32 %v3888, %v3950
        %v3955 = vadd.f32 %v3951, %v3953
        %v3956 = vadd.f32 %v3952, %v3954
        %v3957 = vtanh.pop %v3955
        %v3958 = vtanh.pop %v3956
        %v3959 = vmul.f32 %v3933, %v3957
        %v3960 = vmul.f32 %v3948, %v3958
        %v3961 = vpack.c.bf16 %v3960, %v3959
        %s3962 = scalar_lea.vmem %s6, 24
        %3963 = vst [vmem:[%s3962] sm:$0xff] %v3961
        %s3964 = scalar_lea.vmem [#allocation2], 128
        %v3965 = vld [vmem:[%s3964] sm:$0xff]
        %v3966 = vld [vmem:[%s3964 + $0x8] sm:$0xff]
        %v3967 = vld [vmem:[%s3964 + $0x10] sm:$0xff]
        %v3968 = vld [vmem:[%s3964 + $0x18] sm:$0xff]
        %v3969 = vunpack.c.l.bf16 %v3965
        %v3970 = vunpack.c.h.bf16 %v3965
        %v3971 = vunpack.c.l.bf16 %v3966
        %v3972 = vunpack.c.h.bf16 %v3966
        %v3973 = vunpack.c.l.bf16 %v3967
        %v3974 = vunpack.c.h.bf16 %v3967
        %v3975 = vunpack.c.l.bf16 %v3968
        %v3976 = vunpack.c.h.bf16 %v3968
        %v3978 = vunpack.c.l.b16 %v3961
        %v3979 = vunpack.c.h.b16 %v3961
        %v3980 = vpack.c.b16 %v3978, %v3978
        %v3981 = vpack.c.b16 %v3979, %v3979
        %3984 = vmatpush.bf16.msra.mxu0 %v2325
        %3985 = vmatpush.bf16.msra.mxu0 %v2317
        %3986 = vmatpush.bf16.msra.mxu0 %v2309
        %3987 = vmatpush.bf16.msra.mxu0 %v2301
        %3988 = vmatpush.bf16.msra.mxu0 %v2293
        %3989 = vmatpush.bf16.msra.mxu0 %v2285
        %3990 = vmatpush.bf16.msra.mxu0 %v2277
        %3991 = vmatpush.bf16.msra.mxu0 %v2269
        %3992 = vmatmul.bf16.gmra.mxu0 %v3980
        %v3993 = vpop.f32.mrf.mxu0
        %v3994 = vadd.f32 0.0, %v3993
        %v3995 = vpop.f32.mrf.mxu0
        %3996 = vdwg.mxu0
        %3997 = vmatpush.bf16.msra.mxu0 %v2389
        %3998 = vmatpush.bf16.msra.mxu0 %v2381
        %3999 = vmatpush.bf16.msra.mxu0 %v2373
        %4000 = vmatpush.bf16.msra.mxu0 %v2365
        %4001 = vmatpush.bf16.msra.mxu0 %v2357
        %4002 = vmatpush.bf16.msra.mxu0 %v2349
        %4003 = vmatpush.bf16.msra.mxu0 %v2341
        %4004 = vmatpush.bf16.msra.mxu0 %v2333
        %4005 = vmatmul.bf16.gmra.mxu0 %v3981
        %v4006 = vpop.f32.mrf.mxu0
        %v4007 = vadd.f32 %v3994, %v4006
        %v4008 = vpop.f32.mrf.mxu0
        %4009 = vdwg.mxu0
        %4010 = vmatpush.bf16.msra.mxu0 %v2326
        %4011 = vmatpush.bf16.msra.mxu0 %v2318
        %4012 = vmatpush.bf16.msra.mxu0 %v2310
        %4013 = vmatpush.bf16.msra.mxu0 %v2302
        %4014 = vmatpush.bf16.msra.mxu0 %v2294
        %4015 = vmatpush.bf16.msra.mxu0 %v2286
        %4016 = vmatpush.bf16.msra.mxu0 %v2278
        %4017 = vmatpush.bf16.msra.mxu0 %v2270
        %4018 = vmatmul.bf16.gmra.mxu0 %v3980
        %v4019 = vpop.f32.mrf.mxu0
        %v4020 = vadd.f32 0.0, %v4019
        %v4021 = vpop.f32.mrf.mxu0
        %4022 = vdwg.mxu0
        %4023 = vmatpush.bf16.msra.mxu0 %v2390
        %4024 = vmatpush.bf16.msra.mxu0 %v2382
        %4025 = vmatpush.bf16.msra.mxu0 %v2374
        %4026 = vmatpush.bf16.msra.mxu0 %v2366
        %4027 = vmatpush.bf16.msra.mxu0 %v2358
        %4028 = vmatpush.bf16.msra.mxu0 %v2350
        %4029 = vmatpush.bf16.msra.mxu0 %v2342
        %4030 = vmatpush.bf16.msra.mxu0 %v2334
        %4031 = vmatmul.bf16.gmra.mxu0 %v3981
        %v4032 = vpop.f32.mrf.mxu0
        %v4033 = vadd.f32 %v4020, %v4032
        %v4034 = vpop.f32.mrf.mxu0
        %4035 = vdwg.mxu0
        %4036 = vmatpush.bf16.msra.mxu0 %v2327
        %4037 = vmatpush.bf16.msra.mxu0 %v2319
        %4038 = vmatpush.bf16.msra.mxu0 %v2311
        %4039 = vmatpush.bf16.msra.mxu0 %v2303
        %4040 = vmatpush.bf16.msra.mxu0 %v2295
        %4041 = vmatpush.bf16.msra.mxu0 %v2287
        %4042 = vmatpush.bf16.msra.mxu0 %v2279
        %4043 = vmatpush.bf16.msra.mxu0 %v2271
        %4044 = vmatmul.bf16.gmra.mxu0 %v3980
        %v4045 = vpop.f32.mrf.mxu0
        %v4046 = vadd.f32 0.0, %v4045
        %v4047 = vpop.f32.mrf.mxu0
        %4048 = vdwg.mxu0
        %4049 = vmatpush.bf16.msra.mxu0 %v2391
        %4050 = vmatpush.bf16.msra.mxu0 %v2383
        %4051 = vmatpush.bf16.msra.mxu0 %v2375
        %4052 = vmatpush.bf16.msra.mxu0 %v2367
        %4053 = vmatpush.bf16.msra.mxu0 %v2359
        %4054 = vmatpush.bf16.msra.mxu0 %v2351
        %4055 = vmatpush.bf16.msra.mxu0 %v2343
        %4056 = vmatpush.bf16.msra.mxu0 %v2335
        %4057 = vmatmul.bf16.gmra.mxu0 %v3981
        %v4058 = vpop.f32.mrf.mxu0
        %v4059 = vadd.f32 %v4046, %v4058
        %v4060 = vpop.f32.mrf.mxu0
        %4061 = vdwg.mxu0
        %4062 = vmatpush.bf16.msra.mxu0 %v2328
        %4063 = vmatpush.bf16.msra.mxu0 %v2320
        %4064 = vmatpush.bf16.msra.mxu0 %v2312
        %4065 = vmatpush.bf16.msra.mxu0 %v2304
        %4066 = vmatpush.bf16.msra.mxu0 %v2296
        %4067 = vmatpush.bf16.msra.mxu0 %v2288
        %4068 = vmatpush.bf16.msra.mxu0 %v2280
        %4069 = vmatpush.bf16.msra.mxu0 %v2272
        %4070 = vmatmul.bf16.gmra.mxu0 %v3980
        %v4071 = vpop.f32.mrf.mxu0
        %v4072 = vadd.f32 0.0, %v4071
        %v4073 = vpop.f32.mrf.mxu0
        %4074 = vdwg.mxu0
        %4075 = vmatpush.bf16.msra.mxu0 %v2392
        %4076 = vmatpush.bf16.msra.mxu0 %v2384
        %4077 = vmatpush.bf16.msra.mxu0 %v2376
        %4078 = vmatpush.bf16.msra.mxu0 %v2368
        %4079 = vmatpush.bf16.msra.mxu0 %v2360
        %4080 = vmatpush.bf16.msra.mxu0 %v2352
        %4081 = vmatpush.bf16.msra.mxu0 %v2344
        %4082 = vmatpush.bf16.msra.mxu0 %v2336
        %4083 = vmatmul.bf16.gmra.mxu0 %v3981
        %v4084 = vpop.f32.mrf.mxu0
        %v4085 = vadd.f32 %v4072, %v4084
        %v4086 = vpop.f32.mrf.mxu0
        %4087 = vdwg.mxu0
        %4088 = vmatpush.bf16.msra.mxu0 %v2329
        %4089 = vmatpush.bf16.msra.mxu0 %v2321
        %4090 = vmatpush.bf16.msra.mxu0 %v2313
        %4091 = vmatpush.bf16.msra.mxu0 %v2305
        %4092 = vmatpush.bf16.msra.mxu0 %v2297
        %4093 = vmatpush.bf16.msra.mxu0 %v2289
        %4094 = vmatpush.bf16.msra.mxu0 %v2281
        %4095 = vmatpush.bf16.msra.mxu0 %v2273
        %4096 = vmatmul.bf16.gmra.mxu0 %v3980
        %v4097 = vpop.f32.mrf.mxu0
        %v4098 = vadd.f32 0.0, %v4097
        %v4099 = vpop.f32.mrf.mxu0
        %4100 = vdwg.mxu0
        %4101 = vmatpush.bf16.msra.mxu0 %v2393
        %4102 = vmatpush.bf16.msra.mxu0 %v2385
        %4103 = vmatpush.bf16.msra.mxu0 %v2377
        %4104 = vmatpush.bf16.msra.mxu0 %v2369
        %4105 = vmatpush.bf16.msra.mxu0 %v2361
        %4106 = vmatpush.bf16.msra.mxu0 %v2353
        %4107 = vmatpush.bf16.msra.mxu0 %v2345
        %4108 = vmatpush.bf16.msra.mxu0 %v2337
        %4109 = vmatmul.bf16.gmra.mxu0 %v3981
        %v4110 = vpop.f32.mrf.mxu0
        %v4111 = vadd.f32 %v4098, %v4110
        %v4112 = vpop.f32.mrf.mxu0
        %4113 = vdwg.mxu0
        %4114 = vmatpush.bf16.msra.mxu0 %v2330
        %4115 = vmatpush.bf16.msra.mxu0 %v2322
        %4116 = vmatpush.bf16.msra.mxu0 %v2314
        %4117 = vmatpush.bf16.msra.mxu0 %v2306
        %4118 = vmatpush.bf16.msra.mxu0 %v2298
        %4119 = vmatpush.bf16.msra.mxu0 %v2290
        %4120 = vmatpush.bf16.msra.mxu0 %v2282
        %4121 = vmatpush.bf16.msra.mxu0 %v2274
        %4122 = vmatmul.bf16.gmra.mxu0 %v3980
        %v4123 = vpop.f32.mrf.mxu0
        %v4124 = vadd.f32 0.0, %v4123
        %v4125 = vpop.f32.mrf.mxu0
        %4126 = vdwg.mxu0
        %4127 = vmatpush.bf16.msra.mxu0 %v2394
        %4128 = vmatpush.bf16.msra.mxu0 %v2386
        %4129 = vmatpush.bf16.msra.mxu0 %v2378
        %4130 = vmatpush.bf16.msra.mxu0 %v2370
        %4131 = vmatpush.bf16.msra.mxu0 %v2362
        %4132 = vmatpush.bf16.msra.mxu0 %v2354
        %4133 = vmatpush.bf16.msra.mxu0 %v2346
        %4134 = vmatpush.bf16.msra.mxu0 %v2338
        %4135 = vmatmul.bf16.gmra.mxu0 %v3981
        %v4136 = vpop.f32.mrf.mxu0
        %v4137 = vadd.f32 %v4124, %v4136
        %v4138 = vpop.f32.mrf.mxu0
        %4139 = vdwg.mxu0
        %4140 = vmatpush.bf16.msra.mxu0 %v2331
        %4141 = vmatpush.bf16.msra.mxu0 %v2323
        %4142 = vmatpush.bf16.msra.mxu0 %v2315
        %4143 = vmatpush.bf16.msra.mxu0 %v2307
        %4144 = vmatpush.bf16.msra.mxu0 %v2299
        %4145 = vmatpush.bf16.msra.mxu0 %v2291
        %4146 = vmatpush.bf16.msra.mxu0 %v2283
        %4147 = vmatpush.bf16.msra.mxu0 %v2275
        %4148 = vmatmul.bf16.gmra.mxu0 %v3980
        %v4149 = vpop.f32.mrf.mxu0
        %v4150 = vadd.f32 0.0, %v4149
        %v4151 = vpop.f32.mrf.mxu0
        %4152 = vdwg.mxu0
        %4153 = vmatpush.bf16.msra.mxu0 %v2395
        %4154 = vmatpush.bf16.msra.mxu0 %v2387
        %4155 = vmatpush.bf16.msra.mxu0 %v2379
        %4156 = vmatpush.bf16.msra.mxu0 %v2371
        %4157 = vmatpush.bf16.msra.mxu0 %v2363
        %4158 = vmatpush.bf16.msra.mxu0 %v2355
        %4159 = vmatpush.bf16.msra.mxu0 %v2347
        %4160 = vmatpush.bf16.msra.mxu0 %v2339
        %4161 = vmatmul.bf16.gmra.mxu0 %v3981
        %v4162 = vpop.f32.mrf.mxu0
        %v4163 = vadd.f32 %v4150, %v4162
        %v4164 = vpop.f32.mrf.mxu0
        %4165 = vdwg.mxu0
        %4166 = vmatpush.bf16.msra.mxu0 %v2332
        %4167 = vmatpush.bf16.msra.mxu0 %v2324
        %4168 = vmatpush.bf16.msra.mxu0 %v2316
        %4169 = vmatpush.bf16.msra.mxu0 %v2308
        %4170 = vmatpush.bf16.msra.mxu0 %v2300
        %4171 = vmatpush.bf16.msra.mxu0 %v2292
        %4172 = vmatpush.bf16.msra.mxu0 %v2284
        %4173 = vmatpush.bf16.msra.mxu0 %v2276
        %4174 = vmatmul.bf16.gmra.mxu0 %v3980
        %v4175 = vpop.f32.mrf.mxu0
        %v4176 = vadd.f32 0.0, %v4175
        %v4177 = vpop.f32.mrf.mxu0
        %4178 = vdwg.mxu0
        %4179 = vmatpush.bf16.msra.mxu0 %v2396
        %4180 = vmatpush.bf16.msra.mxu0 %v2388
        %4181 = vmatpush.bf16.msra.mxu0 %v2380
        %4182 = vmatpush.bf16.msra.mxu0 %v2372
        %4183 = vmatpush.bf16.msra.mxu0 %v2364
        %4184 = vmatpush.bf16.msra.mxu0 %v2356
        %4185 = vmatpush.bf16.msra.mxu0 %v2348
        %4186 = vmatpush.bf16.msra.mxu0 %v2340
        %4187 = vmatmul.bf16.gmra.mxu0 %v3981
        %v4188 = vpop.f32.mrf.mxu0
        %v4189 = vadd.f32 %v4176, %v4188
        %v4190 = vpop.f32.mrf.mxu0
        %4191 = vdwg.mxu0
        %v4192 = vadd.f32 %v3969, %v4007
        %v4193 = vadd.f32 %v3970, %v4033
        %v4194 = vadd.f32 %v3971, %v4059
        %v4195 = vadd.f32 %v3972, %v4085
        %v4196 = vadd.f32 %v3973, %v4111
        %v4197 = vadd.f32 %v3974, %v4137
        %v4198 = vadd.f32 %v3975, %v4163
        %v4199 = vadd.f32 %v3976, %v4189
        %v4200 = vxor.u32 %v4192, 2147483648
        %v4201 = vxor.u32 %v4193, 2147483648
        %v4202 = vxor.u32 %v4194, 2147483648
        %v4203 = vxor.u32 %v4195, 2147483648
        %v4204 = vxor.u32 %v4196, 2147483648
        %v4205 = vxor.u32 %v4197, 2147483648
        %v4206 = vmul.f32 %v4200, 1.442695
        %v4207 = vpow.pop %v4206
        %v4208 = vmul.f32 %v4201, 1.442695
        %v4209 = vpow.pop %v4208
        %v4210 = vmul.f32 %v4202, 1.442695
        %v4211 = vpow.pop %v4210
        %v4212 = vmul.f32 %v4203, 1.442695
        %v4213 = vpow.pop %v4212
        %v4214 = vmul.f32 %v4204, 1.442695
        %v4215 = vpow.pop %v4214
        %v4216 = vmul.f32 %v4205, 1.442695
        %v4217 = vpow.pop %v4216
        %v4218 = vadd.f32 %v4207, 1.0
        %v4219 = vadd.f32 %v4209, 1.0
        %v4220 = vadd.f32 %v4211, 1.0
        %v4221 = vadd.f32 %v4213, 1.0
        %v4222 = vadd.f32 %v4215, 1.0
        %v4223 = vadd.f32 %v4217, 1.0
        %v4224 = vrcp.pop %v4218
        %v4225 = vmul.f32 %v4218, %v4224
        %v4226 = vsub.f32 1.0, %v4225
        %v4227 = vmul.f32 %v4224, %v4226
        %v4228 = vadd.f32 %v4224, %v4227
        %vm4229 = vweird.f32 %v4218
        %vm4230 = vweird.f32 %v4224
        %vm4231 = vmor %vm4229, %vm4230
        %v4232 = vsel %vm4231, %v4224, %v4228
        %v4233 = vand.u32 2147483647, %v4218
        %vm4234 = vcmp.eq.f32.partialorder %v4233, 8.507059e+37
        %v4235 = vand.u32 %v4218, 2147483648
        %v4236 = vor.u32 1.1754944e-38, %v4235
        %v4237 = vsel %vm4234, %v4236, %v4232
        %v4238 = vmul.f32 1.0, %v4237
        %v4239 = vrcp.pop %v4219
        %v4240 = vmul.f32 %v4219, %v4239
        %v4241 = vsub.f32 1.0, %v4240
        %v4242 = vmul.f32 %v4239, %v4241
        %v4243 = vadd.f32 %v4239, %v4242
        %vm4244 = vweird.f32 %v4219
        %vm4245 = vweird.f32 %v4239
        %vm4246 = vmor %vm4244, %vm4245
        %v4247 = vsel %vm4246, %v4239, %v4243
        %v4248 = vand.u32 2147483647, %v4219
        %vm4249 = vcmp.eq.f32.partialorder %v4248, 8.507059e+37
        %v4250 = vand.u32 %v4219, 2147483648
        %v4251 = vor.u32 1.1754944e-38, %v4250
        %v4252 = vsel %vm4249, %v4251, %v4247
        %v4253 = vmul.f32 1.0, %v4252
        %v4254 = vrcp.pop %v4220
        %v4255 = vmul.f32 %v4220, %v4254
        %v4256 = vsub.f32 1.0, %v4255
        %v4257 = vmul.f32 %v4254, %v4256
        %v4258 = vadd.f32 %v4254, %v4257
        %vm4259 = vweird.f32 %v4220
        %vm4260 = vweird.f32 %v4254
        %vm4261 = vmor %vm4259, %vm4260
        %v4262 = vsel %vm4261, %v4254, %v4258
        %v4263 = vand.u32 2147483647, %v4220
        %vm4264 = vcmp.eq.f32.partialorder %v4263, 8.507059e+37
        %v4265 = vand.u32 %v4220, 2147483648
        %v4266 = vor.u32 1.1754944e-38, %v4265
        %v4267 = vsel %vm4264, %v4266, %v4262
        %v4268 = vmul.f32 1.0, %v4267
        %v4269 = vrcp.pop %v4221
        %v4270 = vmul.f32 %v4221, %v4269
        %v4271 = vsub.f32 1.0, %v4270
        %v4272 = vmul.f32 %v4269, %v4271
        %v4273 = vadd.f32 %v4269, %v4272
        %vm4274 = vweird.f32 %v4221
        %vm4275 = vweird.f32 %v4269
        %vm4276 = vmor %vm4274, %vm4275
        %v4277 = vsel %vm4276, %v4269, %v4273
        %v4278 = vand.u32 2147483647, %v4221
        %vm4279 = vcmp.eq.f32.partialorder %v4278, 8.507059e+37
        %v4280 = vand.u32 %v4221, 2147483648
        %v4281 = vor.u32 1.1754944e-38, %v4280
        %v4282 = vsel %vm4279, %v4281, %v4277
        %v4283 = vmul.f32 1.0, %v4282
        %v4284 = vrcp.pop %v4222
        %v4285 = vmul.f32 %v4222, %v4284
        %v4286 = vsub.f32 1.0, %v4285
        %v4287 = vmul.f32 %v4284, %v4286
        %v4288 = vadd.f32 %v4284, %v4287
        %vm4289 = vweird.f32 %v4222
        %vm4290 = vweird.f32 %v4284
        %vm4291 = vmor %vm4289, %vm4290
        %v4292 = vsel %vm4291, %v4284, %v4288
        %v4293 = vand.u32 2147483647, %v4222
        %vm4294 = vcmp.eq.f32.partialorder %v4293, 8.507059e+37
        %v4295 = vand.u32 %v4222, 2147483648
        %v4296 = vor.u32 1.1754944e-38, %v4295
        %v4297 = vsel %vm4294, %v4296, %v4292
        %v4298 = vmul.f32 1.0, %v4297
        %v4299 = vrcp.pop %v4223
        %v4300 = vmul.f32 %v4223, %v4299
        %v4301 = vsub.f32 1.0, %v4300
        %v4302 = vmul.f32 %v4299, %v4301
        %v4303 = vadd.f32 %v4299, %v4302
        %vm4304 = vweird.f32 %v4223
        %vm4305 = vweird.f32 %v4299
        %vm4306 = vmor %vm4304, %vm4305
        %v4307 = vsel %vm4306, %v4299, %v4303
        %v4308 = vand.u32 2147483647, %v4223
        %vm4309 = vcmp.eq.f32.partialorder %v4308, 8.507059e+37
        %v4310 = vand.u32 %v4223, 2147483648
        %v4311 = vor.u32 1.1754944e-38, %v4310
        %v4312 = vsel %vm4309, %v4311, %v4307
        %v4313 = vmul.f32 1.0, %v4312
        %v4314 = vtanh.pop %v4198
        %v4315 = vtanh.pop %v4199
        %v4316 = vmul.f32 %v4268, %v3955
        %v4317 = vmul.f32 %v4283, %v3956
        %v4318 = vmul.f32 %v4238, %v4314
        %v4319 = vmul.f32 %v4253, %v4315
        %v4320 = vadd.f32 %v4316, %v4318
        %v4321 = vadd.f32 %v4317, %v4319
        %v4322 = vtanh.pop %v4320
        %v4323 = vtanh.pop %v4321
        %v4324 = vmul.f32 %v4298, %v4322
        %v4325 = vmul.f32 %v4313, %v4323
        %v4326 = vpack.c.bf16 %v4325, %v4324
        %s4327 = scalar_lea.vmem %s6, 32
        %4328 = vst [vmem:[%s4327] sm:$0xff] %v4326
        %s4329 = scalar_lea.vmem [#allocation2], 160
        %v4330 = vld [vmem:[%s4329] sm:$0xff]
        %v4331 = vld [vmem:[%s4329 + $0x8] sm:$0xff]
        %v4332 = vld [vmem:[%s4329 + $0x10] sm:$0xff]
        %v4333 = vld [vmem:[%s4329 + $0x18] sm:$0xff]
        %v4334 = vunpack.c.l.bf16 %v4330
        %v4335 = vunpack.c.h.bf16 %v4330
        %v4336 = vunpack.c.l.bf16 %v4331
        %v4337 = vunpack.c.h.bf16 %v4331
        %v4338 = vunpack.c.l.bf16 %v4332
        %v4339 = vunpack.c.h.bf16 %v4332
        %v4340 = vunpack.c.l.bf16 %v4333
        %v4341 = vunpack.c.h.bf16 %v4333
        %v4343 = vunpack.c.l.b16 %v4326
        %v4344 = vunpack.c.h.b16 %v4326
        %v4345 = vpack.c.b16 %v4343, %v4343
        %v4346 = vpack.c.b16 %v4344, %v4344
        %4349 = vmatpush.bf16.msra.mxu0 %v2325
        %4350 = vmatpush.bf16.msra.mxu0 %v2317
        %4351 = vmatpush.bf16.msra.mxu0 %v2309
        %4352 = vmatpush.bf16.msra.mxu0 %v2301
        %4353 = vmatpush.bf16.msra.mxu0 %v2293
        %4354 = vmatpush.bf16.msra.mxu0 %v2285
        %4355 = vmatpush.bf16.msra.mxu0 %v2277
        %4356 = vmatpush.bf16.msra.mxu0 %v2269
        %4357 = vmatmul.bf16.gmra.mxu0 %v4345
        %v4358 = vpop.f32.mrf.mxu0
        %v4359 = vadd.f32 0.0, %v4358
        %v4360 = vpop.f32.mrf.mxu0
        %4361 = vdwg.mxu0
        %4362 = vmatpush.bf16.msra.mxu0 %v2389
        %4363 = vmatpush.bf16.msra.mxu0 %v2381
        %4364 = vmatpush.bf16.msra.mxu0 %v2373
        %4365 = vmatpush.bf16.msra.mxu0 %v2365
        %4366 = vmatpush.bf16.msra.mxu0 %v2357
        %4367 = vmatpush.bf16.msra.mxu0 %v2349
        %4368 = vmatpush.bf16.msra.mxu0 %v2341
        %4369 = vmatpush.bf16.msra.mxu0 %v2333
        %4370 = vmatmul.bf16.gmra.mxu0 %v4346
        %v4371 = vpop.f32.mrf.mxu0
        %v4372 = vadd.f32 %v4359, %v4371
        %v4373 = vpop.f32.mrf.mxu0
        %4374 = vdwg.mxu0
        %4375 = vmatpush.bf16.msra.mxu0 %v2326
        %4376 = vmatpush.bf16.msra.mxu0 %v2318
        %4377 = vmatpush.bf16.msra.mxu0 %v2310
        %4378 = vmatpush.bf16.msra.mxu0 %v2302
        %4379 = vmatpush.bf16.msra.mxu0 %v2294
        %4380 = vmatpush.bf16.msra.mxu0 %v2286
        %4381 = vmatpush.bf16.msra.mxu0 %v2278
        %4382 = vmatpush.bf16.msra.mxu0 %v2270
        %4383 = vmatmul.bf16.gmra.mxu0 %v4345
        %v4384 = vpop.f32.mrf.mxu0
        %v4385 = vadd.f32 0.0, %v4384
        %v4386 = vpop.f32.mrf.mxu0
        %4387 = vdwg.mxu0
        %4388 = vmatpush.bf16.msra.mxu0 %v2390
        %4389 = vmatpush.bf16.msra.mxu0 %v2382
        %4390 = vmatpush.bf16.msra.mxu0 %v2374
        %4391 = vmatpush.bf16.msra.mxu0 %v2366
        %4392 = vmatpush.bf16.msra.mxu0 %v2358
        %4393 = vmatpush.bf16.msra.mxu0 %v2350
        %4394 = vmatpush.bf16.msra.mxu0 %v2342
        %4395 = vmatpush.bf16.msra.mxu0 %v2334
        %4396 = vmatmul.bf16.gmra.mxu0 %v4346
        %v4397 = vpop.f32.mrf.mxu0
        %v4398 = vadd.f32 %v4385, %v4397
        %v4399 = vpop.f32.mrf.mxu0
        %4400 = vdwg.mxu0
        %4401 = vmatpush.bf16.msra.mxu0 %v2327
        %4402 = vmatpush.bf16.msra.mxu0 %v2319
        %4403 = vmatpush.bf16.msra.mxu0 %v2311
        %4404 = vmatpush.bf16.msra.mxu0 %v2303
        %4405 = vmatpush.bf16.msra.mxu0 %v2295
        %4406 = vmatpush.bf16.msra.mxu0 %v2287
        %4407 = vmatpush.bf16.msra.mxu0 %v2279
        %4408 = vmatpush.bf16.msra.mxu0 %v2271
        %4409 = vmatmul.bf16.gmra.mxu0 %v4345
        %v4410 = vpop.f32.mrf.mxu0
        %v4411 = vadd.f32 0.0, %v4410
        %v4412 = vpop.f32.mrf.mxu0
        %4413 = vdwg.mxu0
        %4414 = vmatpush.bf16.msra.mxu0 %v2391
        %4415 = vmatpush.bf16.msra.mxu0 %v2383
        %4416 = vmatpush.bf16.msra.mxu0 %v2375
        %4417 = vmatpush.bf16.msra.mxu0 %v2367
        %4418 = vmatpush.bf16.msra.mxu0 %v2359
        %4419 = vmatpush.bf16.msra.mxu0 %v2351
        %4420 = vmatpush.bf16.msra.mxu0 %v2343
        %4421 = vmatpush.bf16.msra.mxu0 %v2335
        %4422 = vmatmul.bf16.gmra.mxu0 %v4346
        %v4423 = vpop.f32.mrf.mxu0
        %v4424 = vadd.f32 %v4411, %v4423
        %v4425 = vpop.f32.mrf.mxu0
        %4426 = vdwg.mxu0
        %4427 = vmatpush.bf16.msra.mxu0 %v2328
        %4428 = vmatpush.bf16.msra.mxu0 %v2320
        %4429 = vmatpush.bf16.msra.mxu0 %v2312
        %4430 = vmatpush.bf16.msra.mxu0 %v2304
        %4431 = vmatpush.bf16.msra.mxu0 %v2296
        %4432 = vmatpush.bf16.msra.mxu0 %v2288
        %4433 = vmatpush.bf16.msra.mxu0 %v2280
        %4434 = vmatpush.bf16.msra.mxu0 %v2272
        %4435 = vmatmul.bf16.gmra.mxu0 %v4345
        %v4436 = vpop.f32.mrf.mxu0
        %v4437 = vadd.f32 0.0, %v4436
        %v4438 = vpop.f32.mrf.mxu0
        %4439 = vdwg.mxu0
        %4440 = vmatpush.bf16.msra.mxu0 %v2392
        %4441 = vmatpush.bf16.msra.mxu0 %v2384
        %4442 = vmatpush.bf16.msra.mxu0 %v2376
        %4443 = vmatpush.bf16.msra.mxu0 %v2368
        %4444 = vmatpush.bf16.msra.mxu0 %v2360
        %4445 = vmatpush.bf16.msra.mxu0 %v2352
        %4446 = vmatpush.bf16.msra.mxu0 %v2344
        %4447 = vmatpush.bf16.msra.mxu0 %v2336
        %4448 = vmatmul.bf16.gmra.mxu0 %v4346
        %v4449 = vpop.f32.mrf.mxu0
        %v4450 = vadd.f32 %v4437, %v4449
        %v4451 = vpop.f32.mrf.mxu0
        %4452 = vdwg.mxu0
        %4453 = vmatpush.bf16.msra.mxu0 %v2329
        %4454 = vmatpush.bf16.msra.mxu0 %v2321
        %4455 = vmatpush.bf16.msra.mxu0 %v2313
        %4456 = vmatpush.bf16.msra.mxu0 %v2305
        %4457 = vmatpush.bf16.msra.mxu0 %v2297
        %4458 = vmatpush.bf16.msra.mxu0 %v2289
        %4459 = vmatpush.bf16.msra.mxu0 %v2281
        %4460 = vmatpush.bf16.msra.mxu0 %v2273
        %4461 = vmatmul.bf16.gmra.mxu0 %v4345
        %v4462 = vpop.f32.mrf.mxu0
        %v4463 = vadd.f32 0.0, %v4462
        %v4464 = vpop.f32.mrf.mxu0
        %4465 = vdwg.mxu0
        %4466 = vmatpush.bf16.msra.mxu0 %v2393
        %4467 = vmatpush.bf16.msra.mxu0 %v2385
        %4468 = vmatpush.bf16.msra.mxu0 %v2377
        %4469 = vmatpush.bf16.msra.mxu0 %v2369
        %4470 = vmatpush.bf16.msra.mxu0 %v2361
        %4471 = vmatpush.bf16.msra.mxu0 %v2353
        %4472 = vmatpush.bf16.msra.mxu0 %v2345
        %4473 = vmatpush.bf16.msra.mxu0 %v2337
        %4474 = vmatmul.bf16.gmra.mxu0 %v4346
        %v4475 = vpop.f32.mrf.mxu0
        %v4476 = vadd.f32 %v4463, %v4475
        %v4477 = vpop.f32.mrf.mxu0
        %4478 = vdwg.mxu0
        %4479 = vmatpush.bf16.msra.mxu0 %v2330
        %4480 = vmatpush.bf16.msra.mxu0 %v2322
        %4481 = vmatpush.bf16.msra.mxu0 %v2314
        %4482 = vmatpush.bf16.msra.mxu0 %v2306
        %4483 = vmatpush.bf16.msra.mxu0 %v2298
        %4484 = vmatpush.bf16.msra.mxu0 %v2290
        %4485 = vmatpush.bf16.msra.mxu0 %v2282
        %4486 = vmatpush.bf16.msra.mxu0 %v2274
        %4487 = vmatmul.bf16.gmra.mxu0 %v4345
        %v4488 = vpop.f32.mrf.mxu0
        %v4489 = vadd.f32 0.0, %v4488
        %v4490 = vpop.f32.mrf.mxu0
        %4491 = vdwg.mxu0
        %4492 = vmatpush.bf16.msra.mxu0 %v2394
        %4493 = vmatpush.bf16.msra.mxu0 %v2386
        %4494 = vmatpush.bf16.msra.mxu0 %v2378
        %4495 = vmatpush.bf16.msra.mxu0 %v2370
        %4496 = vmatpush.bf16.msra.mxu0 %v2362
        %4497 = vmatpush.bf16.msra.mxu0 %v2354
        %4498 = vmatpush.bf16.msra.mxu0 %v2346
        %4499 = vmatpush.bf16.msra.mxu0 %v2338
        %4500 = vmatmul.bf16.gmra.mxu0 %v4346
        %v4501 = vpop.f32.mrf.mxu0
        %v4502 = vadd.f32 %v4489, %v4501
        %v4503 = vpop.f32.mrf.mxu0
        %4504 = vdwg.mxu0
        %4505 = vmatpush.bf16.msra.mxu0 %v2331
        %4506 = vmatpush.bf16.msra.mxu0 %v2323
        %4507 = vmatpush.bf16.msra.mxu0 %v2315
        %4508 = vmatpush.bf16.msra.mxu0 %v2307
        %4509 = vmatpush.bf16.msra.mxu0 %v2299
        %4510 = vmatpush.bf16.msra.mxu0 %v2291
        %4511 = vmatpush.bf16.msra.mxu0 %v2283
        %4512 = vmatpush.bf16.msra.mxu0 %v2275
        %4513 = vmatmul.bf16.gmra.mxu0 %v4345
        %v4514 = vpop.f32.mrf.mxu0
        %v4515 = vadd.f32 0.0, %v4514
        %v4516 = vpop.f32.mrf.mxu0
        %4517 = vdwg.mxu0
        %4518 = vmatpush.bf16.msra.mxu0 %v2395
        %4519 = vmatpush.bf16.msra.mxu0 %v2387
        %4520 = vmatpush.bf16.msra.mxu0 %v2379
        %4521 = vmatpush.bf16.msra.mxu0 %v2371
        %4522 = vmatpush.bf16.msra.mxu0 %v2363
        %4523 = vmatpush.bf16.msra.mxu0 %v2355
        %4524 = vmatpush.bf16.msra.mxu0 %v2347
        %4525 = vmatpush.bf16.msra.mxu0 %v2339
        %4526 = vmatmul.bf16.gmra.mxu0 %v4346
        %v4527 = vpop.f32.mrf.mxu0
        %v4528 = vadd.f32 %v4515, %v4527
        %v4529 = vpop.f32.mrf.mxu0
        %4530 = vdwg.mxu0
        %4531 = vmatpush.bf16.msra.mxu0 %v2332
        %4532 = vmatpush.bf16.msra.mxu0 %v2324
        %4533 = vmatpush.bf16.msra.mxu0 %v2316
        %4534 = vmatpush.bf16.msra.mxu0 %v2308
        %4535 = vmatpush.bf16.msra.mxu0 %v2300
        %4536 = vmatpush.bf16.msra.mxu0 %v2292
        %4537 = vmatpush.bf16.msra.mxu0 %v2284
        %4538 = vmatpush.bf16.msra.mxu0 %v2276
        %4539 = vmatmul.bf16.gmra.mxu0 %v4345
        %v4540 = vpop.f32.mrf.mxu0
        %v4541 = vadd.f32 0.0, %v4540
        %v4542 = vpop.f32.mrf.mxu0
        %4543 = vdwg.mxu0
        %4544 = vmatpush.bf16.msra.mxu0 %v2396
        %4545 = vmatpush.bf16.msra.mxu0 %v2388
        %4546 = vmatpush.bf16.msra.mxu0 %v2380
        %4547 = vmatpush.bf16.msra.mxu0 %v2372
        %4548 = vmatpush.bf16.msra.mxu0 %v2364
        %4549 = vmatpush.bf16.msra.mxu0 %v2356
        %4550 = vmatpush.bf16.msra.mxu0 %v2348
        %4551 = vmatpush.bf16.msra.mxu0 %v2340
        %4552 = vmatmul.bf16.gmra.mxu0 %v4346
        %v4553 = vpop.f32.mrf.mxu0
        %v4554 = vadd.f32 %v4541, %v4553
        %v4555 = vpop.f32.mrf.mxu0
        %4556 = vdwg.mxu0
        %v4557 = vadd.f32 %v4334, %v4372
        %v4558 = vadd.f32 %v4335, %v4398
        %v4559 = vadd.f32 %v4336, %v4424
        %v4560 = vadd.f32 %v4337, %v4450
        %v4561 = vadd.f32 %v4338, %v4476
        %v4562 = vadd.f32 %v4339, %v4502
        %v4563 = vadd.f32 %v4340, %v4528
        %v4564 = vadd.f32 %v4341, %v4554
        %v4565 = vxor.u32 %v4557, 2147483648
        %v4566 = vxor.u32 %v4558, 2147483648
        %v4567 = vxor.u32 %v4559, 2147483648
        %v4568 = vxor.u32 %v4560, 2147483648
        %v4569 = vxor.u32 %v4561, 2147483648
        %v4570 = vxor.u32 %v4562, 2147483648
        %v4571 = vmul.f32 %v4565, 1.442695
        %v4572 = vpow.pop %v4571
        %v4573 = vmul.f32 %v4566, 1.442695
        %v4574 = vpow.pop %v4573
        %v4575 = vmul.f32 %v4567, 1.442695
        %v4576 = vpow.pop %v4575
        %v4577 = vmul.f32 %v4568, 1.442695
        %v4578 = vpow.pop %v4577
        %v4579 = vmul.f32 %v4569, 1.442695
        %v4580 = vpow.pop %v4579
        %v4581 = vmul.f32 %v4570, 1.442695
        %v4582 = vpow.pop %v4581
        %v4583 = vadd.f32 %v4572, 1.0
        %v4584 = vadd.f32 %v4574, 1.0
        %v4585 = vadd.f32 %v4576, 1.0
        %v4586 = vadd.f32 %v4578, 1.0
        %v4587 = vadd.f32 %v4580, 1.0
        %v4588 = vadd.f32 %v4582, 1.0
        %v4589 = vrcp.pop %v4583
        %v4590 = vmul.f32 %v4583, %v4589
        %v4591 = vsub.f32 1.0, %v4590
        %v4592 = vmul.f32 %v4589, %v4591
        %v4593 = vadd.f32 %v4589, %v4592
        %vm4594 = vweird.f32 %v4583
        %vm4595 = vweird.f32 %v4589
        %vm4596 = vmor %vm4594, %vm4595
        %v4597 = vsel %vm4596, %v4589, %v4593
        %v4598 = vand.u32 2147483647, %v4583
        %vm4599 = vcmp.eq.f32.partialorder %v4598, 8.507059e+37
        %v4600 = vand.u32 %v4583, 2147483648
        %v4601 = vor.u32 1.1754944e-38, %v4600
        %v4602 = vsel %vm4599, %v4601, %v4597
        %v4603 = vmul.f32 1.0, %v4602
        %v4604 = vrcp.pop %v4584
        %v4605 = vmul.f32 %v4584, %v4604
        %v4606 = vsub.f32 1.0, %v4605
        %v4607 = vmul.f32 %v4604, %v4606
        %v4608 = vadd.f32 %v4604, %v4607
        %vm4609 = vweird.f32 %v4584
        %vm4610 = vweird.f32 %v4604
        %vm4611 = vmor %vm4609, %vm4610
        %v4612 = vsel %vm4611, %v4604, %v4608
        %v4613 = vand.u32 2147483647, %v4584
        %vm4614 = vcmp.eq.f32.partialorder %v4613, 8.507059e+37
        %v4615 = vand.u32 %v4584, 2147483648
        %v4616 = vor.u32 1.1754944e-38, %v4615
        %v4617 = vsel %vm4614, %v4616, %v4612
        %v4618 = vmul.f32 1.0, %v4617
        %v4619 = vrcp.pop %v4585
        %v4620 = vmul.f32 %v4585, %v4619
        %v4621 = vsub.f32 1.0, %v4620
        %v4622 = vmul.f32 %v4619, %v4621
        %v4623 = vadd.f32 %v4619, %v4622
        %vm4624 = vweird.f32 %v4585
        %vm4625 = vweird.f32 %v4619
        %vm4626 = vmor %vm4624, %vm4625
        %v4627 = vsel %vm4626, %v4619, %v4623
        %v4628 = vand.u32 2147483647, %v4585
        %vm4629 = vcmp.eq.f32.partialorder %v4628, 8.507059e+37
        %v4630 = vand.u32 %v4585, 2147483648
        %v4631 = vor.u32 1.1754944e-38, %v4630
        %v4632 = vsel %vm4629, %v4631, %v4627
        %v4633 = vmul.f32 1.0, %v4632
        %v4634 = vrcp.pop %v4586
        %v4635 = vmul.f32 %v4586, %v4634
        %v4636 = vsub.f32 1.0, %v4635
        %v4637 = vmul.f32 %v4634, %v4636
        %v4638 = vadd.f32 %v4634, %v4637
        %vm4639 = vweird.f32 %v4586
        %vm4640 = vweird.f32 %v4634
        %vm4641 = vmor %vm4639, %vm4640
        %v4642 = vsel %vm4641, %v4634, %v4638
        %v4643 = vand.u32 2147483647, %v4586
        %vm4644 = vcmp.eq.f32.partialorder %v4643, 8.507059e+37
        %v4645 = vand.u32 %v4586, 2147483648
        %v4646 = vor.u32 1.1754944e-38, %v4645
        %v4647 = vsel %vm4644, %v4646, %v4642
        %v4648 = vmul.f32 1.0, %v4647
        %v4649 = vrcp.pop %v4587
        %v4650 = vmul.f32 %v4587, %v4649
        %v4651 = vsub.f32 1.0, %v4650
        %v4652 = vmul.f32 %v4649, %v4651
        %v4653 = vadd.f32 %v4649, %v4652
        %vm4654 = vweird.f32 %v4587
        %vm4655 = vweird.f32 %v4649
        %vm4656 = vmor %vm4654, %vm4655
        %v4657 = vsel %vm4656, %v4649, %v4653
        %v4658 = vand.u32 2147483647, %v4587
        %vm4659 = vcmp.eq.f32.partialorder %v4658, 8.507059e+37
        %v4660 = vand.u32 %v4587, 2147483648
        %v4661 = vor.u32 1.1754944e-38, %v4660
        %v4662 = vsel %vm4659, %v4661, %v4657
        %v4663 = vmul.f32 1.0, %v4662
        %v4664 = vrcp.pop %v4588
        %v4665 = vmul.f32 %v4588, %v4664
        %v4666 = vsub.f32 1.0, %v4665
        %v4667 = vmul.f32 %v4664, %v4666
        %v4668 = vadd.f32 %v4664, %v4667
        %vm4669 = vweird.f32 %v4588
        %vm4670 = vweird.f32 %v4664
        %vm4671 = vmor %vm4669, %vm4670
        %v4672 = vsel %vm4671, %v4664, %v4668
        %v4673 = vand.u32 2147483647, %v4588
        %vm4674 = vcmp.eq.f32.partialorder %v4673, 8.507059e+37
        %v4675 = vand.u32 %v4588, 2147483648
        %v4676 = vor.u32 1.1754944e-38, %v4675
        %v4677 = vsel %vm4674, %v4676, %v4672
        %v4678 = vmul.f32 1.0, %v4677
        %v4679 = vtanh.pop %v4563
        %v4680 = vtanh.pop %v4564
        %v4681 = vmul.f32 %v4633, %v4320
        %v4682 = vmul.f32 %v4648, %v4321
        %v4683 = vmul.f32 %v4603, %v4679
        %v4684 = vmul.f32 %v4618, %v4680
        %v4685 = vadd.f32 %v4681, %v4683
        %v4686 = vadd.f32 %v4682, %v4684
        %v4687 = vtanh.pop %v4685
        %v4688 = vtanh.pop %v4686
        %v4689 = vmul.f32 %v4663, %v4687
        %v4690 = vmul.f32 %v4678, %v4688
        %v4691 = vpack.c.bf16 %v4690, %v4689
        %s4692 = scalar_lea.vmem %s6, 40
        %4693 = vst [vmem:[%s4692] sm:$0xff] %v4691
        %s4694 = scalar_lea.vmem [#allocation2], 192
        %v4695 = vld [vmem:[%s4694] sm:$0xff]
        %v4696 = vld [vmem:[%s4694 + $0x8] sm:$0xff]
        %v4697 = vld [vmem:[%s4694 + $0x10] sm:$0xff]
        %v4698 = vld [vmem:[%s4694 + $0x18] sm:$0xff]
        %v4699 = vunpack.c.l.bf16 %v4695
        %v4700 = vunpack.c.h.bf16 %v4695
        %v4701 = vunpack.c.l.bf16 %v4696
        %v4702 = vunpack.c.h.bf16 %v4696
        %v4703 = vunpack.c.l.bf16 %v4697
        %v4704 = vunpack.c.h.bf16 %v4697
        %v4705 = vunpack.c.l.bf16 %v4698
        %v4706 = vunpack.c.h.bf16 %v4698
        %v4708 = vunpack.c.l.b16 %v4691
        %v4709 = vunpack.c.h.b16 %v4691
        %v4710 = vpack.c.b16 %v4708, %v4708
        %v4711 = vpack.c.b16 %v4709, %v4709
        %4714 = vmatpush.bf16.msra.mxu0 %v2325
        %4715 = vmatpush.bf16.msra.mxu0 %v2317
        %4716 = vmatpush.bf16.msra.mxu0 %v2309
        %4717 = vmatpush.bf16.msra.mxu0 %v2301
        %4718 = vmatpush.bf16.msra.mxu0 %v2293
        %4719 = vmatpush.bf16.msra.mxu0 %v2285
        %4720 = vmatpush.bf16.msra.mxu0 %v2277
        %4721 = vmatpush.bf16.msra.mxu0 %v2269
        %4722 = vmatmul.bf16.gmra.mxu0 %v4710
        %v4723 = vpop.f32.mrf.mxu0
        %v4724 = vadd.f32 0.0, %v4723
        %v4725 = vpop.f32.mrf.mxu0
        %4726 = vdwg.mxu0
        %4727 = vmatpush.bf16.msra.mxu0 %v2389
        %4728 = vmatpush.bf16.msra.mxu0 %v2381
        %4729 = vmatpush.bf16.msra.mxu0 %v2373
        %4730 = vmatpush.bf16.msra.mxu0 %v2365
        %4731 = vmatpush.bf16.msra.mxu0 %v2357
        %4732 = vmatpush.bf16.msra.mxu0 %v2349
        %4733 = vmatpush.bf16.msra.mxu0 %v2341
        %4734 = vmatpush.bf16.msra.mxu0 %v2333
        %4735 = vmatmul.bf16.gmra.mxu0 %v4711
        %v4736 = vpop.f32.mrf.mxu0
        %v4737 = vadd.f32 %v4724, %v4736
        %v4738 = vpop.f32.mrf.mxu0
        %4739 = vdwg.mxu0
        %4740 = vmatpush.bf16.msra.mxu0 %v2326
        %4741 = vmatpush.bf16.msra.mxu0 %v2318
        %4742 = vmatpush.bf16.msra.mxu0 %v2310
        %4743 = vmatpush.bf16.msra.mxu0 %v2302
        %4744 = vmatpush.bf16.msra.mxu0 %v2294
        %4745 = vmatpush.bf16.msra.mxu0 %v2286
        %4746 = vmatpush.bf16.msra.mxu0 %v2278
        %4747 = vmatpush.bf16.msra.mxu0 %v2270
        %4748 = vmatmul.bf16.gmra.mxu0 %v4710
        %v4749 = vpop.f32.mrf.mxu0
        %v4750 = vadd.f32 0.0, %v4749
        %v4751 = vpop.f32.mrf.mxu0
        %4752 = vdwg.mxu0
        %4753 = vmatpush.bf16.msra.mxu0 %v2390
        %4754 = vmatpush.bf16.msra.mxu0 %v2382
        %4755 = vmatpush.bf16.msra.mxu0 %v2374
        %4756 = vmatpush.bf16.msra.mxu0 %v2366
        %4757 = vmatpush.bf16.msra.mxu0 %v2358
        %4758 = vmatpush.bf16.msra.mxu0 %v2350
        %4759 = vmatpush.bf16.msra.mxu0 %v2342
        %4760 = vmatpush.bf16.msra.mxu0 %v2334
        %4761 = vmatmul.bf16.gmra.mxu0 %v4711
        %v4762 = vpop.f32.mrf.mxu0
        %v4763 = vadd.f32 %v4750, %v4762
        %v4764 = vpop.f32.mrf.mxu0
        %4765 = vdwg.mxu0
        %4766 = vmatpush.bf16.msra.mxu0 %v2327
        %4767 = vmatpush.bf16.msra.mxu0 %v2319
        %4768 = vmatpush.bf16.msra.mxu0 %v2311
        %4769 = vmatpush.bf16.msra.mxu0 %v2303
        %4770 = vmatpush.bf16.msra.mxu0 %v2295
        %4771 = vmatpush.bf16.msra.mxu0 %v2287
        %4772 = vmatpush.bf16.msra.mxu0 %v2279
        %4773 = vmatpush.bf16.msra.mxu0 %v2271
        %4774 = vmatmul.bf16.gmra.mxu0 %v4710
        %v4775 = vpop.f32.mrf.mxu0
        %v4776 = vadd.f32 0.0, %v4775
        %v4777 = vpop.f32.mrf.mxu0
        %4778 = vdwg.mxu0
        %4779 = vmatpush.bf16.msra.mxu0 %v2391
        %4780 = vmatpush.bf16.msra.mxu0 %v2383
        %4781 = vmatpush.bf16.msra.mxu0 %v2375
        %4782 = vmatpush.bf16.msra.mxu0 %v2367
        %4783 = vmatpush.bf16.msra.mxu0 %v2359
        %4784 = vmatpush.bf16.msra.mxu0 %v2351
        %4785 = vmatpush.bf16.msra.mxu0 %v2343
        %4786 = vmatpush.bf16.msra.mxu0 %v2335
        %4787 = vmatmul.bf16.gmra.mxu0 %v4711
        %v4788 = vpop.f32.mrf.mxu0
        %v4789 = vadd.f32 %v4776, %v4788
        %v4790 = vpop.f32.mrf.mxu0
        %4791 = vdwg.mxu0
        %4792 = vmatpush.bf16.msra.mxu0 %v2328
        %4793 = vmatpush.bf16.msra.mxu0 %v2320
        %4794 = vmatpush.bf16.msra.mxu0 %v2312
        %4795 = vmatpush.bf16.msra.mxu0 %v2304
        %4796 = vmatpush.bf16.msra.mxu0 %v2296
        %4797 = vmatpush.bf16.msra.mxu0 %v2288
        %4798 = vmatpush.bf16.msra.mxu0 %v2280
        %4799 = vmatpush.bf16.msra.mxu0 %v2272
        %4800 = vmatmul.bf16.gmra.mxu0 %v4710
        %v4801 = vpop.f32.mrf.mxu0
        %v4802 = vadd.f32 0.0, %v4801
        %v4803 = vpop.f32.mrf.mxu0
        %4804 = vdwg.mxu0
        %4805 = vmatpush.bf16.msra.mxu0 %v2392
        %4806 = vmatpush.bf16.msra.mxu0 %v2384
        %4807 = vmatpush.bf16.msra.mxu0 %v2376
        %4808 = vmatpush.bf16.msra.mxu0 %v2368
        %4809 = vmatpush.bf16.msra.mxu0 %v2360
        %4810 = vmatpush.bf16.msra.mxu0 %v2352
        %4811 = vmatpush.bf16.msra.mxu0 %v2344
        %4812 = vmatpush.bf16.msra.mxu0 %v2336
        %4813 = vmatmul.bf16.gmra.mxu0 %v4711
        %v4814 = vpop.f32.mrf.mxu0
        %v4815 = vadd.f32 %v4802, %v4814
        %v4816 = vpop.f32.mrf.mxu0
        %4817 = vdwg.mxu0
        %4818 = vmatpush.bf16.msra.mxu0 %v2329
        %4819 = vmatpush.bf16.msra.mxu0 %v2321
        %4820 = vmatpush.bf16.msra.mxu0 %v2313
        %4821 = vmatpush.bf16.msra.mxu0 %v2305
        %4822 = vmatpush.bf16.msra.mxu0 %v2297
        %4823 = vmatpush.bf16.msra.mxu0 %v2289
        %4824 = vmatpush.bf16.msra.mxu0 %v2281
        %4825 = vmatpush.bf16.msra.mxu0 %v2273
        %4826 = vmatmul.bf16.gmra.mxu0 %v4710
        %v4827 = vpop.f32.mrf.mxu0
        %v4828 = vadd.f32 0.0, %v4827
        %v4829 = vpop.f32.mrf.mxu0
        %4830 = vdwg.mxu0
        %4831 = vmatpush.bf16.msra.mxu0 %v2393
        %4832 = vmatpush.bf16.msra.mxu0 %v2385
        %4833 = vmatpush.bf16.msra.mxu0 %v2377
        %4834 = vmatpush.bf16.msra.mxu0 %v2369
        %4835 = vmatpush.bf16.msra.mxu0 %v2361
        %4836 = vmatpush.bf16.msra.mxu0 %v2353
        %4837 = vmatpush.bf16.msra.mxu0 %v2345
        %4838 = vmatpush.bf16.msra.mxu0 %v2337
        %4839 = vmatmul.bf16.gmra.mxu0 %v4711
        %v4840 = vpop.f32.mrf.mxu0
        %v4841 = vadd.f32 %v4828, %v4840
        %v4842 = vpop.f32.mrf.mxu0
        %4843 = vdwg.mxu0
        %4844 = vmatpush.bf16.msra.mxu0 %v2330
        %4845 = vmatpush.bf16.msra.mxu0 %v2322
        %4846 = vmatpush.bf16.msra.mxu0 %v2314
        %4847 = vmatpush.bf16.msra.mxu0 %v2306
        %4848 = vmatpush.bf16.msra.mxu0 %v2298
        %4849 = vmatpush.bf16.msra.mxu0 %v2290
        %4850 = vmatpush.bf16.msra.mxu0 %v2282
        %4851 = vmatpush.bf16.msra.mxu0 %v2274
        %4852 = vmatmul.bf16.gmra.mxu0 %v4710
        %v4853 = vpop.f32.mrf.mxu0
        %v4854 = vadd.f32 0.0, %v4853
        %v4855 = vpop.f32.mrf.mxu0
        %4856 = vdwg.mxu0
        %4857 = vmatpush.bf16.msra.mxu0 %v2394
        %4858 = vmatpush.bf16.msra.mxu0 %v2386
        %4859 = vmatpush.bf16.msra.mxu0 %v2378
        %4860 = vmatpush.bf16.msra.mxu0 %v2370
        %4861 = vmatpush.bf16.msra.mxu0 %v2362
        %4862 = vmatpush.bf16.msra.mxu0 %v2354
        %4863 = vmatpush.bf16.msra.mxu0 %v2346
        %4864 = vmatpush.bf16.msra.mxu0 %v2338
        %4865 = vmatmul.bf16.gmra.mxu0 %v4711
        %v4866 = vpop.f32.mrf.mxu0
        %v4867 = vadd.f32 %v4854, %v4866
        %v4868 = vpop.f32.mrf.mxu0
        %4869 = vdwg.mxu0
        %4870 = vmatpush.bf16.msra.mxu0 %v2331
        %4871 = vmatpush.bf16.msra.mxu0 %v2323
        %4872 = vmatpush.bf16.msra.mxu0 %v2315
        %4873 = vmatpush.bf16.msra.mxu0 %v2307
        %4874 = vmatpush.bf16.msra.mxu0 %v2299
        %4875 = vmatpush.bf16.msra.mxu0 %v2291
        %4876 = vmatpush.bf16.msra.mxu0 %v2283
        %4877 = vmatpush.bf16.msra.mxu0 %v2275
        %4878 = vmatmul.bf16.gmra.mxu0 %v4710
        %v4879 = vpop.f32.mrf.mxu0
        %v4880 = vadd.f32 0.0, %v4879
        %v4881 = vpop.f32.mrf.mxu0
        %4882 = vdwg.mxu0
        %4883 = vmatpush.bf16.msra.mxu0 %v2395
        %4884 = vmatpush.bf16.msra.mxu0 %v2387
        %4885 = vmatpush.bf16.msra.mxu0 %v2379
        %4886 = vmatpush.bf16.msra.mxu0 %v2371
        %4887 = vmatpush.bf16.msra.mxu0 %v2363
        %4888 = vmatpush.bf16.msra.mxu0 %v2355
        %4889 = vmatpush.bf16.msra.mxu0 %v2347
        %4890 = vmatpush.bf16.msra.mxu0 %v2339
        %4891 = vmatmul.bf16.gmra.mxu0 %v4711
        %v4892 = vpop.f32.mrf.mxu0
        %v4893 = vadd.f32 %v4880, %v4892
        %v4894 = vpop.f32.mrf.mxu0
        %4895 = vdwg.mxu0
        %4896 = vmatpush.bf16.msra.mxu0 %v2332
        %4897 = vmatpush.bf16.msra.mxu0 %v2324
        %4898 = vmatpush.bf16.msra.mxu0 %v2316
        %4899 = vmatpush.bf16.msra.mxu0 %v2308
        %4900 = vmatpush.bf16.msra.mxu0 %v2300
        %4901 = vmatpush.bf16.msra.mxu0 %v2292
        %4902 = vmatpush.bf16.msra.mxu0 %v2284
        %4903 = vmatpush.bf16.msra.mxu0 %v2276
        %4904 = vmatmul.bf16.gmra.mxu0 %v4710
        %v4905 = vpop.f32.mrf.mxu0
        %v4906 = vadd.f32 0.0, %v4905
        %v4907 = vpop.f32.mrf.mxu0
        %4908 = vdwg.mxu0
        %4909 = vmatpush.bf16.msra.mxu0 %v2396
        %4910 = vmatpush.bf16.msra.mxu0 %v2388
        %4911 = vmatpush.bf16.msra.mxu0 %v2380
        %4912 = vmatpush.bf16.msra.mxu0 %v2372
        %4913 = vmatpush.bf16.msra.mxu0 %v2364
        %4914 = vmatpush.bf16.msra.mxu0 %v2356
        %4915 = vmatpush.bf16.msra.mxu0 %v2348
        %4916 = vmatpush.bf16.msra.mxu0 %v2340
        %4917 = vmatmul.bf16.gmra.mxu0 %v4711
        %v4918 = vpop.f32.mrf.mxu0
        %v4919 = vadd.f32 %v4906, %v4918
        %v4920 = vpop.f32.mrf.mxu0
        %4921 = vdwg.mxu0
        %v4922 = vadd.f32 %v4699, %v4737
        %v4923 = vadd.f32 %v4700, %v4763
        %v4924 = vadd.f32 %v4701, %v4789
        %v4925 = vadd.f32 %v4702, %v4815
        %v4926 = vadd.f32 %v4703, %v4841
        %v4927 = vadd.f32 %v4704, %v4867
        %v4928 = vadd.f32 %v4705, %v4893
        %v4929 = vadd.f32 %v4706, %v4919
        %v4930 = vxor.u32 %v4922, 2147483648
        %v4931 = vxor.u32 %v4923, 2147483648
        %v4932 = vxor.u32 %v4924, 2147483648
        %v4933 = vxor.u32 %v4925, 2147483648
        %v4934 = vxor.u32 %v4926, 2147483648
        %v4935 = vxor.u32 %v4927, 2147483648
        %v4936 = vmul.f32 %v4930, 1.442695
        %v4937 = vpow.pop %v4936
        %v4938 = vmul.f32 %v4931, 1.442695
        %v4939 = vpow.pop %v4938
        %v4940 = vmul.f32 %v4932, 1.442695
        %v4941 = vpow.pop %v4940
        %v4942 = vmul.f32 %v4933, 1.442695
        %v4943 = vpow.pop %v4942
        %v4944 = vmul.f32 %v4934, 1.442695
        %v4945 = vpow.pop %v4944
        %v4946 = vmul.f32 %v4935, 1.442695
        %v4947 = vpow.pop %v4946
        %v4948 = vadd.f32 %v4937, 1.0
        %v4949 = vadd.f32 %v4939, 1.0
        %v4950 = vadd.f32 %v4941, 1.0
        %v4951 = vadd.f32 %v4943, 1.0
        %v4952 = vadd.f32 %v4945, 1.0
        %v4953 = vadd.f32 %v4947, 1.0
        %v4954 = vrcp.pop %v4948
        %v4955 = vmul.f32 %v4948, %v4954
        %v4956 = vsub.f32 1.0, %v4955
        %v4957 = vmul.f32 %v4954, %v4956
        %v4958 = vadd.f32 %v4954, %v4957
        %vm4959 = vweird.f32 %v4948
        %vm4960 = vweird.f32 %v4954
        %vm4961 = vmor %vm4959, %vm4960
        %v4962 = vsel %vm4961, %v4954, %v4958
        %v4963 = vand.u32 2147483647, %v4948
        %vm4964 = vcmp.eq.f32.partialorder %v4963, 8.507059e+37
        %v4965 = vand.u32 %v4948, 2147483648
        %v4966 = vor.u32 1.1754944e-38, %v4965
        %v4967 = vsel %vm4964, %v4966, %v4962
        %v4968 = vmul.f32 1.0, %v4967
        %v4969 = vrcp.pop %v4949
        %v4970 = vmul.f32 %v4949, %v4969
        %v4971 = vsub.f32 1.0, %v4970
        %v4972 = vmul.f32 %v4969, %v4971
        %v4973 = vadd.f32 %v4969, %v4972
        %vm4974 = vweird.f32 %v4949
        %vm4975 = vweird.f32 %v4969
        %vm4976 = vmor %vm4974, %vm4975
        %v4977 = vsel %vm4976, %v4969, %v4973
        %v4978 = vand.u32 2147483647, %v4949
        %vm4979 = vcmp.eq.f32.partialorder %v4978, 8.507059e+37
        %v4980 = vand.u32 %v4949, 2147483648
        %v4981 = vor.u32 1.1754944e-38, %v4980
        %v4982 = vsel %vm4979, %v4981, %v4977
        %v4983 = vmul.f32 1.0, %v4982
        %v4984 = vrcp.pop %v4950
        %v4985 = vmul.f32 %v4950, %v4984
        %v4986 = vsub.f32 1.0, %v4985
        %v4987 = vmul.f32 %v4984, %v4986
        %v4988 = vadd.f32 %v4984, %v4987
        %vm4989 = vweird.f32 %v4950
        %vm4990 = vweird.f32 %v4984
        %vm4991 = vmor %vm4989, %vm4990
        %v4992 = vsel %vm4991, %v4984, %v4988
        %v4993 = vand.u32 2147483647, %v4950
        %vm4994 = vcmp.eq.f32.partialorder %v4993, 8.507059e+37
        %v4995 = vand.u32 %v4950, 2147483648
        %v4996 = vor.u32 1.1754944e-38, %v4995
        %v4997 = vsel %vm4994, %v4996, %v4992
        %v4998 = vmul.f32 1.0, %v4997
        %v4999 = vrcp.pop %v4951
        %v5000 = vmul.f32 %v4951, %v4999
        %v5001 = vsub.f32 1.0, %v5000
        %v5002 = vmul.f32 %v4999, %v5001
        %v5003 = vadd.f32 %v4999, %v5002
        %vm5004 = vweird.f32 %v4951
        %vm5005 = vweird.f32 %v4999
        %vm5006 = vmor %vm5004, %vm5005
        %v5007 = vsel %vm5006, %v4999, %v5003
        %v5008 = vand.u32 2147483647, %v4951
        %vm5009 = vcmp.eq.f32.partialorder %v5008, 8.507059e+37
        %v5010 = vand.u32 %v4951, 2147483648
        %v5011 = vor.u32 1.1754944e-38, %v5010
        %v5012 = vsel %vm5009, %v5011, %v5007
        %v5013 = vmul.f32 1.0, %v5012
        %v5014 = vrcp.pop %v4952
        %v5015 = vmul.f32 %v4952, %v5014
        %v5016 = vsub.f32 1.0, %v5015
        %v5017 = vmul.f32 %v5014, %v5016
        %v5018 = vadd.f32 %v5014, %v5017
        %vm5019 = vweird.f32 %v4952
        %vm5020 = vweird.f32 %v5014
        %vm5021 = vmor %vm5019, %vm5020
        %v5022 = vsel %vm5021, %v5014, %v5018
        %v5023 = vand.u32 2147483647, %v4952
        %vm5024 = vcmp.eq.f32.partialorder %v5023, 8.507059e+37
        %v5025 = vand.u32 %v4952, 2147483648
        %v5026 = vor.u32 1.1754944e-38, %v5025
        %v5027 = vsel %vm5024, %v5026, %v5022
        %v5028 = vmul.f32 1.0, %v5027
        %v5029 = vrcp.pop %v4953
        %v5030 = vmul.f32 %v4953, %v5029
        %v5031 = vsub.f32 1.0, %v5030
        %v5032 = vmul.f32 %v5029, %v5031
        %v5033 = vadd.f32 %v5029, %v5032
        %vm5034 = vweird.f32 %v4953
        %vm5035 = vweird.f32 %v5029
        %vm5036 = vmor %vm5034, %vm5035
        %v5037 = vsel %vm5036, %v5029, %v5033
        %v5038 = vand.u32 2147483647, %v4953
        %vm5039 = vcmp.eq.f32.partialorder %v5038, 8.507059e+37
        %v5040 = vand.u32 %v4953, 2147483648
        %v5041 = vor.u32 1.1754944e-38, %v5040
        %v5042 = vsel %vm5039, %v5041, %v5037
        %v5043 = vmul.f32 1.0, %v5042
        %v5044 = vtanh.pop %v4928
        %v5045 = vtanh.pop %v4929
        %v5046 = vmul.f32 %v4998, %v4685
        %v5047 = vmul.f32 %v5013, %v4686
        %v5048 = vmul.f32 %v4968, %v5044
        %v5049 = vmul.f32 %v4983, %v5045
        %v5050 = vadd.f32 %v5046, %v5048
        %v5051 = vadd.f32 %v5047, %v5049
        %v5052 = vtanh.pop %v5050
        %v5053 = vtanh.pop %v5051
        %v5054 = vmul.f32 %v5028, %v5052
        %v5055 = vmul.f32 %v5043, %v5053
        %v5056 = vpack.c.bf16 %v5055, %v5054
        %s5057 = scalar_lea.vmem %s6, 48
        %5058 = vst [vmem:[%s5057] sm:$0xff] %v5056
        %s5059 = scalar_lea.vmem [#allocation2], 224
        %v5060 = vld [vmem:[%s5059] sm:$0xff]
        %v5061 = vld [vmem:[%s5059 + $0x8] sm:$0xff]
        %v5062 = vld [vmem:[%s5059 + $0x10] sm:$0xff]
        %v5063 = vld [vmem:[%s5059 + $0x18] sm:$0xff]
        %v5064 = vunpack.c.l.bf16 %v5060
        %v5065 = vunpack.c.h.bf16 %v5060
        %v5066 = vunpack.c.l.bf16 %v5061
        %v5067 = vunpack.c.h.bf16 %v5061
        %v5068 = vunpack.c.l.bf16 %v5062
        %v5069 = vunpack.c.h.bf16 %v5062
        %v5070 = vunpack.c.l.bf16 %v5063
        %v5071 = vunpack.c.h.bf16 %v5063
        %v5073 = vunpack.c.l.b16 %v5056
        %v5074 = vunpack.c.h.b16 %v5056
        %v5075 = vpack.c.b16 %v5073, %v5073
        %v5076 = vpack.c.b16 %v5074, %v5074
        %5079 = vmatpush.bf16.msra.mxu0 %v2325
        %5080 = vmatpush.bf16.msra.mxu0 %v2317
        %5081 = vmatpush.bf16.msra.mxu0 %v2309
        %5082 = vmatpush.bf16.msra.mxu0 %v2301
        %5083 = vmatpush.bf16.msra.mxu0 %v2293
        %5084 = vmatpush.bf16.msra.mxu0 %v2285
        %5085 = vmatpush.bf16.msra.mxu0 %v2277
        %5086 = vmatpush.bf16.msra.mxu0 %v2269
        %5087 = vmatmul.bf16.gmra.mxu0 %v5075
        %v5088 = vpop.f32.mrf.mxu0
        %v5089 = vadd.f32 0.0, %v5088
        %v5090 = vpop.f32.mrf.mxu0
        %5091 = vdwg.mxu0
        %5092 = vmatpush.bf16.msra.mxu0 %v2389
        %5093 = vmatpush.bf16.msra.mxu0 %v2381
        %5094 = vmatpush.bf16.msra.mxu0 %v2373
        %5095 = vmatpush.bf16.msra.mxu0 %v2365
        %5096 = vmatpush.bf16.msra.mxu0 %v2357
        %5097 = vmatpush.bf16.msra.mxu0 %v2349
        %5098 = vmatpush.bf16.msra.mxu0 %v2341
        %5099 = vmatpush.bf16.msra.mxu0 %v2333
        %5100 = vmatmul.bf16.gmra.mxu0 %v5076
        %v5101 = vpop.f32.mrf.mxu0
        %v5102 = vadd.f32 %v5089, %v5101
        %v5103 = vpop.f32.mrf.mxu0
        %5104 = vdwg.mxu0
        %5105 = vmatpush.bf16.msra.mxu0 %v2326
        %5106 = vmatpush.bf16.msra.mxu0 %v2318
        %5107 = vmatpush.bf16.msra.mxu0 %v2310
        %5108 = vmatpush.bf16.msra.mxu0 %v2302
        %5109 = vmatpush.bf16.msra.mxu0 %v2294
        %5110 = vmatpush.bf16.msra.mxu0 %v2286
        %5111 = vmatpush.bf16.msra.mxu0 %v2278
        %5112 = vmatpush.bf16.msra.mxu0 %v2270
        %5113 = vmatmul.bf16.gmra.mxu0 %v5075
        %v5114 = vpop.f32.mrf.mxu0
        %v5115 = vadd.f32 0.0, %v5114
        %v5116 = vpop.f32.mrf.mxu0
        %5117 = vdwg.mxu0
        %5118 = vmatpush.bf16.msra.mxu0 %v2390
        %5119 = vmatpush.bf16.msra.mxu0 %v2382
        %5120 = vmatpush.bf16.msra.mxu0 %v2374
        %5121 = vmatpush.bf16.msra.mxu0 %v2366
        %5122 = vmatpush.bf16.msra.mxu0 %v2358
        %5123 = vmatpush.bf16.msra.mxu0 %v2350
        %5124 = vmatpush.bf16.msra.mxu0 %v2342
        %5125 = vmatpush.bf16.msra.mxu0 %v2334
        %5126 = vmatmul.bf16.gmra.mxu0 %v5076
        %v5127 = vpop.f32.mrf.mxu0
        %v5128 = vadd.f32 %v5115, %v5127
        %v5129 = vpop.f32.mrf.mxu0
        %5130 = vdwg.mxu0
        %5131 = vmatpush.bf16.msra.mxu0 %v2327
        %5132 = vmatpush.bf16.msra.mxu0 %v2319
        %5133 = vmatpush.bf16.msra.mxu0 %v2311
        %5134 = vmatpush.bf16.msra.mxu0 %v2303
        %5135 = vmatpush.bf16.msra.mxu0 %v2295
        %5136 = vmatpush.bf16.msra.mxu0 %v2287
        %5137 = vmatpush.bf16.msra.mxu0 %v2279
        %5138 = vmatpush.bf16.msra.mxu0 %v2271
        %5139 = vmatmul.bf16.gmra.mxu0 %v5075
        %v5140 = vpop.f32.mrf.mxu0
        %v5141 = vadd.f32 0.0, %v5140
        %v5142 = vpop.f32.mrf.mxu0
        %5143 = vdwg.mxu0
        %5144 = vmatpush.bf16.msra.mxu0 %v2391
        %5145 = vmatpush.bf16.msra.mxu0 %v2383
        %5146 = vmatpush.bf16.msra.mxu0 %v2375
        %5147 = vmatpush.bf16.msra.mxu0 %v2367
        %5148 = vmatpush.bf16.msra.mxu0 %v2359
        %5149 = vmatpush.bf16.msra.mxu0 %v2351
        %5150 = vmatpush.bf16.msra.mxu0 %v2343
        %5151 = vmatpush.bf16.msra.mxu0 %v2335
        %5152 = vmatmul.bf16.gmra.mxu0 %v5076
        %v5153 = vpop.f32.mrf.mxu0
        %v5154 = vadd.f32 %v5141, %v5153
        %v5155 = vpop.f32.mrf.mxu0
        %5156 = vdwg.mxu0
        %5157 = vmatpush.bf16.msra.mxu0 %v2328
        %5158 = vmatpush.bf16.msra.mxu0 %v2320
        %5159 = vmatpush.bf16.msra.mxu0 %v2312
        %5160 = vmatpush.bf16.msra.mxu0 %v2304
        %5161 = vmatpush.bf16.msra.mxu0 %v2296
        %5162 = vmatpush.bf16.msra.mxu0 %v2288
        %5163 = vmatpush.bf16.msra.mxu0 %v2280
        %5164 = vmatpush.bf16.msra.mxu0 %v2272
        %5165 = vmatmul.bf16.gmra.mxu0 %v5075
        %v5166 = vpop.f32.mrf.mxu0
        %v5167 = vadd.f32 0.0, %v5166
        %v5168 = vpop.f32.mrf.mxu0
        %5169 = vdwg.mxu0
        %5170 = vmatpush.bf16.msra.mxu0 %v2392
        %5171 = vmatpush.bf16.msra.mxu0 %v2384
        %5172 = vmatpush.bf16.msra.mxu0 %v2376
        %5173 = vmatpush.bf16.msra.mxu0 %v2368
        %5174 = vmatpush.bf16.msra.mxu0 %v2360
        %5175 = vmatpush.bf16.msra.mxu0 %v2352
        %5176 = vmatpush.bf16.msra.mxu0 %v2344
        %5177 = vmatpush.bf16.msra.mxu0 %v2336
        %5178 = vmatmul.bf16.gmra.mxu0 %v5076
        %v5179 = vpop.f32.mrf.mxu0
        %v5180 = vadd.f32 %v5167, %v5179
        %v5181 = vpop.f32.mrf.mxu0
        %5182 = vdwg.mxu0
        %5183 = vmatpush.bf16.msra.mxu0 %v2329
        %5184 = vmatpush.bf16.msra.mxu0 %v2321
        %5185 = vmatpush.bf16.msra.mxu0 %v2313
        %5186 = vmatpush.bf16.msra.mxu0 %v2305
        %5187 = vmatpush.bf16.msra.mxu0 %v2297
        %5188 = vmatpush.bf16.msra.mxu0 %v2289
        %5189 = vmatpush.bf16.msra.mxu0 %v2281
        %5190 = vmatpush.bf16.msra.mxu0 %v2273
        %5191 = vmatmul.bf16.gmra.mxu0 %v5075
        %v5192 = vpop.f32.mrf.mxu0
        %v5193 = vadd.f32 0.0, %v5192
        %v5194 = vpop.f32.mrf.mxu0
        %5195 = vdwg.mxu0
        %5196 = vmatpush.bf16.msra.mxu0 %v2393
        %5197 = vmatpush.bf16.msra.mxu0 %v2385
        %5198 = vmatpush.bf16.msra.mxu0 %v2377
        %5199 = vmatpush.bf16.msra.mxu0 %v2369
        %5200 = vmatpush.bf16.msra.mxu0 %v2361
        %5201 = vmatpush.bf16.msra.mxu0 %v2353
        %5202 = vmatpush.bf16.msra.mxu0 %v2345
        %5203 = vmatpush.bf16.msra.mxu0 %v2337
        %5204 = vmatmul.bf16.gmra.mxu0 %v5076
        %v5205 = vpop.f32.mrf.mxu0
        %v5206 = vadd.f32 %v5193, %v5205
        %v5207 = vpop.f32.mrf.mxu0
        %5208 = vdwg.mxu0
        %5209 = vmatpush.bf16.msra.mxu0 %v2330
        %5210 = vmatpush.bf16.msra.mxu0 %v2322
        %5211 = vmatpush.bf16.msra.mxu0 %v2314
        %5212 = vmatpush.bf16.msra.mxu0 %v2306
        %5213 = vmatpush.bf16.msra.mxu0 %v2298
        %5214 = vmatpush.bf16.msra.mxu0 %v2290
        %5215 = vmatpush.bf16.msra.mxu0 %v2282
        %5216 = vmatpush.bf16.msra.mxu0 %v2274
        %5217 = vmatmul.bf16.gmra.mxu0 %v5075
        %v5218 = vpop.f32.mrf.mxu0
        %v5219 = vadd.f32 0.0, %v5218
        %v5220 = vpop.f32.mrf.mxu0
        %5221 = vdwg.mxu0
        %5222 = vmatpush.bf16.msra.mxu0 %v2394
        %5223 = vmatpush.bf16.msra.mxu0 %v2386
        %5224 = vmatpush.bf16.msra.mxu0 %v2378
        %5225 = vmatpush.bf16.msra.mxu0 %v2370
        %5226 = vmatpush.bf16.msra.mxu0 %v2362
        %5227 = vmatpush.bf16.msra.mxu0 %v2354
        %5228 = vmatpush.bf16.msra.mxu0 %v2346
        %5229 = vmatpush.bf16.msra.mxu0 %v2338
        %5230 = vmatmul.bf16.gmra.mxu0 %v5076
        %v5231 = vpop.f32.mrf.mxu0
        %v5232 = vadd.f32 %v5219, %v5231
        %v5233 = vpop.f32.mrf.mxu0
        %5234 = vdwg.mxu0
        %5235 = vmatpush.bf16.msra.mxu0 %v2331
        %5236 = vmatpush.bf16.msra.mxu0 %v2323
        %5237 = vmatpush.bf16.msra.mxu0 %v2315
        %5238 = vmatpush.bf16.msra.mxu0 %v2307
        %5239 = vmatpush.bf16.msra.mxu0 %v2299
        %5240 = vmatpush.bf16.msra.mxu0 %v2291
        %5241 = vmatpush.bf16.msra.mxu0 %v2283
        %5242 = vmatpush.bf16.msra.mxu0 %v2275
        %5243 = vmatmul.bf16.gmra.mxu0 %v5075
        %v5244 = vpop.f32.mrf.mxu0
        %v5245 = vadd.f32 0.0, %v5244
        %v5246 = vpop.f32.mrf.mxu0
        %5247 = vdwg.mxu0
        %5248 = vmatpush.bf16.msra.mxu0 %v2395
        %5249 = vmatpush.bf16.msra.mxu0 %v2387
        %5250 = vmatpush.bf16.msra.mxu0 %v2379
        %5251 = vmatpush.bf16.msra.mxu0 %v2371
        %5252 = vmatpush.bf16.msra.mxu0 %v2363
        %5253 = vmatpush.bf16.msra.mxu0 %v2355
        %5254 = vmatpush.bf16.msra.mxu0 %v2347
        %5255 = vmatpush.bf16.msra.mxu0 %v2339
        %5256 = vmatmul.bf16.gmra.mxu0 %v5076
        %v5257 = vpop.f32.mrf.mxu0
        %v5258 = vadd.f32 %v5245, %v5257
        %v5259 = vpop.f32.mrf.mxu0
        %5260 = vdwg.mxu0
        %5261 = vmatpush.bf16.msra.mxu0 %v2332
        %5262 = vmatpush.bf16.msra.mxu0 %v2324
        %5263 = vmatpush.bf16.msra.mxu0 %v2316
        %5264 = vmatpush.bf16.msra.mxu0 %v2308
        %5265 = vmatpush.bf16.msra.mxu0 %v2300
        %5266 = vmatpush.bf16.msra.mxu0 %v2292
        %5267 = vmatpush.bf16.msra.mxu0 %v2284
        %5268 = vmatpush.bf16.msra.mxu0 %v2276
        %5269 = vmatmul.bf16.gmra.mxu0 %v5075
        %v5270 = vpop.f32.mrf.mxu0
        %v5271 = vadd.f32 0.0, %v5270
        %v5272 = vpop.f32.mrf.mxu0
        %5273 = vdwg.mxu0
        %5274 = vmatpush.bf16.msra.mxu0 %v2396
        %5275 = vmatpush.bf16.msra.mxu0 %v2388
        %5276 = vmatpush.bf16.msra.mxu0 %v2380
        %5277 = vmatpush.bf16.msra.mxu0 %v2372
        %5278 = vmatpush.bf16.msra.mxu0 %v2364
        %5279 = vmatpush.bf16.msra.mxu0 %v2356
        %5280 = vmatpush.bf16.msra.mxu0 %v2348
        %5281 = vmatpush.bf16.msra.mxu0 %v2340
        %5282 = vmatmul.bf16.gmra.mxu0 %v5076
        %v5283 = vpop.f32.mrf.mxu0
        %v5284 = vadd.f32 %v5271, %v5283
        %v5285 = vpop.f32.mrf.mxu0
        %5286 = vdwg.mxu0
        %v5287 = vadd.f32 %v5064, %v5102
        %v5288 = vadd.f32 %v5065, %v5128
        %v5289 = vadd.f32 %v5066, %v5154
        %v5290 = vadd.f32 %v5067, %v5180
        %v5291 = vadd.f32 %v5068, %v5206
        %v5292 = vadd.f32 %v5069, %v5232
        %v5293 = vadd.f32 %v5070, %v5258
        %v5294 = vadd.f32 %v5071, %v5284
        %v5295 = vxor.u32 %v5287, 2147483648
        %v5296 = vxor.u32 %v5288, 2147483648
        %v5297 = vxor.u32 %v5289, 2147483648
        %v5298 = vxor.u32 %v5290, 2147483648
        %v5299 = vxor.u32 %v5291, 2147483648
        %v5300 = vxor.u32 %v5292, 2147483648
        %v5301 = vmul.f32 %v5295, 1.442695
        %v5302 = vpow.pop %v5301
        %v5303 = vmul.f32 %v5296, 1.442695
        %v5304 = vpow.pop %v5303
        %v5305 = vmul.f32 %v5297, 1.442695
        %v5306 = vpow.pop %v5305
        %v5307 = vmul.f32 %v5298, 1.442695
        %v5308 = vpow.pop %v5307
        %v5309 = vmul.f32 %v5299, 1.442695
        %v5310 = vpow.pop %v5309
        %v5311 = vmul.f32 %v5300, 1.442695
        %v5312 = vpow.pop %v5311
        %v5313 = vadd.f32 %v5302, 1.0
        %v5314 = vadd.f32 %v5304, 1.0
        %v5315 = vadd.f32 %v5306, 1.0
        %v5316 = vadd.f32 %v5308, 1.0
        %v5317 = vadd.f32 %v5310, 1.0
        %v5318 = vadd.f32 %v5312, 1.0
        %v5319 = vrcp.pop %v5313
        %v5320 = vmul.f32 %v5313, %v5319
        %v5321 = vsub.f32 1.0, %v5320
        %v5322 = vmul.f32 %v5319, %v5321
        %v5323 = vadd.f32 %v5319, %v5322
        %vm5324 = vweird.f32 %v5313
        %vm5325 = vweird.f32 %v5319
        %vm5326 = vmor %vm5324, %vm5325
        %v5327 = vsel %vm5326, %v5319, %v5323
        %v5328 = vand.u32 2147483647, %v5313
        %vm5329 = vcmp.eq.f32.partialorder %v5328, 8.507059e+37
        %v5330 = vand.u32 %v5313, 2147483648
        %v5331 = vor.u32 1.1754944e-38, %v5330
        %v5332 = vsel %vm5329, %v5331, %v5327
        %v5333 = vmul.f32 1.0, %v5332
        %v5334 = vrcp.pop %v5314
        %v5335 = vmul.f32 %v5314, %v5334
        %v5336 = vsub.f32 1.0, %v5335
        %v5337 = vmul.f32 %v5334, %v5336
        %v5338 = vadd.f32 %v5334, %v5337
        %vm5339 = vweird.f32 %v5314
        %vm5340 = vweird.f32 %v5334
        %vm5341 = vmor %vm5339, %vm5340
        %v5342 = vsel %vm5341, %v5334, %v5338
        %v5343 = vand.u32 2147483647, %v5314
        %vm5344 = vcmp.eq.f32.partialorder %v5343, 8.507059e+37
        %v5345 = vand.u32 %v5314, 2147483648
        %v5346 = vor.u32 1.1754944e-38, %v5345
        %v5347 = vsel %vm5344, %v5346, %v5342
        %v5348 = vmul.f32 1.0, %v5347
        %v5349 = vrcp.pop %v5315
        %v5350 = vmul.f32 %v5315, %v5349
        %v5351 = vsub.f32 1.0, %v5350
        %v5352 = vmul.f32 %v5349, %v5351
        %v5353 = vadd.f32 %v5349, %v5352
        %vm5354 = vweird.f32 %v5315
        %vm5355 = vweird.f32 %v5349
        %vm5356 = vmor %vm5354, %vm5355
        %v5357 = vsel %vm5356, %v5349, %v5353
        %v5358 = vand.u32 2147483647, %v5315
        %vm5359 = vcmp.eq.f32.partialorder %v5358, 8.507059e+37
        %v5360 = vand.u32 %v5315, 2147483648
        %v5361 = vor.u32 1.1754944e-38, %v5360
        %v5362 = vsel %vm5359, %v5361, %v5357
        %v5363 = vmul.f32 1.0, %v5362
        %v5364 = vrcp.pop %v5316
        %v5365 = vmul.f32 %v5316, %v5364
        %v5366 = vsub.f32 1.0, %v5365
        %v5367 = vmul.f32 %v5364, %v5366
        %v5368 = vadd.f32 %v5364, %v5367
        %vm5369 = vweird.f32 %v5316
        %vm5370 = vweird.f32 %v5364
        %vm5371 = vmor %vm5369, %vm5370
        %v5372 = vsel %vm5371, %v5364, %v5368
        %v5373 = vand.u32 2147483647, %v5316
        %vm5374 = vcmp.eq.f32.partialorder %v5373, 8.507059e+37
        %v5375 = vand.u32 %v5316, 2147483648
        %v5376 = vor.u32 1.1754944e-38, %v5375
        %v5377 = vsel %vm5374, %v5376, %v5372
        %v5378 = vmul.f32 1.0, %v5377
        %v5379 = vrcp.pop %v5317
        %v5380 = vmul.f32 %v5317, %v5379
        %v5381 = vsub.f32 1.0, %v5380
        %v5382 = vmul.f32 %v5379, %v5381
        %v5383 = vadd.f32 %v5379, %v5382
        %vm5384 = vweird.f32 %v5317
        %vm5385 = vweird.f32 %v5379
        %vm5386 = vmor %vm5384, %vm5385
        %v5387 = vsel %vm5386, %v5379, %v5383
        %v5388 = vand.u32 2147483647, %v5317
        %vm5389 = vcmp.eq.f32.partialorder %v5388, 8.507059e+37
        %v5390 = vand.u32 %v5317, 2147483648
        %v5391 = vor.u32 1.1754944e-38, %v5390
        %v5392 = vsel %vm5389, %v5391, %v5387
        %v5393 = vmul.f32 1.0, %v5392
        %v5394 = vrcp.pop %v5318
        %v5395 = vmul.f32 %v5318, %v5394
        %v5396 = vsub.f32 1.0, %v5395
        %v5397 = vmul.f32 %v5394, %v5396
        %v5398 = vadd.f32 %v5394, %v5397
        %vm5399 = vweird.f32 %v5318
        %vm5400 = vweird.f32 %v5394
        %vm5401 = vmor %vm5399, %vm5400
        %v5402 = vsel %vm5401, %v5394, %v5398
        %v5403 = vand.u32 2147483647, %v5318
        %vm5404 = vcmp.eq.f32.partialorder %v5403, 8.507059e+37
        %v5405 = vand.u32 %v5318, 2147483648
        %v5406 = vor.u32 1.1754944e-38, %v5405
        %v5407 = vsel %vm5404, %v5406, %v5402
        %v5408 = vmul.f32 1.0, %v5407
        %v5409 = vtanh.pop %v5293
        %v5410 = vtanh.pop %v5294
        %v5411 = vmul.f32 %v5363, %v5050
        %v5412 = vmul.f32 %v5378, %v5051
        %v5413 = vmul.f32 %v5333, %v5409
        %v5414 = vmul.f32 %v5348, %v5410
        %v5415 = vadd.f32 %v5411, %v5413
        %v5416 = vadd.f32 %v5412, %v5414
        %v5417 = vtanh.pop %v5415
        %v5418 = vtanh.pop %v5416
        %v5419 = vmul.f32 %v5393, %v5417
        %v5420 = vmul.f32 %v5408, %v5418
        %v5421 = vpack.c.bf16 %v5420, %v5419
        %s5422 = scalar_lea.vmem %s6, 56
        %5423 = vst [vmem:[%s5422] sm:$0xff] %v5421
        %5424 = vst [vmem:[%s356] sm:$0xff] %v5419
        %5425 = vst [vmem:[%s356 + $0x8] sm:$0xff] %v5420
        %5426 = vst [vmem:[%s361] sm:$0xff] %v5415
        %5427 = vst [vmem:[%s361 + $0x8] sm:$0xff] %v5416
        %p5428 = scmp.lt.s32.totalorder %s24, 2
        %s5429 = scalar_select %p5428, %s24, 2
        %s5430 = smul.addr %s5429, 2
        %s5431 = smul.addr %s5430, 8
        %s5432 = scalar_lea.vmem %s4, %s5431
        %p5433 = scmp.lt.s32.totalorder %s24, 2
        %s5434 = scalar_select %p5433, %s24, 2
        %s5435 = smul.addr %s5434, 2
        %s5436 = smul.addr %s5435, 8
        %s5437 = scalar_lea.vmem %s5, %s5436
        // Predicated region
        $region49: #{language_model_forward.2} parent=35 // pred_check
          %p5438 = pneg %p141
        $region50: #{language_model_forward.2} parent=35 // pred_check_branch
          %5440 = sbr.rel (%p5438) target = $region52
        $region51: #{language_model_forward.2} parent=35 // pred_region
          _
        $region52: #{language_model_forward.2} parent=35 // pred_fallthru
          _
        // Predicated region
        $region53: #{language_model_forward.2} parent=35 // pred_check
          %p5441 = pneg %p167
        $region54: #{language_model_forward.2} parent=35 // pred_check_branch
          %5443 = sbr.rel (%p5441) target = $region56
        $region55: #{language_model_forward.2} parent=35 // pred_region
          _
        $region56: #{language_model_forward.2} parent=35 // pred_fallthru
          _
        // Predicated region
        $region57: #{language_model_forward.2} parent=35 // pred_check
          %p5444 = pneg %p188
        $region58: #{language_model_forward.2} parent=35 // pred_check_branch
          %5446 = sbr.rel (%p5444) target = $region60
        $region59: #{language_model_forward.2} parent=35 // pred_region
          _
        $region60: #{language_model_forward.2} parent=35 // pred_fallthru
          _
        // Predicated region
        $region61: #{language_model_forward.2} parent=35 // pred_check
          %p5447 = pneg %p188
        $region62: #{language_model_forward.2} parent=35 // pred_check_branch
          %5449 = sbr.rel (%p5447) target = $region64
        $region63: #{language_model_forward.2} parent=35 // pred_region
          _
        $region64: #{language_model_forward.2} parent=35 // pred_fallthru
          _
      $region36: #{language_model_forward.2} parent=5 // pred_fallthru
        _
      %p5450 = scmp.le.s32.totalorder 2, %s19
      // Predicated region
      $region65: #{language_model_forward.2} parent=5 // pred_check
        %p5451 = pneg %p5450
      $region66: #{language_model_forward.2} parent=5 // pred_check_branch
        %5453 = sbr.rel (%p5451) target = $region68
      $region67: #{language_model_forward.2} parent=5 // pred_region
        %s5454 = ssub.s32 %s19, 2
        // Predicated region
        $region69: #{language_model_forward.2} parent=67 // pred_check
          %p5455 = pneg %p147
        $region70: #{language_model_forward.2} parent=67 // pred_check_branch
          %5457 = sbr.rel (%p5455) target = $region72
        $region71: #{language_model_forward.2} parent=67 // pred_region
          %p5458 = scmp.lt.s32.totalorder %s25, 2
          %s5459 = scalar_select %p5458, %s25, 2
          %s5460 = smul.addr %s5459, 2
          %s5461 = smul.addr %s5460, 8
          %s5462 = scalar_lea.vmem %s4, %s5461
        $region72: #{language_model_forward.2} parent=67 // pred_fallthru
          _
        // Predicated region
        $region73: #{language_model_forward.2} parent=67 // pred_check
          %p5463 = pneg %p173
        $region74: #{language_model_forward.2} parent=67 // pred_check_branch
          %5465 = sbr.rel (%p5463) target = $region76
        $region75: #{language_model_forward.2} parent=67 // pred_region
          %p5466 = scmp.lt.s32.totalorder %s25, 2
          %s5467 = scalar_select %p5466, %s25, 2
          %s5468 = smul.addr %s5467, 2
          %s5469 = smul.addr %s5468, 8
          %s5470 = scalar_lea.vmem %s5, %s5469
        $region76: #{language_model_forward.2} parent=67 // pred_fallthru
          _
      $region68: #{language_model_forward.2} parent=5 // pred_fallthru
        _
    $region6: #{language_model_forward.2} parent=1 // loop_footer
      %s23 = sadd.s32 1, %s19
    $region7: #{language_model_forward.2} parent=1 // loop_footer_branch
      %18 = sbr.rel target = $region3
    $region8: #{language_model_forward.2} parent=1 // loop_exit
      _
    %5471 = vsyncpa [#allocation4], 1
    %s5472 = scalar_lea.sflag [#allocation4], 1
    %5473 = vsyncpa %s5472, 1
    %5474 = vsyncpa [#allocation6], 1
    %s5475 = scalar_lea.sflag [#allocation6], 1
    %5476 = vsyncpa %s5475, 1

</llo_original>
